<compile_context>
chip_gen: v5e
topology: v5e:2x2
jax: 0.10.0
libtpu: 0.0.40
codegen_flags: <defaults>
</compile_context>

<pallas_src>
import jax
import jax.numpy as jnp
from jax.experimental import pallas as pl
from jax.experimental.pallas import tpu as pltpu


# ----------------------------- Pallas kernels --------------------------------

def _conv1_pool_kernel(p_ref, w_ref, b_ref, o_ref):
    """conv1-as-GEMM + bias + ReLU + 2x2 max-pool for a tile of BM images.

    p_ref: (BM, 196, 75) bf16 -- 4 pool quadrants (quadrant-major) x 49 pooled
           positions, im2col'd with features in (kh, kw, cin) order.
    w_ref: (75, 16) bf16;  b_ref: (1, 16) f32.
    o_ref: (BM, 49, 16) bf16 pooled + ReLU'd activation.
    """
    bm = p_ref.shape[0]
    p = p_ref[...].reshape(bm * 196, 75)
    y = jnp.dot(p, w_ref[...], preferred_element_type=jnp.float32)
    y = y.reshape(bm, 4, 49, 16)
    y = jnp.maximum(jnp.maximum(y[:, 0], y[:, 1]),
                    jnp.maximum(y[:, 2], y[:, 3]))       # 2x2 max-pool
    y = jnp.maximum(y + b_ref[...], 0.0)                 # bias + ReLU (f32)
    o_ref[...] = y.astype(o_ref.dtype)


def _conv3_mlp_kernel(p_ref, w3_ref, b3_ref, w1_ref, b1_ref,
                      w2_ref, b2_ref, wo_ref, bo_ref, o_ref):
    """conv3 (BN folded) + bias + ReLU + 2x2 max-pool + flatten
       + fc1 + ReLU + (Dropout = identity) + fc2 + ReLU + fc3,
    fused for a tile of BM images; no intermediate ever leaves VMEM/vregs.

    p_ref : (BM, 36, 144) bf16 quadrant-major conv3 im2col patches.
    w1_ref: (9, 32, 500) bf16 -- fc1 weight split per pooled spatial position,
            so the (h,w,c) flatten becomes 9 accumulating GEMMs.
    """
    bm = p_ref.shape[0]
    p = p_ref[...].reshape(bm * 36, 144)
    y = jnp.dot(p, w3_ref[...], preferred_element_type=jnp.float32)
    y = y.reshape(bm, 4, 9, 32)
    y = jnp.maximum(jnp.maximum(y[:, 0], y[:, 1]),
                    jnp.maximum(y[:, 2], y[:, 3]))       # 2x2 max-pool
    y = jnp.maximum(y + b3_ref[...], 0.0).astype(jnp.bfloat16)   # (BM, 9, 32)

    # fc1: feat(BM,288) @ W1(288,500) == sum_m  y[:, m, :] @ W1[m]
    h = jnp.dot(y[:, 0], w1_ref[0], preferred_element_type=jnp.float32)
    for m in range(1, 9):
        h += jnp.dot(y[:, m], w1_ref[m], preferred_element_type=jnp.float32)
    h = jnp.maximum(h + b1_ref[...], 0.0)
    # Dropout(0.5) is the identity at inference.
    # TODO(synk): training-mode dropout masking is not implemented.
    h = jnp.dot(h.astype(jnp.bfloat16), w2_ref[...],
                preferred_element_type=jnp.float32)
    h = jnp.maximum(h + b2_ref[...], 0.0)
    o = jnp.dot(h.astype(jnp.bfloat16), wo_ref[...],
                preferred_element_type=jnp.float32)
    o_ref[...] = o + bo_ref[...]


# ----------------------------- kernel wrappers --------------------------------

def _batch_tile(n, cap=128):
    """Images per grid step: the whole batch if tiny, else a multiple of 8
    capped at `cap` and sized so there are >= 2 grid steps (v7x megacore).
    cap=128 keeps the double-buffered per-step input < 8 MB (v5e-safe)."""
    if n <= 8:
        return n
    t = min(cap, -(-n // 2))
    return ((t + 7) // 8) * 8


def conv1_pool(patches, w, b):
    """patches: [N, 196, 75] bf16 -> pooled ReLU'd conv1 output [N, 49, 16]."""
    n = patches.shape[0]
    bm = _batch_tile(n)
    return pl.pallas_call(
        _conv1_pool_kernel,
        grid=(pl.cdiv(n, bm),),
        in_specs=[pl.BlockSpec((bm, 196, 75), lambda i: (i, 0, 0)),
                  pl.BlockSpec((75, 16), lambda i: (0, 0)),
                  pl.BlockSpec((1, 16), lambda i: (0, 0))],
        out_specs=pl.BlockSpec((bm, 49, 16), lambda i: (i, 0, 0)),
        out_shape=jax.ShapeDtypeStruct((n, 49, 16), jnp.bfloat16),
        compiler_params=pltpu.CompilerParams(
            dimension_semantics=("parallel",)),
    )(patches, w, b)


def conv3_mlp(patches, w3, b3, w1, b1, w2, b2, wo, bo):
    """patches: [N, 36, 144] bf16 -> logits [N, 10] f32 (conv3+pool+MLP fused)."""
    n = patches.shape[0]
    bm = _batch_tile(n)

    def rep(a):                      # weight/bias replicated across the grid
        return pl.BlockSpec(a.shape, lambda i, _nd=a.ndim: (0,) * _nd)

    return pl.pallas_call(
        _conv3_mlp_kernel,
        grid=(pl.cdiv(n, bm),),
        in_specs=[pl.BlockSpec((bm, 36, 144), lambda i: (i, 0, 0)),
                  rep(w3), rep(b3), rep(w1), rep(b1), rep(w2), rep(b2),
                  rep(wo), rep(bo)],
        out_specs=pl.BlockSpec((bm, 10), lambda i: (i, 0)),
        out_shape=jax.ShapeDtypeStruct((n, 10), jnp.float32),
        compiler_params=pltpu.CompilerParams(
            dimension_semantics=("parallel",)),
    )(patches, w3, b3, w1, b1, w2, b2, wo, bo)


# --------------------- glue: quadrant im2col (bf16, small) --------------------

def _conv1_patches(xpad):
    """xpad: [N, 34, 34, 3] NHWC (pad=1).  conv1 k5/s2; pooled grid 7x7.
    Returns [N, 196, 75]: the 4 pool quadrants concatenated along M
    (quadrant-major), features in (kh, kw, cin) order."""
    n = xpad.shape[0]
    quads = []
    for qi in range(2):
        for qj in range(2):
            cols = [xpad[:, 2 * qi + ki:2 * qi + ki + 25:4,
                           2 * qj + kj:2 * qj + kj + 25:4, :]      # [N,7,7,3]
                    for ki in range(5) for kj in range(5)]
            quads.append(jnp.stack(cols, axis=3).reshape(n, 49, 75))
    return jnp.concatenate(quads, axis=1)


def _conv3_patches(ypad):
    """ypad: [N, 9, 9, 16] NHWC (pad=1).  conv3 k3/s1; pooled grid 3x3.
    Returns [N, 36, 144] quadrant-major."""
    n = ypad.shape[0]
    quads = []
    for qi in range(2):
        for qj in range(2):
            cols = [ypad[:, qi + ki:qi + ki + 5:2,
                           qj + kj:qj + kj + 5:2, :]               # [N,3,3,16]
                    for ki in range(3) for kj in range(3)]
            quads.append(jnp.stack(cols, axis=3).reshape(n, 9, 144))
    return jnp.concatenate(quads, axis=1)


# ----------------------------- parameters -------------------------------------

def init_params(key):
    ks = jax.random.split(key, 14)

    def nrm(k, shape, scale=0.05):
        return scale * jax.random.normal(k, shape, dtype=jnp.float32)

    return {
        "conv1_w": nrm(ks[0], (16, 3, 5, 5)),
        "conv1_b": nrm(ks[1], (16,)),
        "conv3_w": nrm(ks[2], (32, 16, 3, 3)),
        "conv3_b": nrm(ks[3], (32,)),
        "bn_gamma": 1.0 + nrm(ks[4], (32,)),
        "bn_beta": nrm(ks[5], (32,)),
        "bn_mean": nrm(ks[6], (32,)),
        "bn_var": 1.0 + 0.1 * jnp.abs(jax.random.normal(ks[7], (32,), dtype=jnp.float32)),
        "fc1_w": nrm(ks[8], (500, 32 * 3 * 3)),
        "fc1_b": nrm(ks[9], (500,)),
        "fc2_w": nrm(ks[10], (50, 500)),
        "fc2_b": nrm(ks[11], (50,)),
        "fc3_w": nrm(ks[12], (10, 50)),
        "fc3_b": nrm(ks[13], (10,)),
    }


def pack_params(params):
    """One-time weight packing: BN fold into conv3, (K,Cout) repack in
    (kh,kw,cin) order, fc transposes (+ torch (c,h,w)-flatten permutation for
    fc1, split per spatial position), bf16 MXU weights, f32 biases."""
    eps = 1e-5
    scale = params["bn_gamma"] / jnp.sqrt(params["bn_var"] + eps)
    w3f = params["conv3_w"] * scale[:, None, None, None]
    b3f = (params["conv3_b"] - params["bn_mean"]) * scale + params["bn_beta"]
    return {
        "w1": params["conv1_w"].transpose(2, 3, 1, 0).reshape(75, 16).astype(jnp.bfloat16),
        "b1": params["conv1_b"].reshape(1, 16).astype(jnp.float32),
        "w3": w3f.transpose(2, 3, 1, 0).reshape(144, 32).astype(jnp.bfloat16),
        "b3": b3f.reshape(1, 32).astype(jnp.float32),
        # fc1 expects torch's (c,h,w) flatten; our activation is (h,w,c) and is
        # consumed as 9 per-position GEMMs -> pack as (9 positions, 32, 500).
        "fc1_w": params["fc1_w"].reshape(500, 32, 3, 3).transpose(2, 3, 1, 0)
                                 .reshape(9, 32, 500).astype(jnp.bfloat16),
        "fc1_b": params["fc1_b"].reshape(1, 500).astype(jnp.float32),
        "fc2_w": params["fc2_w"].T.astype(jnp.bfloat16),
        "fc2_b": params["fc2_b"].reshape(1, 50).astype(jnp.float32),
        "fc3_w": params["fc3_w"].T.astype(jnp.bfloat16),
        "fc3_b": params["fc3_b"].reshape(1, 10).astype(jnp.float32),
    }


# ----------------------------- forward pass ------------------------------------

@jax.jit
def forward(packed, x):
    n = x.shape[0]
    # NCHW -> NHWC (channels on lanes), pad=1, bf16 activations end-to-end.
    xh = jnp.pad(x.astype(jnp.bfloat16).transpose(0, 2, 3, 1),
                 ((0, 0), (1, 1), (1, 1), (0, 0)))                  # [N,34,34,3]

    # conv1(k5,s2,p1) + ReLU + maxpool2x2  (one fused kernel) -> [N,49,16]
    y1 = conv1_pool(_conv1_patches(xh), packed["w1"], packed["b1"])
    y1 = jnp.pad(y1.reshape(n, 7, 7, 16), ((0, 0), (1, 1), (1, 1), (0, 0)))

    # conv3(k3,p1)+BN+ReLU+maxpool2x2+flatten+fc1+ReLU+fc2+ReLU+fc3 (one kernel)
    return conv3_mlp(_conv3_patches(y1),
                     packed["w3"], packed["b3"],
                     packed["fc1_w"], packed["fc1_b"],
                     packed["fc2_w"], packed["fc2_b"],
                     packed["fc3_w"], packed["fc3_b"])


def forward_reference(params, x):
    """Pure-JAX/XLA f32 reference used only for a sanity check."""
    dn = ("NCHW", "OIHW", "NCHW")
    y = jax.lax.conv_general_dilated(x, params["conv1_w"], (2, 2),
                                     ((1, 1), (1, 1)), dimension_numbers=dn)
    y = jax.nn.relu(y + params["conv1_b"][None, :, None, None])
    y = jax.lax.reduce_window(y, -jnp.inf, jax.lax.max, (1, 1, 2, 2), (1, 1, 2, 2), "VALID")
    y = jax.lax.conv_general_dilated(y, params["conv3_w"], (1, 1),
                                     ((1, 1), (1, 1)), dimension_numbers=dn)
    y = y + params["conv3_b"][None, :, None, None]
    eps = 1e-5
    scale = params["bn_gamma"] / jnp.sqrt(params["bn_var"] + eps)
    y = (y - params["bn_mean"][None, :, None, None]) * scale[None, :, None, None] \
        + params["bn_beta"][None, :, None, None]
    y = jax.nn.relu(y)
    y = jax.lax.reduce_window(y, -jnp.inf, jax.lax.max, (1, 1, 2, 2), (1, 1, 2, 2), "VALID")
    y = y.reshape(y.shape[0], -1)
    y = jax.nn.relu(y @ params["fc1_w"].T + params["fc1_b"])
    y = jax.nn.relu(y @ params["fc2_w"].T + params["fc2_b"])
    y = y @ params["fc3_w"].T + params["fc3_b"]
    return y


if __name__ == "__main__":
    key = jax.random.PRNGKey(0)
    pkey, xkey = jax.random.split(key)
    params = init_params(pkey)
    packed = jax.tree_util.tree_map(jax.block_until_ready, pack_params(params))

    # Input spatial size is fixed at 32x32 by fc1's in_features = 32*3*3.
    x = jax.random.normal(xkey, (2, 3, 32, 32), dtype=jnp.float32)

    out = jax.block_until_ready(forward(packed, x))
    assert out.shape == (2, 10)

    ref = jax.block_until_ready(forward_reference(params, x))
    assert jnp.allclose(out, ref, rtol=5e-2, atol=5e-2), \
        f"max abs diff = {jnp.max(jnp.abs(out - ref))}"

    print("KERNEL_OK")
</pallas_src>

<mosaic_0001>
module attributes {stable_mosaic.version = 11 : i64} {
  func.func @_conv1_pool_kernel(%arg0: i32, %arg1: memref<2x196x75xbf16, #tpu.memory_space<vmem>>, %arg2: memref<75x16xbf16, #tpu.memory_space<vmem>>, %arg3: memref<1x16xf32, #tpu.memory_space<vmem>>, %arg4: memref<2x49x16xbf16, #tpu.memory_space<vmem>>) attributes {dimension_semantics = [#tpu.dimension_semantics<parallel>], iteration_bounds = array<i64: 1>, scalar_prefetch = 0 : i64, scratch_operands = 0 : i64, tpu.core_type = #tpu.core_type<tc>, window_params = [{transform_indices = @transform_0, window_bounds = array<i64: 2, 196, 75>}, {pipeline_mode = #tpu.pipeline_mode<synchronous>, transform_indices = @transform_1, window_bounds = array<i64: 75, 16>}, {pipeline_mode = #tpu.pipeline_mode<synchronous>, transform_indices = @transform_2, window_bounds = array<i64: 1, 16>}, {transform_indices = @transform_3, window_bounds = array<i64: 2, 49, 16>}]} {
    %c0 = arith.constant 0 : index
    %c0_0 = arith.constant 0 : index
    %c0_1 = arith.constant 0 : index
    %0 = vector.load %arg1[%c0, %c0_0, %c0_1] : memref<2x196x75xbf16, #tpu.memory_space<vmem>>, vector<2x196x75xbf16>
    %1 = vector.shape_cast %0 : vector<2x196x75xbf16> to vector<392x75xbf16>
    %c0_2 = arith.constant 0 : index
    %c0_3 = arith.constant 0 : index
    %2 = vector.load %arg2[%c0_2, %c0_3] : memref<75x16xbf16, #tpu.memory_space<vmem>>, vector<75x16xbf16>
    %cst = arith.constant dense<0.000000e+00> : vector<392x16xf32>
    %3 = tpu.matmul %1, %2, %cst {dimension_numbers = #tpu.dot_dimension_numbers<[1], [0], [0], [1], [0, 0, 1, 1], [], []>} : vector<392x75xbf16>, vector<75x16xbf16>, vector<392x16xf32> -> vector<392x16xf32>
    %4 = vector.shape_cast %3 : vector<392x16xf32> to vector<2x4x49x16xf32>
    %5 = vector.extract_strided_slice %4 {offsets = [0, 0, 0, 0], sizes = [2, 1, 49, 16], strides = [1, 1, 1, 1]} : vector<2x4x49x16xf32> to vector<2x1x49x16xf32>
    %6 = vector.shape_cast %5 : vector<2x1x49x16xf32> to vector<2x49x16xf32>
    %7 = vector.extract_strided_slice %4 {offsets = [0, 1, 0, 0], sizes = [2, 1, 49, 16], strides = [1, 1, 1, 1]} : vector<2x4x49x16xf32> to vector<2x1x49x16xf32>
    %8 = vector.shape_cast %7 : vector<2x1x49x16xf32> to vector<2x49x16xf32>
    %9 = arith.maximumf %6, %8 : vector<2x49x16xf32>
    %10 = vector.extract_strided_slice %4 {offsets = [0, 2, 0, 0], sizes = [2, 1, 49, 16], strides = [1, 1, 1, 1]} : vector<2x4x49x16xf32> to vector<2x1x49x16xf32>
    %11 = vector.shape_cast %10 : vector<2x1x49x16xf32> to vector<2x49x16xf32>
    %12 = vector.extract_strided_slice %4 {offsets = [0, 3, 0, 0], sizes = [2, 1, 49, 16], strides = [1, 1, 1, 1]} : vector<2x4x49x16xf32> to vector<2x1x49x16xf32>
    %13 = vector.shape_cast %12 : vector<2x1x49x16xf32> to vector<2x49x16xf32>
    %14 = arith.maximumf %11, %13 : vector<2x49x16xf32>
    %15 = arith.maximumf %9, %14 : vector<2x49x16xf32>
    %c0_4 = arith.constant 0 : index
    %c0_5 = arith.constant 0 : index
    %16 = vector.load %arg3[%c0_4, %c0_5] : memref<1x16xf32, #tpu.memory_space<vmem>>, vector<1x16xf32>
    %17 = vector.shape_cast %16 : vector<1x16xf32> to vector<1x1x16xf32>
    %18 = vector.broadcast %17 : vector<1x1x16xf32> to vector<2x49x16xf32>
    %19 = arith.addf %15, %18 : vector<2x49x16xf32>
    %cst_6 = arith.constant 0.000000e+00 : f32
    %20 = vector.broadcast %cst_6 : f32 to vector<2x49x16xf32>
    %21 = arith.maximumf %19, %20 : vector<2x49x16xf32>
    %22 = arith.truncf %21 : vector<2x49x16xf32> to vector<2x49x16xbf16>
    %c0_7 = arith.constant 0 : index
    %c0_8 = arith.constant 0 : index
    %c0_9 = arith.constant 0 : index
    %23 = vector.load %arg4[%c0_7, %c0_8, %c0_9] : memref<2x49x16xbf16, #tpu.memory_space<vmem>>, vector<2x49x16xbf16>
    tpu.vector_store %arg4[%c0_7, %c0_8, %c0_9], %22 {strides = array<i32>} : memref<2x49x16xbf16, #tpu.memory_space<vmem>>, vector<2x49x16xbf16>,
    return
  }
  func.func @transform_0(%arg0: i32) -> (i32, i32, i32) {
    %c0_i32 = arith.constant 0 : i32
    %c0_i32_0 = arith.constant 0 : i32
    %c0_i32_1 = arith.constant 0 : i32
    return %arg0, %c0_i32, %c0_i32_0 : i32, i32, i32
  }
  func.func @transform_1(%arg0: i32) -> (i32, i32) {
    %c0_i32 = arith.constant 0 : i32
    %c0_i32_0 = arith.constant 0 : i32
    %c0_i32_1 = arith.constant 0 : i32
    return %c0_i32, %c0_i32_0 : i32, i32
  }
  func.func @transform_2(%arg0: i32) -> (i32, i32) {
    %c0_i32 = arith.constant 0 : i32
    %c0_i32_0 = arith.constant 0 : i32
    %c0_i32_1 = arith.constant 0 : i32
    return %c0_i32, %c0_i32_0 : i32, i32
  }
  func.func @transform_3(%arg0: i32) -> (i32, i32, i32) {
    %c0_i32 = arith.constant 0 : i32
    %c0_i32_0 = arith.constant 0 : i32
    %c0_i32_1 = arith.constant 0 : i32
    return %arg0, %c0_i32, %c0_i32_0 : i32, i32, i32
  }
}

module attributes {stable_mosaic.version = 11 : i64} {
  func.func @_conv3_mlp_kernel(%arg0: i32, %arg1: memref<2x36x144xbf16, #tpu.memory_space<vmem>>, %arg2: memref<144x32xbf16, #tpu.memory_space<vmem>>, %arg3: memref<1x32xf32, #tpu.memory_space<vmem>>, %arg4: memref<9x32x500xbf16, #tpu.memory_space<vmem>>, %arg5: memref<1x500xf32, #tpu.memory_space<vmem>>, %arg6: memref<500x50xbf16, #tpu.memory_space<vmem>>, %arg7: memref<1x50xf32, #tpu.memory_space<vmem>>, %arg8: memref<50x10xbf16, #tpu.memory_space<vmem>>, %arg9: memref<1x10xf32, #tpu.memory_space<vmem>>, %arg10: memref<2x10xf32, #tpu.memory_space<vmem>>) attributes {dimension_semantics = [#tpu.dimension_semantics<parallel>], iteration_bounds = array<i64: 1>, scalar_prefetch = 0 : i64, scratch_operands = 0 : i64, tpu.core_type = #tpu.core_type<tc>, window_params = [{transform_indices = @transform_0, window_bounds = array<i64: 2, 36, 144>}, {pipeline_mode = #tpu.pipeline_mode<synchronous>, transform_indices = @transform_1, window_bounds = array<i64: 144, 32>}, {pipeline_mode = #tpu.pipeline_mode<synchronous>, transform_indices = @transform_2, window_bounds = array<i64: 1, 32>}, {pipeline_mode = #tpu.pipeline_mode<synchronous>, transform_indices = @transform_3, window_bounds = array<i64: 9, 32, 500>}, {pipeline_mode = #tpu.pipeline_mode<synchronous>, transform_indices = @transform_4, window_bounds = array<i64: 1, 500>}, {pipeline_mode = #tpu.pipeline_mode<synchronous>, transform_indices = @transform_5, window_bounds = array<i64: 500, 50>}, {pipeline_mode = #tpu.pipeline_mode<synchronous>, transform_indices = @transform_6, window_bounds = array<i64: 1, 50>}, {pipeline_mode = #tpu.pipeline_mode<synchronous>, transform_indices = @transform_7, window_bounds = array<i64: 50, 10>}, {pipeline_mode = #tpu.pipeline_mode<synchronous>, transform_indices = @transform_8, window_bounds = array<i64: 1, 10>}, {transform_indices = @transform_9, window_bounds = array<i64: 2, 10>}]} {
    %c0 = arith.constant 0 : index
    %c0_0 = arith.constant 0 : index
    %c0_1 = arith.constant 0 : index
    %0 = vector.load %arg1[%c0, %c0_0, %c0_1] : memref<2x36x144xbf16, #tpu.memory_space<vmem>>, vector<2x36x144xbf16>
    %1 = vector.shape_cast %0 : vector<2x36x144xbf16> to vector<72x144xbf16>
    %c0_2 = arith.constant 0 : index
    %c0_3 = arith.constant 0 : index
    %2 = vector.load %arg2[%c0_2, %c0_3] : memref<144x32xbf16, #tpu.memory_space<vmem>>, vector<144x32xbf16>
    %cst = arith.constant dense<0.000000e+00> : vector<72x32xf32>
    %3 = tpu.matmul %1, %2, %cst {dimension_numbers = #tpu.dot_dimension_numbers<[1], [0], [0], [1], [0, 0, 1, 1], [], []>} : vector<72x144xbf16>, vector<144x32xbf16>, vector<72x32xf32> -> vector<72x32xf32>
    %4 = vector.shape_cast %3 : vector<72x32xf32> to vector<2x4x9x32xf32>
    %5 = vector.extract_strided_slice %4 {offsets = [0, 0, 0, 0], sizes = [2, 1, 9, 32], strides = [1, 1, 1, 1]} : vector<2x4x9x32xf32> to vector<2x1x9x32xf32>
    %6 = vector.shape_cast %5 : vector<2x1x9x32xf32> to vector<2x9x32xf32>
    %7 = vector.extract_strided_slice %4 {offsets = [0, 1, 0, 0], sizes = [2, 1, 9, 32], strides = [1, 1, 1, 1]} : vector<2x4x9x32xf32> to vector<2x1x9x32xf32>
    %8 = vector.shape_cast %7 : vector<2x1x9x32xf32> to vector<2x9x32xf32>
    %9 = arith.maximumf %6, %8 : vector<2x9x32xf32>
    %10 = vector.extract_strided_slice %4 {offsets = [0, 2, 0, 0], sizes = [2, 1, 9, 32], strides = [1, 1, 1, 1]} : vector<2x4x9x32xf32> to vector<2x1x9x32xf32>
    %11 = vector.shape_cast %10 : vector<2x1x9x32xf32> to vector<2x9x32xf32>
    %12 = vector.extract_strided_slice %4 {offsets = [0, 3, 0, 0], sizes = [2, 1, 9, 32], strides = [1, 1, 1, 1]} : vector<2x4x9x32xf32> to vector<2x1x9x32xf32>
    %13 = vector.shape_cast %12 : vector<2x1x9x32xf32> to vector<2x9x32xf32>
    %14 = arith.maximumf %11, %13 : vector<2x9x32xf32>
    %15 = arith.maximumf %9, %14 : vector<2x9x32xf32>
    %c0_4 = arith.constant 0 : index
    %c0_5 = arith.constant 0 : index
    %16 = vector.load %arg3[%c0_4, %c0_5] : memref<1x32xf32, #tpu.memory_space<vmem>>, vector<1x32xf32>
    %17 = vector.shape_cast %16 : vector<1x32xf32> to vector<1x1x32xf32>
    %18 = vector.broadcast %17 : vector<1x1x32xf32> to vector<2x9x32xf32>
    %19 = arith.addf %15, %18 : vector<2x9x32xf32>
    %cst_6 = arith.constant 0.000000e+00 : f32
    %20 = vector.broadcast %cst_6 : f32 to vector<2x9x32xf32>
    %21 = arith.maximumf %19, %20 : vector<2x9x32xf32>
    %22 = arith.truncf %21 : vector<2x9x32xf32> to vector<2x9x32xbf16>
    %23 = vector.extract_strided_slice %22 {offsets = [0, 0, 0], sizes = [2, 1, 32], strides = [1, 1, 1]} : vector<2x9x32xbf16> to vector<2x1x32xbf16>
    %24 = vector.shape_cast %23 : vector<2x1x32xbf16> to vector<2x32xbf16>
    %c0_7 = arith.constant 0 : index
    %c0_8 = arith.constant 0 : index
    %c0_9 = arith.constant 0 : index
    %25 = vector.load %arg4[%c0_7, %c0_8, %c0_9] : memref<9x32x500xbf16, #tpu.memory_space<vmem>>, vector<1x32x500xbf16>
    %26 = vector.shape_cast %25 : vector<1x32x500xbf16> to vector<32x500xbf16>
    %cst_10 = arith.constant dense<0.000000e+00> : vector<2x500xf32>
    %27 = tpu.matmul %24, %26, %cst_10 {dimension_numbers = #tpu.dot_dimension_numbers<[1], [0], [0], [1], [0, 0, 1, 1], [], []>} : vector<2x32xbf16>, vector<32x500xbf16>, vector<2x500xf32> -> vector<2x500xf32>
    %28 = vector.extract_strided_slice %22 {offsets = [0, 1, 0], sizes = [2, 1, 32], strides = [1, 1, 1]} : vector<2x9x32xbf16> to vector<2x1x32xbf16>
    %29 = vector.shape_cast %28 : vector<2x1x32xbf16> to vector<2x32xbf16>
    %c1 = arith.constant 1 : index
    %c0_11 = arith.constant 0 : index
    %c0_12 = arith.constant 0 : index
    %30 = vector.load %arg4[%c1, %c0_11, %c0_12] : memref<9x32x500xbf16, #tpu.memory_space<vmem>>, vector<1x32x500xbf16>
    %31 = vector.shape_cast %30 : vector<1x32x500xbf16> to vector<32x500xbf16>
    %cst_13 = arith.constant dense<0.000000e+00> : vector<2x500xf32>
    %32 = tpu.matmul %29, %31, %cst_13 {dimension_numbers = #tpu.dot_dimension_numbers<[1], [0], [0], [1], [0, 0, 1, 1], [], []>} : vector<2x32xbf16>, vector<32x500xbf16>, vector<2x500xf32> -> vector<2x500xf32>
    %33 = arith.addf %27, %32 : vector<2x500xf32>
    %34 = vector.extract_strided_slice %22 {offsets = [0, 2, 0], sizes = [2, 1, 32], strides = [1, 1, 1]} : vector<2x9x32xbf16> to vector<2x1x32xbf16>
    %35 = vector.shape_cast %34 : vector<2x1x32xbf16> to vector<2x32xbf16>
    %c2 = arith.constant 2 : index
    %c0_14 = arith.constant 0 : index
    %c0_15 = arith.constant 0 : index
    %36 = vector.load %arg4[%c2, %c0_14, %c0_15] : memref<9x32x500xbf16, #tpu.memory_space<vmem>>, vector<1x32x500xbf16>
    %37 = vector.shape_cast %36 : vector<1x32x500xbf16> to vector<32x500xbf16>
    %cst_16 = arith.constant dense<0.000000e+00> : vector<2x500xf32>
    %38 = tpu.matmul %35, %37, %cst_16 {dimension_numbers = #tpu.dot_dimension_numbers<[1], [0], [0], [1], [0, 0, 1, 1], [], []>} : vector<2x32xbf16>, vector<32x500xbf16>, vector<2x500xf32> -> vector<2x500xf32>
    %39 = arith.addf %33, %38 : vector<2x500xf32>
    %40 = vector.extract_strided_slice %22 {offsets = [0, 3, 0], sizes = [2, 1, 32], strides = [1, 1, 1]} : vector<2x9x32xbf16> to vector<2x1x32xbf16>
    %41 = vector.shape_cast %40 : vector<2x1x32xbf16> to vector<2x32xbf16>
    %c3 = arith.constant 3 : index
    %c0_17 = arith.constant 0 : index
    %c0_18 = arith.constant 0 : index
    %42 = vector.load %arg4[%c3, %c0_17, %c0_18] : memref<9x32x500xbf16, #tpu.memory_space<vmem>>, vector<1x32x500xbf16>
    %43 = vector.shape_cast %42 : vector<1x32x500xbf16> to vector<32x500xbf16>
    %cst_19 = arith.constant dense<0.000000e+00> : vector<2x500xf32>
    %44 = tpu.matmul %41, %43, %cst_19 {dimension_numbers = #tpu.dot_dimension_numbers<[1], [0], [0], [1], [0, 0, 1, 1], [], []>} : vector<2x32xbf16>, vector<32x500xbf16>, vector<2x500xf32> -> vector<2x500xf32>
    %45 = arith.addf %39, %44 : vector<2x500xf32>
    %46 = vector.extract_strided_slice %22 {offsets = [0, 4, 0], sizes = [2, 1, 32], strides = [1, 1, 1]} : vector<2x9x32xbf16> to vector<2x1x32xbf16>
    %47 = vector.shape_cast %46 : vector<2x1x32xbf16> to vector<2x32xbf16>
    %c4 = arith.constant 4 : index
    %c0_20 = arith.constant 0 : index
    %c0_21 = arith.constant 0 : index
    %48 = vector.load %arg4[%c4, %c0_20, %c0_21] : memref<9x32x500xbf16, #tpu.memory_space<vmem>>, vector<1x32x500xbf16>
    %49 = vector.shape_cast %48 : vector<1x32x500xbf16> to vector<32x500xbf16>
    %cst_22 = arith.constant dense<0.000000e+00> : vector<2x500xf32>
    %50 = tpu.matmul %47, %49, %cst_22 {dimension_numbers = #tpu.dot_dimension_numbers<[1], [0], [0], [1], [0, 0, 1, 1], [], []>} : vector<2x32xbf16>, vector<32x500xbf16>, vector<2x500xf32> -> vector<2x500xf32>
    %51 = arith.addf %45, %50 : vector<2x500xf32>
    %52 = vector.extract_strided_slice %22 {offsets = [0, 5, 0], sizes = [2, 1, 32], strides = [1, 1, 1]} : vector<2x9x32xbf16> to vector<2x1x32xbf16>
    %53 = vector.shape_cast %52 : vector<2x1x32xbf16> to vector<2x32xbf16>
    %c5 = arith.constant 5 : index
    %c0_23 = arith.constant 0 : index
    %c0_24 = arith.constant 0 : index
    %54 = vector.load %arg4[%c5, %c0_23, %c0_24] : memref<9x32x500xbf16, #tpu.memory_space<vmem>>, vector<1x32x500xbf16>
    %55 = vector.shape_cast %54 : vector<1x32x500xbf16> to vector<32x500xbf16>
    %cst_25 = arith.constant dense<0.000000e+00> : vector<2x500xf32>
    %56 = tpu.matmul %53, %55, %cst_25 {dimension_numbers = #tpu.dot_dimension_numbers<[1], [0], [0], [1], [0, 0, 1, 1], [], []>} : vector<2x32xbf16>, vector<32x500xbf16>, vector<2x500xf32> -> vector<2x500xf32>
    %57 = arith.addf %51, %56 : vector<2x500xf32>
    %58 = vector.extract_strided_slice %22 {offsets = [0, 6, 0], sizes = [2, 1, 32], strides = [1, 1, 1]} : vector<2x9x32xbf16> to vector<2x1x32xbf16>
    %59 = vector.shape_cast %58 : vector<2x1x32xbf16> to vector<2x32xbf16>
    %c6 = arith.constant 6 : index
    %c0_26 = arith.constant 0 : index
    %c0_27 = arith.constant 0 : index
    %60 = vector.load %arg4[%c6, %c0_26, %c0_27] : memref<9x32x500xbf16, #tpu.memory_space<vmem>>, vector<1x32x500xbf16>
    %61 = vector.shape_cast %60 : vector<1x32x500xbf16> to vector<32x500xbf16>
    %cst_28 = arith.constant dense<0.000000e+00> : vector<2x500xf32>
    %62 = tpu.matmul %59, %61, %cst_28 {dimension_numbers = #tpu.dot_dimension_numbers<[1], [0], [0], [1], [0, 0, 1, 1], [], []>} : vector<2x32xbf16>, vector<32x500xbf16>, vector<2x500xf32> -> vector<2x500xf32>
    %63 = arith.addf %57, %62 : vector<2x500xf32>
    %64 = vector.extract_strided_slice %22 {offsets = [0, 7, 0], sizes = [2, 1, 32], strides = [1, 1, 1]} : vector<2x9x32xbf16> to vector<2x1x32xbf16>
    %65 = vector.shape_cast %64 : vector<2x1x32xbf16> to vector<2x32xbf16>
    %c7 = arith.constant 7 : index
    %c0_29 = arith.constant 0 : index
    %c0_30 = arith.constant 0 : index
    %66 = vector.load %arg4[%c7, %c0_29, %c0_30] : memref<9x32x500xbf16, #tpu.memory_space<vmem>>, vector<1x32x500xbf16>
    %67 = vector.shape_cast %66 : vector<1x32x500xbf16> to vector<32x500xbf16>
    %cst_31 = arith.constant dense<0.000000e+00> : vector<2x500xf32>
    %68 = tpu.matmul %65, %67, %cst_31 {dimension_numbers = #tpu.dot_dimension_numbers<[1], [0], [0], [1], [0, 0, 1, 1], [], []>} : vector<2x32xbf16>, vector<32x500xbf16>, vector<2x500xf32> -> vector<2x500xf32>
    %69 = arith.addf %63, %68 : vector<2x500xf32>
    %70 = vector.extract_strided_slice %22 {offsets = [0, 8, 0], sizes = [2, 1, 32], strides = [1, 1, 1]} : vector<2x9x32xbf16> to vector<2x1x32xbf16>
    %71 = vector.shape_cast %70 : vector<2x1x32xbf16> to vector<2x32xbf16>
    %c8 = arith.constant 8 : index
    %c0_32 = arith.constant 0 : index
    %c0_33 = arith.constant 0 : index
    %72 = vector.load %arg4[%c8, %c0_32, %c0_33] : memref<9x32x500xbf16, #tpu.memory_space<vmem>>, vector<1x32x500xbf16>
    %73 = vector.shape_cast %72 : vector<1x32x500xbf16> to vector<32x500xbf16>
    %cst_34 = arith.constant dense<0.000000e+00> : vector<2x500xf32>
    %74 = tpu.matmul %71, %73, %cst_34 {dimension_numbers = #tpu.dot_dimension_numbers<[1], [0], [0], [1], [0, 0, 1, 1], [], []>} : vector<2x32xbf16>, vector<32x500xbf16>, vector<2x500xf32> -> vector<2x500xf32>
    %75 = arith.addf %69, %74 : vector<2x500xf32>
    %c0_35 = arith.constant 0 : index
    %c0_36 = arith.constant 0 : index
    %76 = vector.load %arg5[%c0_35, %c0_36] : memref<1x500xf32, #tpu.memory_space<vmem>>, vector<1x500xf32>
    %77 = vector.broadcast %76 : vector<1x500xf32> to vector<2x500xf32>
    %78 = arith.addf %75, %77 : vector<2x500xf32>
    %cst_37 = arith.constant 0.000000e+00 : f32
    %79 = vector.broadcast %cst_37 : f32 to vector<2x500xf32>
    %80 = arith.maximumf %78, %79 : vector<2x500xf32>
    %81 = arith.truncf %80 : vector<2x500xf32> to vector<2x500xbf16>
    %c0_38 = arith.constant 0 : index
    %c0_39 = arith.constant 0 : index
    %82 = vector.load %arg6[%c0_38, %c0_39] : memref<500x50xbf16, #tpu.memory_space<vmem>>, vector<500x50xbf16>
    %cst_40 = arith.constant dense<0.000000e+00> : vector<2x50xf32>
    %83 = tpu.matmul %81, %82, %cst_40 {dimension_numbers = #tpu.dot_dimension_numbers<[1], [0], [0], [1], [0, 0, 1, 1], [], []>} : vector<2x500xbf16>, vector<500x50xbf16>, vector<2x50xf32> -> vector<2x50xf32>
    %c0_41 = arith.constant 0 : index
    %c0_42 = arith.constant 0 : index
    %84 = vector.load %arg7[%c0_41, %c0_42] : memref<1x50xf32, #tpu.memory_space<vmem>>, vector<1x50xf32>
    %85 = vector.broadcast %84 : vector<1x50xf32> to vector<2x50xf32>
    %86 = arith.addf %83, %85 : vector<2x50xf32>
    %cst_43 = arith.constant 0.000000e+00 : f32
    %87 = vector.broadcast %cst_43 : f32 to vector<2x50xf32>
    %88 = arith.maximumf %86, %87 : vector<2x50xf32>
    %89 = arith.truncf %88 : vector<2x50xf32> to vector<2x50xbf16>
    %c0_44 = arith.constant 0 : index
    %c0_45 = arith.constant 0 : index
    %90 = vector.load %arg8[%c0_44, %c0_45] : memref<50x10xbf16, #tpu.memory_space<vmem>>, vector<50x10xbf16>
    %cst_46 = arith.constant dense<0.000000e+00> : vector<2x10xf32>
    %91 = tpu.matmul %89, %90, %cst_46 {dimension_numbers = #tpu.dot_dimension_numbers<[1], [0], [0], [1], [0, 0, 1, 1], [], []>} : vector<2x50xbf16>, vector<50x10xbf16>, vector<2x10xf32> -> vector<2x10xf32>
    %c0_47 = arith.constant 0 : index
    %c0_48 = arith.constant 0 : index
    %92 = vector.load %arg9[%c0_47, %c0_48] : memref<1x10xf32, #tpu.memory_space<vmem>>, vector<1x10xf32>
    %93 = vector.broadcast %92 : vector<1x10xf32> to vector<2x10xf32>
    %94 = arith.addf %91, %93 : vector<2x10xf32>
    %c0_49 = arith.constant 0 : index
    %c0_50 = arith.constant 0 : index
    %95 = vector.load %arg10[%c0_49, %c0_50] : memref<2x10xf32, #tpu.memory_space<vmem>>, vector<2x10xf32>
    tpu.vector_store %arg10[%c0_49, %c0_50], %94 {strides = array<i32>} : memref<2x10xf32, #tpu.memory_space<vmem>>, vector<2x10xf32>,
    return
  }
  func.func @transform_0(%arg0: i32) -> (i32, i32, i32) {
    %c0_i32 = arith.constant 0 : i32
    %c0_i32_0 = arith.constant 0 : i32
    %c0_i32_1 = arith.constant 0 : i32
    return %arg0, %c0_i32, %c0_i32_0 : i32, i32, i32
  }
  func.func @transform_1(%arg0: i32) -> (i32, i32) {
    %c0_i32 = arith.constant 0 : i32
    %c0_i32_0 = arith.constant 0 : i32
    %c0_i32_1 = arith.constant 0 : i32
    return %c0_i32, %c0_i32_0 : i32, i32
  }
  func.func @transform_2(%arg0: i32) -> (i32, i32) {
    %c0_i32 = arith.constant 0 : i32
    %c0_i32_0 = arith.constant 0 : i32
    %c0_i32_1 = arith.constant 0 : i32
    return %c0_i32, %c0_i32_0 : i32, i32
  }
  func.func @transform_3(%arg0: i32) -> (i32, i32, i32) {
    %c0_i32 = arith.constant 0 : i32
    %c0_i32_0 = arith.constant 0 : i32
    %c0_i32_1 = arith.constant 0 : i32
    %c0_i32_2 = arith.constant 0 : i32
    return %c0_i32, %c0_i32_0, %c0_i32_1 : i32, i32, i32
  }
  func.func @transform_4(%arg0: i32) -> (i32, i32) {
    %c0_i32 = arith.constant 0 : i32
    %c0_i32_0 = arith.constant 0 : i32
    %c0_i32_1 = arith.constant 0 : i32
    return %c0_i32, %c0_i32_0 : i32, i32
  }
  func.func @transform_5(%arg0: i32) -> (i32, i32) {
    %c0_i32 = arith.constant 0 : i32
    %c0_i32_0 = arith.constant 0 : i32
    %c0_i32_1 = arith.constant 0 : i32
    return %c0_i32, %c0_i32_0 : i32, i32
  }
  func.func @transform_6(%arg0: i32) -> (i32, i32) {
    %c0_i32 = arith.constant 0 : i32
    %c0_i32_0 = arith.constant 0 : i32
    %c0_i32_1 = arith.constant 0 : i32
    return %c0_i32, %c0_i32_0 : i32, i32
  }
  func.func @transform_7(%arg0: i32) -> (i32, i32) {
    %c0_i32 = arith.constant 0 : i32
    %c0_i32_0 = arith.constant 0 : i32
    %c0_i32_1 = arith.constant 0 : i32
    return %c0_i32, %c0_i32_0 : i32, i32
  }
  func.func @transform_8(%arg0: i32) -> (i32, i32) {
    %c0_i32 = arith.constant 0 : i32
    %c0_i32_0 = arith.constant 0 : i32
    %c0_i32_1 = arith.constant 0 : i32
    return %c0_i32, %c0_i32_0 : i32, i32
  }
  func.func @transform_9(%arg0: i32) -> (i32, i32) {
    %c0_i32 = arith.constant 0 : i32
    %c0_i32_0 = arith.constant 0 : i32
    return %arg0, %c0_i32 : i32, i32
  }
}

</mosaic_0001>

<llo_original>
// kernel: forward.2
$region0: #{forward.2}
  #allocation0 [shape = 'u32[]', space=smem, size = 0x4, offset = 0x4, fixed_abs, tag = 'smem constant byte address 0x4 - core index']
  #allocation1 [shape = 'u32[72,128]{1,0:T(1,128)}', space=vmem, size = 0x9000, scoped, tag = 'internal scratch']
  %s0 = inlined_call_operand.vmem [shape: bf16[2,196,75], index: 0, kind: input, shape index: {}]
  %s1 = inlined_call_operand.vmem [shape: bf16[75,16], index: 1, kind: input, shape index: {}]
  %s2 = inlined_call_operand.vmem [shape: f32[1,16], index: 2, kind: input, shape index: {}]
  %s3 = inlined_call_operand.vmem [shape: bf16[2,49,16], index: 3, kind: output, shape index: {}]
  %s4 = sld [smem:[#allocation0]]
  $region22: #{forward.2} parent=0
    _
  %s6 = ssub.s32 1, %s4
  %s7 = scalar_select 0, %s6, %s4
  // Predicated region
  $region2: #{forward.2} parent=0 // pred_check
    _
  $region3: #{forward.2} parent=0 // pred_check_branch
    %9 = sbr.rel (0) target = $region5
  $region4: #{forward.2} parent=0 // pred_region
    _
  $region5: #{forward.2} parent=0 // pred_fallthru
    _
  // Predicated region
  $region6: #{forward.2} parent=0 // pred_check
    _
  $region7: #{forward.2} parent=0 // pred_check_branch
    %11 = sbr.rel (0) target = $region9
  $region8: #{forward.2} parent=0 // pred_region
    _
  $region9: #{forward.2} parent=0 // pred_fallthru
    _
  // Predicated region
  $region10: #{forward.2} parent=0 // pred_check
    _
  $region11: #{forward.2} parent=0 // pred_check_branch
    %13 = sbr.rel (0) target = $region13
  $region12: #{forward.2} parent=0 // pred_region
    _
  $region13: #{forward.2} parent=0 // pred_fallthru
    _
  %v15 = vld [vmem:[%s0] sm:$0xf]
  %v16 = vld [vmem:[%s0 + $0x4] sm:$0xf]
  %v17 = vld [vmem:[%s0 + $0x8] sm:$0xf]
  %v18 = vld [vmem:[%s0 + $0xc] sm:$0xf]
  %v19 = vld [vmem:[%s0 + $0x10] sm:$0xf]
  %v20 = vld [vmem:[%s0 + $0x14] sm:$0xf]
  %v21 = vld [vmem:[%s0 + $0x18] sm:$0xf]
  %v22 = vld [vmem:[%s0 + $0x1c] sm:$0xf]
  %v23 = vld [vmem:[%s0 + $0x20] sm:$0xf]
  %v24 = vld [vmem:[%s0 + $0x24] sm:$0xf]
  %v25 = vld [vmem:[%s0 + $0x28] sm:$0xf]
  %v26 = vld [vmem:[%s0 + $0x2c] sm:$0xf]
  %v27 = vld [vmem:[%s0 + $0x30] sm:$0xf]
  %v28 = vld [vmem:[%s0 + $0x34] sm:$0xf]
  %v29 = vld [vmem:[%s0 + $0x38] sm:$0xf]
  %v30 = vld [vmem:[%s0 + $0x3c] sm:$0xf]
  %v31 = vld [vmem:[%s0 + $0x40] sm:$0xf]
  %v32 = vld [vmem:[%s0 + $0x44] sm:$0xf]
  %v33 = vld [vmem:[%s0 + $0x48] sm:$0xf]
  %v34 = vld [vmem:[%s0 + $0x4c] sm:$0xf]
  %v35 = vld [vmem:[%s0 + $0x50] sm:$0xf]
  %v36 = vld [vmem:[%s0 + $0x54] sm:$0xf]
  %v37 = vld [vmem:[%s0 + $0x58] sm:$0xf]
  %v38 = vld [vmem:[%s0 + $0x5c] sm:$0xf]
  %v39 = vld [vmem:[%s0 + $0x60] sm:$0x3]
  %v40 = vld [vmem:[%s0 + $0x64] sm:$0xf]
  %v41 = vld [vmem:[%s0 + $0x68] sm:$0xf]
  %v42 = vld [vmem:[%s0 + $0x6c] sm:$0xf]
  %v43 = vld [vmem:[%s0 + $0x70] sm:$0xf]
  %v44 = vld [vmem:[%s0 + $0x74] sm:$0xf]
  %v45 = vld [vmem:[%s0 + $0x78] sm:$0xf]
  %v46 = vld [vmem:[%s0 + $0x7c] sm:$0xf]
  %v47 = vld [vmem:[%s0 + $0x80] sm:$0xf]
  %v48 = vld [vmem:[%s0 + $0x84] sm:$0xf]
  %v49 = vld [vmem:[%s0 + $0x88] sm:$0xf]
  %v50 = vld [vmem:[%s0 + $0x8c] sm:$0xf]
  %v51 = vld [vmem:[%s0 + $0x90] sm:$0xf]
  %v52 = vld [vmem:[%s0 + $0x94] sm:$0xf]
  %v53 = vld [vmem:[%s0 + $0x98] sm:$0xf]
  %v54 = vld [vmem:[%s0 + $0x9c] sm:$0xf]
  %v55 = vld [vmem:[%s0 + $0xa0] sm:$0xf]
  %v56 = vld [vmem:[%s0 + $0xa4] sm:$0xf]
  %v57 = vld [vmem:[%s0 + $0xa8] sm:$0xf]
  %v58 = vld [vmem:[%s0 + $0xac] sm:$0xf]
  %v59 = vld [vmem:[%s0 + $0xb0] sm:$0xf]
  %v60 = vld [vmem:[%s0 + $0xb4] sm:$0xf]
  %v61 = vld [vmem:[%s0 + $0xb8] sm:$0xf]
  %v62 = vld [vmem:[%s0 + $0xbc] sm:$0xf]
  %v63 = vld [vmem:[%s0 + $0xc0] sm:$0xf]
  %v64 = vld [vmem:[%s0 + $0xc4] sm:$0x3]
  %v115 = vrot.slane %v15, 2
  %v116 = vrot.slane %v16, 2
  %v117 = vrot.slane %v17, 2
  %v118 = vrot.slane %v18, 2
  %v119 = vrot.slane %v19, 2
  %v120 = vrot.slane %v20, 2
  %v121 = vrot.slane %v21, 2
  %v122 = vrot.slane %v22, 2
  %v123 = vrot.slane %v23, 2
  %v124 = vrot.slane %v24, 2
  %v125 = vrot.slane %v25, 2
  %v126 = vrot.slane %v26, 2
  %v127 = vrot.slane %v27, 2
  %v128 = vrot.slane %v28, 2
  %v129 = vrot.slane %v29, 2
  %v130 = vrot.slane %v30, 2
  %v131 = vrot.slane %v31, 2
  %v132 = vrot.slane %v32, 2
  %v133 = vrot.slane %v33, 2
  %v134 = vrot.slane %v34, 2
  %v135 = vrot.slane %v35, 2
  %v136 = vrot.slane %v36, 2
  %v137 = vrot.slane %v37, 2
  %v138 = vrot.slane %v38, 2
  %v139 = vrot.slane %v39, 2
  %v140 = vrot.slane %v40, 2
  %v141 = vrot.slane %v41, 2
  %v142 = vrot.slane %v42, 2
  %v143 = vrot.slane %v43, 2
  %v144 = vrot.slane %v44, 2
  %v145 = vrot.slane %v45, 2
  %v146 = vrot.slane %v46, 2
  %v147 = vrot.slane %v47, 2
  %v148 = vrot.slane %v48, 2
  %v149 = vrot.slane %v49, 2
  %v150 = vrot.slane %v50, 2
  %v151 = vrot.slane %v51, 2
  %v152 = vrot.slane %v52, 2
  %v153 = vrot.slane %v53, 2
  %v154 = vrot.slane %v54, 2
  %v155 = vrot.slane %v55, 2
  %v156 = vrot.slane %v56, 2
  %v157 = vrot.slane %v57, 2
  %v158 = vrot.slane %v58, 2
  %v159 = vrot.slane %v59, 2
  %v160 = vrot.slane %v60, 2
  %v161 = vrot.slane %v61, 2
  %v162 = vrot.slane %v62, 2
  %v163 = vrot.slane %v63, 2
  %v164 = vrot.slane %v64, 2
  %vm165 = vcmask 1041408
  %v168 = vsel %vm165, %v15, %v115
  %vm169 = vcmask 1043458
  %v170 = vsel %vm169, %v15, %v115
  %v172 = vrot.slane %v170, 2
  %v175 = vsel %vm165, %v16, %v116
  %v176 = vsel %vm169, %v16, %v116
  %v178 = vrot.slane %v176, 2
  %v181 = vsel %vm165, %v17, %v117
  %v182 = vsel %vm169, %v17, %v117
  %v184 = vrot.slane %v182, 2
  %v187 = vsel %vm165, %v18, %v118
  %v188 = vsel %vm169, %v18, %v118
  %v190 = vrot.slane %v188, 2
  %v193 = vsel %vm165, %v19, %v119
  %v194 = vsel %vm169, %v19, %v119
  %v196 = vrot.slane %v194, 2
  %v199 = vsel %vm165, %v20, %v120
  %v200 = vsel %vm169, %v20, %v120
  %v202 = vrot.slane %v200, 2
  %v205 = vsel %vm165, %v21, %v121
  %v206 = vsel %vm169, %v21, %v121
  %v208 = vrot.slane %v206, 2
  %v211 = vsel %vm165, %v22, %v122
  %v212 = vsel %vm169, %v22, %v122
  %v214 = vrot.slane %v212, 2
  %v217 = vsel %vm165, %v23, %v123
  %v218 = vsel %vm169, %v23, %v123
  %v220 = vrot.slane %v218, 2
  %v223 = vsel %vm165, %v24, %v124
  %v224 = vsel %vm169, %v24, %v124
  %v226 = vrot.slane %v224, 2
  %v229 = vsel %vm165, %v25, %v125
  %v230 = vsel %vm169, %v25, %v125
  %v232 = vrot.slane %v230, 2
  %v235 = vsel %vm165, %v26, %v126
  %v236 = vsel %vm169, %v26, %v126
  %v238 = vrot.slane %v236, 2
  %v241 = vsel %vm165, %v27, %v127
  %v242 = vsel %vm169, %v27, %v127
  %v244 = vrot.slane %v242, 2
  %v247 = vsel %vm165, %v28, %v128
  %v248 = vsel %vm169, %v28, %v128
  %v250 = vrot.slane %v248, 2
  %v253 = vsel %vm165, %v29, %v129
  %v254 = vsel %vm169, %v29, %v129
  %v256 = vrot.slane %v254, 2
  %v259 = vsel %vm165, %v30, %v130
  %v260 = vsel %vm169, %v30, %v130
  %v262 = vrot.slane %v260, 2
  %v265 = vsel %vm165, %v31, %v131
  %v266 = vsel %vm169, %v31, %v131
  %v268 = vrot.slane %v266, 2
  %v271 = vsel %vm165, %v32, %v132
  %v272 = vsel %vm169, %v32, %v132
  %v274 = vrot.slane %v272, 2
  %v277 = vsel %vm165, %v33, %v133
  %v278 = vsel %vm169, %v33, %v133
  %v280 = vrot.slane %v278, 2
  %v283 = vsel %vm165, %v34, %v134
  %v284 = vsel %vm169, %v34, %v134
  %v286 = vrot.slane %v284, 2
  %v289 = vsel %vm165, %v35, %v135
  %v290 = vsel %vm169, %v35, %v135
  %v292 = vrot.slane %v290, 2
  %v295 = vsel %vm165, %v36, %v136
  %v296 = vsel %vm169, %v36, %v136
  %v298 = vrot.slane %v296, 2
  %v301 = vsel %vm165, %v37, %v137
  %v302 = vsel %vm169, %v37, %v137
  %v304 = vrot.slane %v302, 2
  %v307 = vsel %vm165, %v38, %v138
  %v308 = vsel %vm169, %v38, %v138
  %v310 = vrot.slane %v308, 2
  %v313 = vsel %vm165, %v39, %v139
  %v316 = vsel %vm165, %v40, %v140
  %v317 = vsel %vm169, %v40, %v140
  %v319 = vrot.slane %v317, 2
  %v322 = vsel %vm165, %v41, %v141
  %v323 = vsel %vm169, %v41, %v141
  %v325 = vrot.slane %v323, 2
  %v328 = vsel %vm165, %v42, %v142
  %v329 = vsel %vm169, %v42, %v142
  %v331 = vrot.slane %v329, 2
  %v334 = vsel %vm165, %v43, %v143
  %v335 = vsel %vm169, %v43, %v143
  %v337 = vrot.slane %v335, 2
  %v340 = vsel %vm165, %v44, %v144
  %v341 = vsel %vm169, %v44, %v144
  %v343 = vrot.slane %v341, 2
  %v346 = vsel %vm165, %v45, %v145
  %v347 = vsel %vm169, %v45, %v145
  %v349 = vrot.slane %v347, 2
  %v352 = vsel %vm165, %v46, %v146
  %v353 = vsel %vm169, %v46, %v146
  %v355 = vrot.slane %v353, 2
  %v358 = vsel %vm165, %v47, %v147
  %v359 = vsel %vm169, %v47, %v147
  %v361 = vrot.slane %v359, 2
  %v364 = vsel %vm165, %v48, %v148
  %v365 = vsel %vm169, %v48, %v148
  %v367 = vrot.slane %v365, 2
  %v370 = vsel %vm165, %v49, %v149
  %v371 = vsel %vm169, %v49, %v149
  %v373 = vrot.slane %v371, 2
  %v376 = vsel %vm165, %v50, %v150
  %v377 = vsel %vm169, %v50, %v150
  %v379 = vrot.slane %v377, 2
  %v382 = vsel %vm165, %v51, %v151
  %v383 = vsel %vm169, %v51, %v151
  %v385 = vrot.slane %v383, 2
  %v388 = vsel %vm165, %v52, %v152
  %v389 = vsel %vm169, %v52, %v152
  %v391 = vrot.slane %v389, 2
  %v394 = vsel %vm165, %v53, %v153
  %v395 = vsel %vm169, %v53, %v153
  %v397 = vrot.slane %v395, 2
  %v400 = vsel %vm165, %v54, %v154
  %v401 = vsel %vm169, %v54, %v154
  %v403 = vrot.slane %v401, 2
  %v406 = vsel %vm165, %v55, %v155
  %v407 = vsel %vm169, %v55, %v155
  %v409 = vrot.slane %v407, 2
  %v412 = vsel %vm165, %v56, %v156
  %v413 = vsel %vm169, %v56, %v156
  %v415 = vrot.slane %v413, 2
  %v418 = vsel %vm165, %v57, %v157
  %v419 = vsel %vm169, %v57, %v157
  %v421 = vrot.slane %v419, 2
  %v424 = vsel %vm165, %v58, %v158
  %v425 = vsel %vm169, %v58, %v158
  %v427 = vrot.slane %v425, 2
  %v430 = vsel %vm165, %v59, %v159
  %v431 = vsel %vm169, %v59, %v159
  %v433 = vrot.slane %v431, 2
  %v436 = vsel %vm165, %v60, %v160
  %v437 = vsel %vm169, %v60, %v160
  %v439 = vrot.slane %v437, 2
  %v442 = vsel %vm165, %v61, %v161
  %v443 = vsel %vm169, %v61, %v161
  %v445 = vrot.slane %v443, 2
  %v448 = vsel %vm165, %v62, %v162
  %v449 = vsel %vm169, %v62, %v162
  %v451 = vrot.slane %v449, 2
  %v454 = vsel %vm165, %v63, %v163
  %v455 = vsel %vm169, %v63, %v163
  %v457 = vrot.slane %v455, 2
  %v460 = vsel %vm165, %v64, %v164
  %v461 = vld [vmem:[%s1] sm:$0xf]
  %v462 = vld [vmem:[%s1 + $0x4] sm:$0xf]
  %v463 = vld [vmem:[%s1 + $0x8] sm:$0xf]
  %v464 = vld [vmem:[%s1 + $0xc] sm:$0xf]
  %v465 = vld [vmem:[%s1 + $0x10] sm:$0xf]
  %v466 = vld [vmem:[%s1 + $0x14] sm:$0xf]
  %v467 = vld [vmem:[%s1 + $0x18] sm:$0xf]
  %v468 = vld [vmem:[%s1 + $0x1c] sm:$0xf]
  %v469 = vld [vmem:[%s1 + $0x20] sm:$0xf]
  %v470 = vld [vmem:[%s1 + $0x24] sm:$0x3]
  %471 = vst [vmem:[#allocation1] ss:$4 sm:$0xff] %v168
  %s473 = scalar_lea.vmem [#allocation1], 1
  %474 = vst [vmem:[%s473] ss:$4 sm:$0xff] %v172
  %s475 = scalar_lea.vmem [#allocation1], 2
  %476 = vst [vmem:[%s475] ss:$4 sm:$0xff] %v175
  %s478 = scalar_lea.vmem [#allocation1], 3
  %479 = vst [vmem:[%s478] ss:$4 sm:$0xff] %v178
  %s480 = scalar_lea.vmem [#allocation1], 32
  %481 = vst [vmem:[%s480] ss:$4 sm:$0xff] %v181
  %s483 = scalar_lea.vmem [#allocation1], 33
  %484 = vst [vmem:[%s483] ss:$4 sm:$0xff] %v184
  %s485 = scalar_lea.vmem [#allocation1], 34
  %486 = vst [vmem:[%s485] ss:$4 sm:$0xff] %v187
  %s488 = scalar_lea.vmem [#allocation1], 35
  %489 = vst [vmem:[%s488] ss:$4 sm:$0xff] %v190
  %v490 = vld.sshfl [vmem:[#allocation1] sm:$0xff pattern:$0x73625140]
  %v491 = vld.sshfl [vmem:[#allocation1 + $0x20] sm:$0xff pattern:$0x73625140]
  %492 = vst [vmem:[#allocation1] ss:$4 sm:$0xff] %v193
  %494 = vst [vmem:[%s473] ss:$4 sm:$0xff] %v196
  %495 = vst [vmem:[%s475] ss:$4 sm:$0xff] %v199
  %497 = vst [vmem:[%s478] ss:$4 sm:$0xff] %v202
  %498 = vst [vmem:[%s480] ss:$4 sm:$0xff] %v205
  %500 = vst [vmem:[%s483] ss:$4 sm:$0xff] %v208
  %501 = vst [vmem:[%s485] ss:$4 sm:$0xff] %v211
  %503 = vst [vmem:[%s488] ss:$4 sm:$0xff] %v214
  %v504 = vld.sshfl [vmem:[#allocation1] sm:$0xff pattern:$0x73625140]
  %v505 = vld.sshfl [vmem:[#allocation1 + $0x20] sm:$0xff pattern:$0x73625140]
  %506 = vst [vmem:[#allocation1] ss:$4 sm:$0xff] %v217
  %508 = vst [vmem:[%s473] ss:$4 sm:$0xff] %v220
  %509 = vst [vmem:[%s475] ss:$4 sm:$0xff] %v223
  %511 = vst [vmem:[%s478] ss:$4 sm:$0xff] %v226
  %512 = vst [vmem:[%s480] ss:$4 sm:$0xff] %v229
  %514 = vst [vmem:[%s483] ss:$4 sm:$0xff] %v232
  %515 = vst [vmem:[%s485] ss:$4 sm:$0xff] %v235
  %517 = vst [vmem:[%s488] ss:$4 sm:$0xff] %v238
  %v518 = vld.sshfl [vmem:[#allocation1] sm:$0xff pattern:$0x73625140]
  %v519 = vld.sshfl [vmem:[#allocation1 + $0x20] sm:$0xff pattern:$0x73625140]
  %520 = vst [vmem:[#allocation1] ss:$4 sm:$0xff] %v241
  %522 = vst [vmem:[%s473] ss:$4 sm:$0xff] %v244
  %523 = vst [vmem:[%s475] ss:$4 sm:$0xff] %v247
  %525 = vst [vmem:[%s478] ss:$4 sm:$0xff] %v250
  %526 = vst [vmem:[%s480] ss:$4 sm:$0xff] %v253
  %528 = vst [vmem:[%s483] ss:$4 sm:$0xff] %v256
  %529 = vst [vmem:[%s485] ss:$4 sm:$0xff] %v259
  %531 = vst [vmem:[%s488] ss:$4 sm:$0xff] %v262
  %v532 = vld.sshfl [vmem:[#allocation1] sm:$0xff pattern:$0x73625140]
  %v533 = vld.sshfl [vmem:[#allocation1 + $0x20] sm:$0xff pattern:$0x73625140]
  %534 = vst [vmem:[#allocation1] ss:$4 sm:$0xff] %v265
  %536 = vst [vmem:[%s473] ss:$4 sm:$0xff] %v268
  %537 = vst [vmem:[%s475] ss:$4 sm:$0xff] %v271
  %539 = vst [vmem:[%s478] ss:$4 sm:$0xff] %v274
  %540 = vst [vmem:[%s480] ss:$4 sm:$0xff] %v277
  %542 = vst [vmem:[%s483] ss:$4 sm:$0xff] %v280
  %543 = vst [vmem:[%s485] ss:$4 sm:$0xff] %v283
  %545 = vst [vmem:[%s488] ss:$4 sm:$0xff] %v286
  %v546 = vld.sshfl [vmem:[#allocation1] sm:$0xff pattern:$0x73625140]
  %v547 = vld.sshfl [vmem:[#allocation1 + $0x20] sm:$0xff pattern:$0x73625140]
  %548 = vst [vmem:[#allocation1] ss:$4 sm:$0xff] %v289
  %550 = vst [vmem:[%s473] ss:$4 sm:$0xff] %v292
  %551 = vst [vmem:[%s475] ss:$4 sm:$0xff] %v295
  %553 = vst [vmem:[%s478] ss:$4 sm:$0xff] %v298
  %554 = vst [vmem:[%s480] ss:$4 sm:$0xff] %v301
  %556 = vst [vmem:[%s483] ss:$4 sm:$0xff] %v304
  %557 = vst [vmem:[%s485] ss:$4 sm:$0xff] %v307
  %559 = vst [vmem:[%s488] ss:$4 sm:$0xff] %v310
  %v560 = vld.sshfl [vmem:[#allocation1] sm:$0xff pattern:$0x73625140]
  %v561 = vld.sshfl [vmem:[#allocation1 + $0x20] sm:$0xff pattern:$0x73625140]
  %562 = vst [vmem:[#allocation1] ss:$4 sm:$0xff] %v313
  %563 = vst [vmem:[%s473] ss:$4 sm:$0xff] %v316
  %565 = vst [vmem:[%s475] ss:$4 sm:$0xff] %v319
  %566 = vst [vmem:[%s478] ss:$4 sm:$0xff] %v322
  %568 = vst [vmem:[%s480] ss:$4 sm:$0xff] %v325
  %569 = vst [vmem:[%s483] ss:$4 sm:$0xff] %v328
  %571 = vst [vmem:[%s485] ss:$4 sm:$0xff] %v331
  %572 = vst [vmem:[%s488] ss:$4 sm:$0xff] %v334
  %v573 = vld.sshfl [vmem:[#allocation1] sm:$0xff pattern:$0x73625140]
  %v574 = vld.sshfl [vmem:[#allocation1 + $0x20] sm:$0xff pattern:$0x73625140]
  %576 = vst [vmem:[#allocation1] ss:$4 sm:$0xff] %v337
  %577 = vst [vmem:[%s473] ss:$4 sm:$0xff] %v340
  %579 = vst [vmem:[%s475] ss:$4 sm:$0xff] %v343
  %580 = vst [vmem:[%s478] ss:$4 sm:$0xff] %v346
  %582 = vst [vmem:[%s480] ss:$4 sm:$0xff] %v349
  %583 = vst [vmem:[%s483] ss:$4 sm:$0xff] %v352
  %585 = vst [vmem:[%s485] ss:$4 sm:$0xff] %v355
  %586 = vst [vmem:[%s488] ss:$4 sm:$0xff] %v358
  %v587 = vld.sshfl [vmem:[#allocation1] sm:$0xff pattern:$0x73625140]
  %v588 = vld.sshfl [vmem:[#allocation1 + $0x20] sm:$0xff pattern:$0x73625140]
  %590 = vst [vmem:[#allocation1] ss:$4 sm:$0xff] %v361
  %591 = vst [vmem:[%s473] ss:$4 sm:$0xff] %v364
  %593 = vst [vmem:[%s475] ss:$4 sm:$0xff] %v367
  %594 = vst [vmem:[%s478] ss:$4 sm:$0xff] %v370
  %596 = vst [vmem:[%s480] ss:$4 sm:$0xff] %v373
  %597 = vst [vmem:[%s483] ss:$4 sm:$0xff] %v376
  %599 = vst [vmem:[%s485] ss:$4 sm:$0xff] %v379
  %600 = vst [vmem:[%s488] ss:$4 sm:$0xff] %v382
  %v601 = vld.sshfl [vmem:[#allocation1] sm:$0xff pattern:$0x73625140]
  %v602 = vld.sshfl [vmem:[#allocation1 + $0x20] sm:$0xff pattern:$0x73625140]
  %604 = vst [vmem:[#allocation1] ss:$4 sm:$0xff] %v385
  %605 = vst [vmem:[%s473] ss:$4 sm:$0xff] %v388
  %607 = vst [vmem:[%s475] ss:$4 sm:$0xff] %v391
  %608 = vst [vmem:[%s478] ss:$4 sm:$0xff] %v394
  %610 = vst [vmem:[%s480] ss:$4 sm:$0xff] %v397
  %611 = vst [vmem:[%s483] ss:$4 sm:$0xff] %v400
  %613 = vst [vmem:[%s485] ss:$4 sm:$0xff] %v403
  %614 = vst [vmem:[%s488] ss:$4 sm:$0xff] %v406
  %v615 = vld.sshfl [vmem:[#allocation1] sm:$0xff pattern:$0x73625140]
  %v616 = vld.sshfl [vmem:[#allocation1 + $0x20] sm:$0xff pattern:$0x73625140]
  %618 = vst [vmem:[#allocation1] ss:$4 sm:$0xff] %v409
  %619 = vst [vmem:[%s473] ss:$4 sm:$0xff] %v412
  %621 = vst [vmem:[%s475] ss:$4 sm:$0xff] %v415
  %622 = vst [vmem:[%s478] ss:$4 sm:$0xff] %v418
  %624 = vst [vmem:[%s480] ss:$4 sm:$0xff] %v421
  %625 = vst [vmem:[%s483] ss:$4 sm:$0xff] %v424
  %627 = vst [vmem:[%s485] ss:$4 sm:$0xff] %v427
  %628 = vst [vmem:[%s488] ss:$4 sm:$0xff] %v430
  %v629 = vld.sshfl [vmem:[#allocation1] sm:$0xff pattern:$0x73625140]
  %v630 = vld.sshfl [vmem:[#allocation1 + $0x20] sm:$0xff pattern:$0x73625140]
  %632 = vst [vmem:[#allocation1] ss:$4 sm:$0xff] %v433
  %633 = vst [vmem:[%s473] ss:$4 sm:$0xff] %v436
  %635 = vst [vmem:[%s475] ss:$4 sm:$0xff] %v439
  %636 = vst [vmem:[%s478] ss:$4 sm:$0xff] %v442
  %638 = vst [vmem:[%s480] ss:$4 sm:$0xff] %v445
  %639 = vst [vmem:[%s483] ss:$4 sm:$0xff] %v448
  %641 = vst [vmem:[%s485] ss:$4 sm:$0xff] %v451
  %642 = vst [vmem:[%s488] ss:$4 sm:$0xff] %v454
  %v643 = vld.sshfl [vmem:[#allocation1] sm:$0xff pattern:$0x73625140]
  %v644 = vld.sshfl [vmem:[#allocation1 + $0x20] sm:$0xff pattern:$0x73625140]
  %646 = vst [vmem:[#allocation1] ss:$4 sm:$0xff] %v457
  %647 = vst [vmem:[%s473] ss:$4 sm:$0xff] %v460
  %v648 = vld.sshfl [vmem:[#allocation1] sm:$0xff pattern:$0x73625140]
  %v659 = vunpack.c.l.b16 %v461
  %v660 = vunpack.c.l.b16 %v462
  %v661 = vunpack.c.l.b16 %v463
  %v662 = vunpack.c.l.b16 %v464
  %v663 = vunpack.c.l.b16 %v465
  %v664 = vunpack.c.l.b16 %v466
  %v665 = vunpack.c.l.b16 %v467
  %v666 = vunpack.c.l.b16 %v468
  %v667 = vunpack.c.l.b16 %v469
  %v668 = vunpack.c.l.b16 %v470
  %v669 = vpack.c.b16 %v660, %v659
  %v670 = vpack.c.b16 %v662, %v661
  %v671 = vpack.c.b16 %v664, %v663
  %v672 = vpack.c.b16 %v666, %v665
  %v673 = vpack.c.b16 %v668, %v667
  %vm678 = vcmask 613376
  %v679 = vsel %vm678, %v490, 0
  %v681 = vsel %vm678, %v491, 0
  %v683 = vsel %vm678, %v504, 0
  %v685 = vsel %vm678, %v505, 0
  %v687 = vsel %vm678, %v518, 0
  %v689 = vsel %vm678, %v519, 0
  %v691 = vsel %vm678, %v532, 0
  %v693 = vsel %vm678, %v533, 0
  %v695 = vsel %vm678, %v546, 0
  %v697 = vsel %vm678, %v547, 0
  %v699 = vsel %vm678, %v560, 0
  %v701 = vsel %vm678, %v561, 0
  %v703 = vsel %vm678, %v573, 0
  %v705 = vsel %vm678, %v574, 0
  %v707 = vsel %vm678, %v587, 0
  %v709 = vsel %vm678, %v588, 0
  %v711 = vsel %vm678, %v601, 0
  %v713 = vsel %vm678, %v602, 0
  %v715 = vsel %vm678, %v615, 0
  %v717 = vsel %vm678, %v616, 0
  %v719 = vsel %vm678, %v629, 0
  %v721 = vsel %vm678, %v630, 0
  %v723 = vsel %vm678, %v643, 0
  %v725 = vsel %vm678, %v644, 0
  %v727 = vsel %vm678, %v648, 0
  %vm729 = vcmask 1044480
  %vm730 = vcmask 1045504
  %v731 = vsel %vm729, 4294967295, 65535
  %v732 = vsel %vm730, %v731, 0
  %v734 = vand.u32 %v673, %v732
  %736 = vmatpush.bf16.msra.mxu0 0
  %737 = vmatpush.bf16.msra.mxu0 0
  %738 = vmatpush.bf16.msra.mxu0 0
  %739 = vmatpush.bf16.msra.mxu0 %v734
  %740 = vmatpush.bf16.msra.mxu0 %v672
  %741 = vmatpush.bf16.msra.mxu0 %v671
  %742 = vmatpush.bf16.msra.mxu0 %v670
  %743 = vmatpush.bf16.msra.mxu0 %v669
  %744 = vmatmul.bf16.gmra.mxu0 %v679
  %v745 = vpop.f32.mrf.mxu0
  %v746 = vadd.f32 0.0, %v745
  %v747 = vpop.f32.mrf.mxu0
  %v748 = vadd.f32 0.0, %v747
  %749 = vmatmul.bf16.gmra.mxu0 %v681
  %v750 = vpop.f32.mrf.mxu0
  %v751 = vadd.f32 0.0, %v750
  %v752 = vpop.f32.mrf.mxu0
  %v753 = vadd.f32 0.0, %v752
  %754 = vmatmul.bf16.gmra.mxu0 %v683
  %v755 = vpop.f32.mrf.mxu0
  %v756 = vadd.f32 0.0, %v755
  %v757 = vpop.f32.mrf.mxu0
  %v758 = vadd.f32 0.0, %v757
  %759 = vmatmul.bf16.gmra.mxu0 %v685
  %v760 = vpop.f32.mrf.mxu0
  %v761 = vadd.f32 0.0, %v760
  %v762 = vpop.f32.mrf.mxu0
  %v763 = vadd.f32 0.0, %v762
  %764 = vmatmul.bf16.gmra.mxu0 %v687
  %v765 = vpop.f32.mrf.mxu0
  %v766 = vadd.f32 0.0, %v765
  %v767 = vpop.f32.mrf.mxu0
  %v768 = vadd.f32 0.0, %v767
  %769 = vmatmul.bf16.gmra.mxu0 %v689
  %v770 = vpop.f32.mrf.mxu0
  %v771 = vadd.f32 0.0, %v770
  %v772 = vpop.f32.mrf.mxu0
  %v773 = vadd.f32 0.0, %v772
  %774 = vmatmul.bf16.gmra.mxu0 %v691
  %v775 = vpop.f32.mrf.mxu0
  %v776 = vadd.f32 0.0, %v775
  %v777 = vpop.f32.mrf.mxu0
  %v778 = vadd.f32 0.0, %v777
  %779 = vmatmul.bf16.gmra.mxu0 %v693
  %v780 = vpop.f32.mrf.mxu0
  %v781 = vadd.f32 0.0, %v780
  %v782 = vpop.f32.mrf.mxu0
  %v783 = vadd.f32 0.0, %v782
  %784 = vmatmul.bf16.gmra.mxu0 %v695
  %v785 = vpop.f32.mrf.mxu0
  %v786 = vadd.f32 0.0, %v785
  %v787 = vpop.f32.mrf.mxu0
  %v788 = vadd.f32 0.0, %v787
  %789 = vmatmul.bf16.gmra.mxu0 %v697
  %v790 = vpop.f32.mrf.mxu0
  %v791 = vadd.f32 0.0, %v790
  %v792 = vpop.f32.mrf.mxu0
  %v793 = vadd.f32 0.0, %v792
  %794 = vmatmul.bf16.gmra.mxu0 %v699
  %v795 = vpop.f32.mrf.mxu0
  %v796 = vadd.f32 0.0, %v795
  %v797 = vpop.f32.mrf.mxu0
  %v798 = vadd.f32 0.0, %v797
  %799 = vmatmul.bf16.gmra.mxu0 %v701
  %v800 = vpop.f32.mrf.mxu0
  %v801 = vadd.f32 0.0, %v800
  %v802 = vpop.f32.mrf.mxu0
  %v803 = vadd.f32 0.0, %v802
  %804 = vmatmul.bf16.gmra.mxu0 %v703
  %v805 = vpop.f32.mrf.mxu0
  %v806 = vadd.f32 0.0, %v805
  %v807 = vpop.f32.mrf.mxu0
  %v808 = vadd.f32 0.0, %v807
  %809 = vmatmul.bf16.gmra.mxu0 %v705
  %v810 = vpop.f32.mrf.mxu0
  %v811 = vadd.f32 0.0, %v810
  %v812 = vpop.f32.mrf.mxu0
  %v813 = vadd.f32 0.0, %v812
  %814 = vmatmul.bf16.gmra.mxu0 %v707
  %v815 = vpop.f32.mrf.mxu0
  %v816 = vadd.f32 0.0, %v815
  %v817 = vpop.f32.mrf.mxu0
  %v818 = vadd.f32 0.0, %v817
  %819 = vmatmul.bf16.gmra.mxu0 %v709
  %v820 = vpop.f32.mrf.mxu0
  %v821 = vadd.f32 0.0, %v820
  %v822 = vpop.f32.mrf.mxu0
  %v823 = vadd.f32 0.0, %v822
  %824 = vmatmul.bf16.gmra.mxu0 %v711
  %v825 = vpop.f32.mrf.mxu0
  %v826 = vadd.f32 0.0, %v825
  %v827 = vpop.f32.mrf.mxu0
  %v828 = vadd.f32 0.0, %v827
  %829 = vmatmul.bf16.gmra.mxu0 %v713
  %v830 = vpop.f32.mrf.mxu0
  %v831 = vadd.f32 0.0, %v830
  %v832 = vpop.f32.mrf.mxu0
  %v833 = vadd.f32 0.0, %v832
  %834 = vmatmul.bf16.gmra.mxu0 %v715
  %v835 = vpop.f32.mrf.mxu0
  %v836 = vadd.f32 0.0, %v835
  %v837 = vpop.f32.mrf.mxu0
  %v838 = vadd.f32 0.0, %v837
  %839 = vmatmul.bf16.gmra.mxu0 %v717
  %v840 = vpop.f32.mrf.mxu0
  %v841 = vadd.f32 0.0, %v840
  %v842 = vpop.f32.mrf.mxu0
  %v843 = vadd.f32 0.0, %v842
  %844 = vmatmul.bf16.gmra.mxu0 %v719
  %v845 = vpop.f32.mrf.mxu0
  %v846 = vadd.f32 0.0, %v845
  %v847 = vpop.f32.mrf.mxu0
  %v848 = vadd.f32 0.0, %v847
  %849 = vmatmul.bf16.gmra.mxu0 %v721
  %v850 = vpop.f32.mrf.mxu0
  %v851 = vadd.f32 0.0, %v850
  %v852 = vpop.f32.mrf.mxu0
  %v853 = vadd.f32 0.0, %v852
  %854 = vmatmul.bf16.gmra.mxu0 %v723
  %v855 = vpop.f32.mrf.mxu0
  %v856 = vadd.f32 0.0, %v855
  %v857 = vpop.f32.mrf.mxu0
  %v858 = vadd.f32 0.0, %v857
  %859 = vmatmul.bf16.gmra.mxu0 %v725
  %v860 = vpop.f32.mrf.mxu0
  %v861 = vadd.f32 0.0, %v860
  %v862 = vpop.f32.mrf.mxu0
  %v863 = vadd.f32 0.0, %v862
  %864 = vmatmul.bf16.gmra.mxu0 %v727
  %v865 = vpop.f32.mrf.mxu0
  %v866 = vadd.f32 0.0, %v865
  %v867 = vpop.f32.mrf.mxu0
  %868 = vdwg.mxu0
  %v918 = vrot.slane %v746, 1
  %v919 = vrot.slane %v746, 2
  %v920 = vrot.slane %v746, 3
  %v921 = vrot.slane %v746, 4
  %v922 = vrot.slane %v746, 5
  %v923 = vrot.slane %v746, 6
  %v924 = vrot.slane %v746, 7
  %v925 = vrot.slane %v748, 1
  %v926 = vrot.slane %v748, 2
  %v927 = vrot.slane %v748, 3
  %v928 = vrot.slane %v748, 4
  %v929 = vrot.slane %v748, 5
  %v930 = vrot.slane %v748, 6
  %v931 = vrot.slane %v748, 7
  %v932 = vrot.slane %v751, 1
  %v933 = vrot.slane %v751, 2
  %v934 = vrot.slane %v751, 3
  %v935 = vrot.slane %v751, 4
  %v936 = vrot.slane %v751, 5
  %v937 = vrot.slane %v751, 6
  %v938 = vrot.slane %v751, 7
  %v939 = vrot.slane %v753, 1
  %v940 = vrot.slane %v753, 2
  %v941 = vrot.slane %v753, 3
  %v942 = vrot.slane %v753, 4
  %v943 = vrot.slane %v753, 5
  %v944 = vrot.slane %v753, 6
  %v945 = vrot.slane %v753, 7
  %v946 = vrot.slane %v756, 1
  %v947 = vrot.slane %v756, 2
  %v948 = vrot.slane %v756, 3
  %v949 = vrot.slane %v756, 4
  %v950 = vrot.slane %v756, 5
  %v951 = vrot.slane %v756, 6
  %v952 = vrot.slane %v756, 7
  %v953 = vrot.slane %v758, 1
  %v954 = vrot.slane %v758, 2
  %v955 = vrot.slane %v758, 3
  %v956 = vrot.slane %v758, 4
  %v957 = vrot.slane %v758, 5
  %v958 = vrot.slane %v758, 6
  %v959 = vrot.slane %v758, 7
  %v960 = vrot.slane %v761, 1
  %v961 = vrot.slane %v761, 2
  %v962 = vrot.slane %v761, 3
  %v963 = vrot.slane %v761, 4
  %v964 = vrot.slane %v761, 5
  %v965 = vrot.slane %v761, 6
  %v966 = vrot.slane %v761, 7
  %v967 = vrot.slane %v763, 1
  %v968 = vrot.slane %v763, 2
  %v969 = vrot.slane %v763, 3
  %v970 = vrot.slane %v763, 4
  %v971 = vrot.slane %v763, 5
  %v972 = vrot.slane %v763, 6
  %v973 = vrot.slane %v763, 7
  %v974 = vrot.slane %v766, 1
  %v975 = vrot.slane %v766, 2
  %v976 = vrot.slane %v766, 3
  %v977 = vrot.slane %v766, 4
  %v978 = vrot.slane %v766, 5
  %v979 = vrot.slane %v766, 6
  %v980 = vrot.slane %v766, 7
  %v981 = vrot.slane %v768, 1
  %v982 = vrot.slane %v768, 2
  %v983 = vrot.slane %v768, 3
  %v984 = vrot.slane %v768, 4
  %v985 = vrot.slane %v768, 5
  %v986 = vrot.slane %v768, 6
  %v987 = vrot.slane %v768, 7
  %v988 = vrot.slane %v771, 1
  %v989 = vrot.slane %v771, 2
  %v990 = vrot.slane %v771, 3
  %v991 = vrot.slane %v771, 4
  %v992 = vrot.slane %v771, 5
  %v993 = vrot.slane %v771, 6
  %v994 = vrot.slane %v771, 7
  %v995 = vrot.slane %v773, 1
  %v996 = vrot.slane %v773, 2
  %v997 = vrot.slane %v773, 3
  %v998 = vrot.slane %v773, 4
  %v999 = vrot.slane %v773, 5
  %v1000 = vrot.slane %v773, 6
  %v1001 = vrot.slane %v773, 7
  %v1002 = vrot.slane %v776, 1
  %v1003 = vrot.slane %v776, 2
  %v1004 = vrot.slane %v776, 3
  %v1005 = vrot.slane %v776, 4
  %v1006 = vrot.slane %v776, 5
  %v1007 = vrot.slane %v776, 6
  %v1008 = vrot.slane %v776, 7
  %v1009 = vrot.slane %v778, 1
  %v1010 = vrot.slane %v778, 2
  %v1011 = vrot.slane %v778, 3
  %v1012 = vrot.slane %v778, 4
  %v1013 = vrot.slane %v778, 5
  %v1014 = vrot.slane %v778, 6
  %v1015 = vrot.slane %v778, 7
  %v1016 = vrot.slane %v781, 1
  %v1017 = vrot.slane %v781, 2
  %v1018 = vrot.slane %v781, 3
  %v1019 = vrot.slane %v781, 4
  %v1020 = vrot.slane %v781, 5
  %v1021 = vrot.slane %v781, 6
  %v1022 = vrot.slane %v781, 7
  %v1023 = vrot.slane %v783, 1
  %v1024 = vrot.slane %v783, 2
  %v1025 = vrot.slane %v783, 3
  %v1026 = vrot.slane %v783, 4
  %v1027 = vrot.slane %v783, 5
  %v1028 = vrot.slane %v783, 6
  %v1029 = vrot.slane %v783, 7
  %v1030 = vrot.slane %v786, 1
  %v1031 = vrot.slane %v786, 2
  %v1032 = vrot.slane %v786, 3
  %v1033 = vrot.slane %v786, 4
  %v1034 = vrot.slane %v786, 5
  %v1035 = vrot.slane %v786, 6
  %v1036 = vrot.slane %v786, 7
  %v1037 = vrot.slane %v788, 1
  %v1038 = vrot.slane %v788, 2
  %v1039 = vrot.slane %v788, 3
  %v1040 = vrot.slane %v788, 4
  %v1041 = vrot.slane %v788, 5
  %v1042 = vrot.slane %v788, 6
  %v1043 = vrot.slane %v788, 7
  %v1044 = vrot.slane %v791, 1
  %v1045 = vrot.slane %v791, 2
  %v1046 = vrot.slane %v791, 3
  %v1047 = vrot.slane %v791, 4
  %v1048 = vrot.slane %v791, 5
  %v1049 = vrot.slane %v791, 6
  %v1050 = vrot.slane %v791, 7
  %v1051 = vrot.slane %v793, 1
  %v1052 = vrot.slane %v793, 2
  %v1053 = vrot.slane %v793, 3
  %v1054 = vrot.slane %v793, 4
  %v1055 = vrot.slane %v793, 5
  %v1056 = vrot.slane %v793, 6
  %v1057 = vrot.slane %v793, 7
  %v1058 = vrot.slane %v796, 1
  %v1059 = vrot.slane %v796, 2
  %v1060 = vrot.slane %v796, 3
  %v1061 = vrot.slane %v796, 4
  %v1062 = vrot.slane %v796, 5
  %v1063 = vrot.slane %v796, 6
  %v1064 = vrot.slane %v796, 7
  %v1065 = vrot.slane %v798, 1
  %v1066 = vrot.slane %v798, 2
  %v1067 = vrot.slane %v798, 3
  %v1068 = vrot.slane %v798, 4
  %v1069 = vrot.slane %v798, 5
  %v1070 = vrot.slane %v798, 6
  %v1071 = vrot.slane %v798, 7
  %v1072 = vrot.slane %v801, 1
  %v1073 = vrot.slane %v801, 2
  %v1074 = vrot.slane %v801, 3
  %v1075 = vrot.slane %v801, 4
  %v1076 = vrot.slane %v801, 5
  %v1077 = vrot.slane %v801, 6
  %v1078 = vrot.slane %v801, 7
  %v1079 = vrot.slane %v803, 1
  %v1080 = vrot.slane %v803, 2
  %v1081 = vrot.slane %v803, 3
  %v1082 = vrot.slane %v803, 4
  %v1083 = vrot.slane %v803, 5
  %v1084 = vrot.slane %v803, 6
  %v1085 = vrot.slane %v803, 7
  %v1086 = vrot.slane %v806, 1
  %v1087 = vrot.slane %v806, 2
  %v1088 = vrot.slane %v806, 3
  %v1089 = vrot.slane %v806, 4
  %v1090 = vrot.slane %v806, 5
  %v1091 = vrot.slane %v806, 6
  %v1092 = vrot.slane %v806, 7
  %v1093 = vrot.slane %v808, 1
  %v1094 = vrot.slane %v808, 2
  %v1095 = vrot.slane %v808, 3
  %v1096 = vrot.slane %v808, 4
  %v1097 = vrot.slane %v808, 5
  %v1098 = vrot.slane %v808, 6
  %v1099 = vrot.slane %v808, 7
  %v1100 = vrot.slane %v811, 1
  %v1101 = vrot.slane %v811, 2
  %v1102 = vrot.slane %v811, 3
  %v1103 = vrot.slane %v811, 4
  %v1104 = vrot.slane %v811, 5
  %v1105 = vrot.slane %v811, 6
  %v1106 = vrot.slane %v811, 7
  %v1107 = vrot.slane %v813, 1
  %v1108 = vrot.slane %v813, 2
  %v1109 = vrot.slane %v813, 3
  %v1110 = vrot.slane %v813, 4
  %v1111 = vrot.slane %v813, 5
  %v1112 = vrot.slane %v813, 6
  %v1113 = vrot.slane %v813, 7
  %v1114 = vrot.slane %v816, 1
  %v1115 = vrot.slane %v816, 2
  %v1116 = vrot.slane %v816, 3
  %v1117 = vrot.slane %v816, 4
  %v1118 = vrot.slane %v816, 5
  %v1119 = vrot.slane %v816, 6
  %v1120 = vrot.slane %v816, 7
  %v1121 = vrot.slane %v818, 1
  %v1122 = vrot.slane %v818, 2
  %v1123 = vrot.slane %v818, 3
  %v1124 = vrot.slane %v818, 4
  %v1125 = vrot.slane %v818, 5
  %v1126 = vrot.slane %v818, 6
  %v1127 = vrot.slane %v818, 7
  %v1128 = vrot.slane %v821, 1
  %v1129 = vrot.slane %v821, 2
  %v1130 = vrot.slane %v821, 3
  %v1131 = vrot.slane %v821, 4
  %v1132 = vrot.slane %v821, 5
  %v1133 = vrot.slane %v821, 6
  %v1134 = vrot.slane %v821, 7
  %v1135 = vrot.slane %v823, 1
  %v1136 = vrot.slane %v823, 2
  %v1137 = vrot.slane %v823, 3
  %v1138 = vrot.slane %v823, 4
  %v1139 = vrot.slane %v823, 5
  %v1140 = vrot.slane %v823, 6
  %v1141 = vrot.slane %v823, 7
  %v1142 = vrot.slane %v826, 1
  %v1143 = vrot.slane %v826, 2
  %v1144 = vrot.slane %v826, 3
  %v1145 = vrot.slane %v826, 4
  %v1146 = vrot.slane %v826, 5
  %v1147 = vrot.slane %v826, 6
  %v1148 = vrot.slane %v826, 7
  %v1149 = vrot.slane %v828, 1
  %v1150 = vrot.slane %v828, 2
  %v1151 = vrot.slane %v828, 3
  %v1152 = vrot.slane %v828, 4
  %v1153 = vrot.slane %v828, 5
  %v1154 = vrot.slane %v828, 6
  %v1155 = vrot.slane %v828, 7
  %v1156 = vrot.slane %v831, 1
  %v1157 = vrot.slane %v831, 2
  %v1158 = vrot.slane %v831, 3
  %v1159 = vrot.slane %v831, 4
  %v1160 = vrot.slane %v831, 5
  %v1161 = vrot.slane %v831, 6
  %v1162 = vrot.slane %v831, 7
  %v1163 = vrot.slane %v833, 1
  %v1164 = vrot.slane %v833, 2
  %v1165 = vrot.slane %v833, 3
  %v1166 = vrot.slane %v833, 4
  %v1167 = vrot.slane %v833, 5
  %v1168 = vrot.slane %v833, 6
  %v1169 = vrot.slane %v833, 7
  %v1170 = vrot.slane %v836, 1
  %v1171 = vrot.slane %v836, 2
  %v1172 = vrot.slane %v836, 3
  %v1173 = vrot.slane %v836, 4
  %v1174 = vrot.slane %v836, 5
  %v1175 = vrot.slane %v836, 6
  %v1176 = vrot.slane %v836, 7
  %v1177 = vrot.slane %v838, 1
  %v1178 = vrot.slane %v838, 2
  %v1179 = vrot.slane %v838, 3
  %v1180 = vrot.slane %v838, 4
  %v1181 = vrot.slane %v838, 5
  %v1182 = vrot.slane %v838, 6
  %v1183 = vrot.slane %v838, 7
  %v1184 = vrot.slane %v841, 1
  %v1185 = vrot.slane %v841, 2
  %v1186 = vrot.slane %v841, 3
  %v1187 = vrot.slane %v841, 4
  %v1188 = vrot.slane %v841, 5
  %v1189 = vrot.slane %v841, 6
  %v1190 = vrot.slane %v841, 7
  %v1191 = vrot.slane %v843, 1
  %v1192 = vrot.slane %v843, 2
  %v1193 = vrot.slane %v843, 3
  %v1194 = vrot.slane %v843, 4
  %v1195 = vrot.slane %v843, 5
  %v1196 = vrot.slane %v843, 6
  %v1197 = vrot.slane %v843, 7
  %v1198 = vrot.slane %v846, 1
  %v1199 = vrot.slane %v846, 2
  %v1200 = vrot.slane %v846, 3
  %v1201 = vrot.slane %v846, 4
  %v1202 = vrot.slane %v846, 5
  %v1203 = vrot.slane %v846, 6
  %v1204 = vrot.slane %v846, 7
  %v1205 = vrot.slane %v848, 1
  %v1206 = vrot.slane %v848, 2
  %v1207 = vrot.slane %v848, 3
  %v1208 = vrot.slane %v848, 4
  %v1209 = vrot.slane %v848, 5
  %v1210 = vrot.slane %v848, 6
  %v1211 = vrot.slane %v848, 7
  %v1212 = vrot.slane %v851, 1
  %v1213 = vrot.slane %v851, 2
  %v1214 = vrot.slane %v851, 3
  %v1215 = vrot.slane %v851, 4
  %v1216 = vrot.slane %v851, 5
  %v1217 = vrot.slane %v851, 6
  %v1218 = vrot.slane %v851, 7
  %v1219 = vrot.slane %v853, 1
  %v1220 = vrot.slane %v853, 2
  %v1221 = vrot.slane %v853, 3
  %v1222 = vrot.slane %v853, 4
  %v1223 = vrot.slane %v853, 5
  %v1224 = vrot.slane %v853, 6
  %v1225 = vrot.slane %v853, 7
  %v1226 = vrot.slane %v856, 1
  %v1227 = vrot.slane %v856, 2
  %v1228 = vrot.slane %v856, 3
  %v1229 = vrot.slane %v856, 4
  %v1230 = vrot.slane %v856, 5
  %v1231 = vrot.slane %v856, 6
  %v1232 = vrot.slane %v856, 7
  %v1233 = vrot.slane %v858, 1
  %v1234 = vrot.slane %v858, 2
  %v1235 = vrot.slane %v858, 3
  %v1236 = vrot.slane %v858, 4
  %v1237 = vrot.slane %v858, 5
  %v1238 = vrot.slane %v858, 6
  %v1239 = vrot.slane %v858, 7
  %v1240 = vrot.slane %v861, 1
  %v1241 = vrot.slane %v861, 2
  %v1242 = vrot.slane %v861, 3
  %v1243 = vrot.slane %v861, 4
  %v1244 = vrot.slane %v861, 5
  %v1245 = vrot.slane %v861, 6
  %v1246 = vrot.slane %v861, 7
  %v1247 = vrot.slane %v863, 1
  %v1248 = vrot.slane %v863, 2
  %v1249 = vrot.slane %v863, 3
  %v1250 = vrot.slane %v863, 4
  %v1251 = vrot.slane %v863, 5
  %v1252 = vrot.slane %v863, 6
  %v1253 = vrot.slane %v863, 7
  %v1254 = vrot.slane %v866, 1
  %v1255 = vrot.slane %v866, 2
  %v1256 = vrot.slane %v866, 3
  %v1257 = vrot.slane %v866, 4
  %v1258 = vrot.slane %v866, 5
  %v1259 = vrot.slane %v866, 6
  %v1260 = vrot.slane %v866, 7
  %v1604 = vmax.f32 %v746, %v960
  %v1605 = vmax.f32 %v918, %v961
  %v1606 = vmax.f32 %v919, %v962
  %v1607 = vmax.f32 %v920, %v963
  %v1608 = vmax.f32 %v921, %v964
  %v1609 = vmax.f32 %v922, %v965
  %v1610 = vmax.f32 %v923, %v966
  %v1611 = vmax.f32 %v924, %v763
  %v1612 = vmax.f32 %v748, %v967
  %v1613 = vmax.f32 %v925, %v968
  %v1614 = vmax.f32 %v926, %v969
  %v1615 = vmax.f32 %v927, %v970
  %v1616 = vmax.f32 %v928, %v971
  %v1617 = vmax.f32 %v929, %v972
  %v1618 = vmax.f32 %v930, %v973
  %v1619 = vmax.f32 %v931, %v766
  %v1620 = vmax.f32 %v751, %v974
  %v1621 = vmax.f32 %v932, %v975
  %v1622 = vmax.f32 %v933, %v976
  %v1623 = vmax.f32 %v934, %v977
  %v1624 = vmax.f32 %v935, %v978
  %v1625 = vmax.f32 %v936, %v979
  %v1626 = vmax.f32 %v937, %v980
  %v1627 = vmax.f32 %v938, %v768
  %v1628 = vmax.f32 %v753, %v981
  %v1629 = vmax.f32 %v939, %v982
  %v1630 = vmax.f32 %v940, %v983
  %v1631 = vmax.f32 %v941, %v984
  %v1632 = vmax.f32 %v942, %v985
  %v1633 = vmax.f32 %v943, %v986
  %v1634 = vmax.f32 %v944, %v987
  %v1635 = vmax.f32 %v945, %v771
  %v1636 = vmax.f32 %v756, %v988
  %v1637 = vmax.f32 %v946, %v989
  %v1638 = vmax.f32 %v947, %v990
  %v1639 = vmax.f32 %v948, %v991
  %v1640 = vmax.f32 %v949, %v992
  %v1641 = vmax.f32 %v950, %v993
  %v1642 = vmax.f32 %v951, %v994
  %v1643 = vmax.f32 %v952, %v773
  %v1644 = vmax.f32 %v758, %v995
  %v1645 = vmax.f32 %v953, %v996
  %v1646 = vmax.f32 %v954, %v997
  %v1647 = vmax.f32 %v955, %v998
  %v1648 = vmax.f32 %v956, %v999
  %v1649 = vmax.f32 %v957, %v1000
  %v1650 = vmax.f32 %v958, %v1001
  %v1651 = vmax.f32 %v959, %v776
  %v1652 = vmax.f32 %v761, %v1002
  %v1653 = vmax.f32 %v1089, %v1132
  %v1654 = vmax.f32 %v1090, %v1133
  %v1655 = vmax.f32 %v1091, %v1134
  %v1656 = vmax.f32 %v1092, %v823
  %v1657 = vmax.f32 %v808, %v1135
  %v1658 = vmax.f32 %v1093, %v1136
  %v1659 = vmax.f32 %v1094, %v1137
  %v1660 = vmax.f32 %v1095, %v1138
  %v1661 = vmax.f32 %v1096, %v1139
  %v1662 = vmax.f32 %v1097, %v1140
  %v1663 = vmax.f32 %v1098, %v1141
  %v1664 = vmax.f32 %v1099, %v826
  %v1665 = vmax.f32 %v811, %v1142
  %v1666 = vmax.f32 %v1100, %v1143
  %v1667 = vmax.f32 %v1101, %v1144
  %v1668 = vmax.f32 %v1102, %v1145
  %v1669 = vmax.f32 %v1103, %v1146
  %v1670 = vmax.f32 %v1104, %v1147
  %v1671 = vmax.f32 %v1105, %v1148
  %v1672 = vmax.f32 %v1106, %v828
  %v1673 = vmax.f32 %v813, %v1149
  %v1674 = vmax.f32 %v1107, %v1150
  %v1675 = vmax.f32 %v1108, %v1151
  %v1676 = vmax.f32 %v1109, %v1152
  %v1677 = vmax.f32 %v1110, %v1153
  %v1678 = vmax.f32 %v1111, %v1154
  %v1679 = vmax.f32 %v1112, %v1155
  %v1680 = vmax.f32 %v1113, %v831
  %v1681 = vmax.f32 %v816, %v1156
  %v1682 = vmax.f32 %v1114, %v1157
  %v1683 = vmax.f32 %v1115, %v1158
  %v1684 = vmax.f32 %v1116, %v1159
  %v1685 = vmax.f32 %v1117, %v1160
  %v1686 = vmax.f32 %v1118, %v1161
  %v1687 = vmax.f32 %v1119, %v1162
  %v1688 = vmax.f32 %v1120, %v833
  %v1689 = vmax.f32 %v818, %v1163
  %v1690 = vmax.f32 %v1121, %v1164
  %v1691 = vmax.f32 %v1122, %v1165
  %v1692 = vmax.f32 %v1123, %v1166
  %v1693 = vmax.f32 %v1124, %v1167
  %v1694 = vmax.f32 %v1125, %v1168
  %v1695 = vmax.f32 %v1126, %v1169
  %v1696 = vmax.f32 %v1127, %v836
  %v1697 = vmax.f32 %v821, %v1170
  %v1698 = vmax.f32 %v1128, %v1171
  %v1699 = vmax.f32 %v1129, %v1172
  %v1700 = vmax.f32 %v1130, %v1173
  %v1701 = vmax.f32 %v1131, %v1174
  %v1702 = vmax.f32 %v1003, %v1046
  %v1703 = vmax.f32 %v1004, %v1047
  %v1704 = vmax.f32 %v1005, %v1048
  %v1705 = vmax.f32 %v1006, %v1049
  %v1706 = vmax.f32 %v1007, %v1050
  %v1707 = vmax.f32 %v1008, %v793
  %v1708 = vmax.f32 %v778, %v1051
  %v1709 = vmax.f32 %v1009, %v1052
  %v1710 = vmax.f32 %v1010, %v1053
  %v1711 = vmax.f32 %v1011, %v1054
  %v1712 = vmax.f32 %v1012, %v1055
  %v1713 = vmax.f32 %v1013, %v1056
  %v1714 = vmax.f32 %v1014, %v1057
  %v1715 = vmax.f32 %v1015, %v796
  %v1716 = vmax.f32 %v781, %v1058
  %v1717 = vmax.f32 %v1016, %v1059
  %v1718 = vmax.f32 %v1017, %v1060
  %v1719 = vmax.f32 %v1018, %v1061
  %v1720 = vmax.f32 %v1019, %v1062
  %v1721 = vmax.f32 %v1020, %v1063
  %v1722 = vmax.f32 %v1021, %v1064
  %v1723 = vmax.f32 %v1022, %v798
  %v1724 = vmax.f32 %v783, %v1065
  %v1725 = vmax.f32 %v1023, %v1066
  %v1726 = vmax.f32 %v1024, %v1067
  %v1727 = vmax.f32 %v1025, %v1068
  %v1728 = vmax.f32 %v1026, %v1069
  %v1729 = vmax.f32 %v1027, %v1070
  %v1730 = vmax.f32 %v1028, %v1071
  %v1731 = vmax.f32 %v1029, %v801
  %v1732 = vmax.f32 %v786, %v1072
  %v1733 = vmax.f32 %v1030, %v1073
  %v1734 = vmax.f32 %v1031, %v1074
  %v1735 = vmax.f32 %v1032, %v1075
  %v1736 = vmax.f32 %v1033, %v1076
  %v1737 = vmax.f32 %v1034, %v1077
  %v1738 = vmax.f32 %v1035, %v1078
  %v1739 = vmax.f32 %v1036, %v803
  %v1740 = vmax.f32 %v788, %v1079
  %v1741 = vmax.f32 %v1037, %v1080
  %v1742 = vmax.f32 %v1038, %v1081
  %v1743 = vmax.f32 %v1039, %v1082
  %v1744 = vmax.f32 %v1040, %v1083
  %v1745 = vmax.f32 %v1041, %v1084
  %v1746 = vmax.f32 %v1042, %v1085
  %v1747 = vmax.f32 %v1043, %v806
  %v1748 = vmax.f32 %v791, %v1086
  %v1749 = vmax.f32 %v1044, %v1087
  %v1750 = vmax.f32 %v1045, %v1088
  %v1751 = vmax.f32 %v1175, %v1218
  %v1752 = vmax.f32 %v1176, %v853
  %v1753 = vmax.f32 %v838, %v1219
  %v1754 = vmax.f32 %v1177, %v1220
  %v1755 = vmax.f32 %v1178, %v1221
  %v1756 = vmax.f32 %v1179, %v1222
  %v1757 = vmax.f32 %v1180, %v1223
  %v1758 = vmax.f32 %v1181, %v1224
  %v1759 = vmax.f32 %v1182, %v1225
  %v1760 = vmax.f32 %v1183, %v856
  %v1761 = vmax.f32 %v841, %v1226
  %v1762 = vmax.f32 %v1184, %v1227
  %v1763 = vmax.f32 %v1185, %v1228
  %v1764 = vmax.f32 %v1186, %v1229
  %v1765 = vmax.f32 %v1187, %v1230
  %v1766 = vmax.f32 %v1188, %v1231
  %v1767 = vmax.f32 %v1189, %v1232
  %v1768 = vmax.f32 %v1190, %v858
  %v1769 = vmax.f32 %v843, %v1233
  %v1770 = vmax.f32 %v1191, %v1234
  %v1771 = vmax.f32 %v1192, %v1235
  %v1772 = vmax.f32 %v1193, %v1236
  %v1773 = vmax.f32 %v1194, %v1237
  %v1774 = vmax.f32 %v1195, %v1238
  %v1775 = vmax.f32 %v1196, %v1239
  %v1776 = vmax.f32 %v1197, %v861
  %v1777 = vmax.f32 %v846, %v1240
  %v1778 = vmax.f32 %v1198, %v1241
  %v1779 = vmax.f32 %v1199, %v1242
  %v1780 = vmax.f32 %v1200, %v1243
  %v1781 = vmax.f32 %v1201, %v1244
  %v1782 = vmax.f32 %v1202, %v1245
  %v1783 = vmax.f32 %v1203, %v1246
  %v1784 = vmax.f32 %v1204, %v863
  %v1785 = vmax.f32 %v848, %v1247
  %v1786 = vmax.f32 %v1205, %v1248
  %v1787 = vmax.f32 %v1206, %v1249
  %v1788 = vmax.f32 %v1207, %v1250
  %v1789 = vmax.f32 %v1208, %v1251
  %v1790 = vmax.f32 %v1209, %v1252
  %v1791 = vmax.f32 %v1210, %v1253
  %v1792 = vmax.f32 %v1211, %v866
  %v1793 = vmax.f32 %v851, %v1254
  %v1794 = vmax.f32 %v1212, %v1255
  %v1795 = vmax.f32 %v1213, %v1256
  %v1796 = vmax.f32 %v1214, %v1257
  %v1797 = vmax.f32 %v1215, %v1258
  %v1798 = vmax.f32 %v1216, %v1259
  %v1799 = vmax.f32 %v1217, %v1260
  %v1800 = vmax.f32 %v1604, %v1702
  %v1801 = vmax.f32 %v1605, %v1703
  %v1802 = vmax.f32 %v1606, %v1704
  %v1803 = vmax.f32 %v1607, %v1705
  %v1804 = vmax.f32 %v1608, %v1706
  %v1805 = vmax.f32 %v1609, %v1707
  %v1806 = vmax.f32 %v1610, %v1708
  %v1807 = vmax.f32 %v1611, %v1709
  %v1808 = vmax.f32 %v1612, %v1710
  %v1809 = vmax.f32 %v1613, %v1711
  %v1810 = vmax.f32 %v1614, %v1712
  %v1811 = vmax.f32 %v1615, %v1713
  %v1812 = vmax.f32 %v1616, %v1714
  %v1813 = vmax.f32 %v1617, %v1715
  %v1814 = vmax.f32 %v1618, %v1716
  %v1815 = vmax.f32 %v1619, %v1717
  %v1816 = vmax.f32 %v1620, %v1718
  %v1817 = vmax.f32 %v1621, %v1719
  %v1818 = vmax.f32 %v1622, %v1720
  %v1819 = vmax.f32 %v1623, %v1721
  %v1820 = vmax.f32 %v1624, %v1722
  %v1821 = vmax.f32 %v1625, %v1723
  %v1822 = vmax.f32 %v1626, %v1724
  %v1823 = vmax.f32 %v1627, %v1725
  %v1824 = vmax.f32 %v1628, %v1726
  %v1825 = vmax.f32 %v1629, %v1727
  %v1826 = vmax.f32 %v1630, %v1728
  %v1827 = vmax.f32 %v1631, %v1729
  %v1828 = vmax.f32 %v1632, %v1730
  %v1829 = vmax.f32 %v1633, %v1731
  %v1830 = vmax.f32 %v1634, %v1732
  %v1831 = vmax.f32 %v1635, %v1733
  %v1832 = vmax.f32 %v1636, %v1734
  %v1833 = vmax.f32 %v1637, %v1735
  %v1834 = vmax.f32 %v1638, %v1736
  %v1835 = vmax.f32 %v1639, %v1737
  %v1836 = vmax.f32 %v1640, %v1738
  %v1837 = vmax.f32 %v1641, %v1739
  %v1838 = vmax.f32 %v1642, %v1740
  %v1839 = vmax.f32 %v1643, %v1741
  %v1840 = vmax.f32 %v1644, %v1742
  %v1841 = vmax.f32 %v1645, %v1743
  %v1842 = vmax.f32 %v1646, %v1744
  %v1843 = vmax.f32 %v1647, %v1745
  %v1844 = vmax.f32 %v1648, %v1746
  %v1845 = vmax.f32 %v1649, %v1747
  %v1846 = vmax.f32 %v1650, %v1748
  %v1847 = vmax.f32 %v1651, %v1749
  %v1848 = vmax.f32 %v1652, %v1750
  %v1849 = vmax.f32 %v1653, %v1751
  %v1850 = vmax.f32 %v1654, %v1752
  %v1851 = vmax.f32 %v1655, %v1753
  %v1852 = vmax.f32 %v1656, %v1754
  %v1853 = vmax.f32 %v1657, %v1755
  %v1854 = vmax.f32 %v1658, %v1756
  %v1855 = vmax.f32 %v1659, %v1757
  %v1856 = vmax.f32 %v1660, %v1758
  %v1857 = vmax.f32 %v1661, %v1759
  %v1858 = vmax.f32 %v1662, %v1760
  %v1859 = vmax.f32 %v1663, %v1761
  %v1860 = vmax.f32 %v1664, %v1762
  %v1861 = vmax.f32 %v1665, %v1763
  %v1862 = vmax.f32 %v1666, %v1764
  %v1863 = vmax.f32 %v1667, %v1765
  %v1864 = vmax.f32 %v1668, %v1766
  %v1865 = vmax.f32 %v1669, %v1767
  %v1866 = vmax.f32 %v1670, %v1768
  %v1867 = vmax.f32 %v1671, %v1769
  %v1868 = vmax.f32 %v1672, %v1770
  %v1869 = vmax.f32 %v1673, %v1771
  %v1870 = vmax.f32 %v1674, %v1772
  %v1871 = vmax.f32 %v1675, %v1773
  %v1872 = vmax.f32 %v1676, %v1774
  %v1873 = vmax.f32 %v1677, %v1775
  %v1874 = vmax.f32 %v1678, %v1776
  %v1875 = vmax.f32 %v1679, %v1777
  %v1876 = vmax.f32 %v1680, %v1778
  %v1877 = vmax.f32 %v1681, %v1779
  %v1878 = vmax.f32 %v1682, %v1780
  %v1879 = vmax.f32 %v1683, %v1781
  %v1880 = vmax.f32 %v1684, %v1782
  %v1881 = vmax.f32 %v1685, %v1783
  %v1882 = vmax.f32 %v1686, %v1784
  %v1883 = vmax.f32 %v1687, %v1785
  %v1884 = vmax.f32 %v1688, %v1786
  %v1885 = vmax.f32 %v1689, %v1787
  %v1886 = vmax.f32 %v1690, %v1788
  %v1887 = vmax.f32 %v1691, %v1789
  %v1888 = vmax.f32 %v1692, %v1790
  %v1889 = vmax.f32 %v1693, %v1791
  %v1890 = vmax.f32 %v1694, %v1792
  %v1891 = vmax.f32 %v1695, %v1793
  %v1892 = vmax.f32 %v1696, %v1794
  %v1893 = vmax.f32 %v1697, %v1795
  %v1894 = vmax.f32 %v1698, %v1796
  %v1895 = vmax.f32 %v1699, %v1797
  %v1896 = vmax.f32 %v1700, %v1798
  %v1897 = vmax.f32 %v1701, %v1799
  %v1898 = vld [vmem:[%s2] sm:$0x1]
  %v1900 = vperm.slane %v1898, 0
  %v1902 = vrot.slane %v1900, 1
  %v1903 = vrot.slane %v1900, 2
  %v1904 = vrot.slane %v1900, 3
  %v1905 = vrot.slane %v1900, 4
  %v1906 = vrot.slane %v1900, 5
  %v1907 = vrot.slane %v1900, 6
  %v1908 = vrot.slane %v1900, 7
  %v1916 = vadd.f32 %v1800, %v1900
  %v1917 = vadd.f32 %v1801, %v1902
  %v1918 = vadd.f32 %v1802, %v1903
  %v1919 = vadd.f32 %v1803, %v1904
  %v1920 = vadd.f32 %v1804, %v1905
  %v1921 = vadd.f32 %v1805, %v1906
  %v1922 = vadd.f32 %v1806, %v1907
  %v1923 = vadd.f32 %v1807, %v1908
  %v1924 = vadd.f32 %v1808, %v1900
  %v1925 = vadd.f32 %v1809, %v1902
  %v1926 = vadd.f32 %v1810, %v1903
  %v1927 = vadd.f32 %v1811, %v1904
  %v1928 = vadd.f32 %v1812, %v1905
  %v1929 = vadd.f32 %v1813, %v1906
  %v1930 = vadd.f32 %v1814, %v1907
  %v1931 = vadd.f32 %v1815, %v1908
  %v1932 = vadd.f32 %v1816, %v1900
  %v1933 = vadd.f32 %v1817, %v1902
  %v1934 = vadd.f32 %v1818, %v1903
  %v1935 = vadd.f32 %v1819, %v1904
  %v1936 = vadd.f32 %v1820, %v1905
  %v1937 = vadd.f32 %v1821, %v1906
  %v1938 = vadd.f32 %v1822, %v1907
  %v1939 = vadd.f32 %v1823, %v1908
  %v1940 = vadd.f32 %v1824, %v1900
  %v1941 = vadd.f32 %v1825, %v1902
  %v1942 = vadd.f32 %v1826, %v1903
  %v1943 = vadd.f32 %v1827, %v1904
  %v1944 = vadd.f32 %v1828, %v1905
  %v1945 = vadd.f32 %v1829, %v1906
  %v1946 = vadd.f32 %v1830, %v1907
  %v1947 = vadd.f32 %v1831, %v1908
  %v1948 = vadd.f32 %v1832, %v1900
  %v1949 = vadd.f32 %v1833, %v1902
  %v1950 = vadd.f32 %v1834, %v1903
  %v1951 = vadd.f32 %v1835, %v1904
  %v1952 = vadd.f32 %v1836, %v1905
  %v1953 = vadd.f32 %v1837, %v1906
  %v1954 = vadd.f32 %v1838, %v1907
  %v1955 = vadd.f32 %v1839, %v1908
  %v1956 = vadd.f32 %v1840, %v1900
  %v1957 = vadd.f32 %v1841, %v1902
  %v1958 = vadd.f32 %v1842, %v1903
  %v1959 = vadd.f32 %v1843, %v1904
  %v1960 = vadd.f32 %v1844, %v1905
  %v1961 = vadd.f32 %v1845, %v1906
  %v1962 = vadd.f32 %v1846, %v1907
  %v1963 = vadd.f32 %v1847, %v1908
  %v1964 = vadd.f32 %v1848, %v1900
  %v1965 = vadd.f32 %v1849, %v1900
  %v1966 = vadd.f32 %v1850, %v1902
  %v1967 = vadd.f32 %v1851, %v1903
  %v1968 = vadd.f32 %v1852, %v1904
  %v1969 = vadd.f32 %v1853, %v1905
  %v1970 = vadd.f32 %v1854, %v1906
  %v1971 = vadd.f32 %v1855, %v1907
  %v1972 = vadd.f32 %v1856, %v1908
  %v1973 = vadd.f32 %v1857, %v1900
  %v1974 = vadd.f32 %v1858, %v1902
  %v1975 = vadd.f32 %v1859, %v1903
  %v1976 = vadd.f32 %v1860, %v1904
  %v1977 = vadd.f32 %v1861, %v1905
  %v1978 = vadd.f32 %v1862, %v1906
  %v1979 = vadd.f32 %v1863, %v1907
  %v1980 = vadd.f32 %v1864, %v1908
  %v1981 = vadd.f32 %v1865, %v1900
  %v1982 = vadd.f32 %v1866, %v1902
  %v1983 = vadd.f32 %v1867, %v1903
  %v1984 = vadd.f32 %v1868, %v1904
  %v1985 = vadd.f32 %v1869, %v1905
  %v1986 = vadd.f32 %v1870, %v1906
  %v1987 = vadd.f32 %v1871, %v1907
  %v1988 = vadd.f32 %v1872, %v1908
  %v1989 = vadd.f32 %v1873, %v1900
  %v1990 = vadd.f32 %v1874, %v1902
  %v1991 = vadd.f32 %v1875, %v1903
  %v1992 = vadd.f32 %v1876, %v1904
  %v1993 = vadd.f32 %v1877, %v1905
  %v1994 = vadd.f32 %v1878, %v1906
  %v1995 = vadd.f32 %v1879, %v1907
  %v1996 = vadd.f32 %v1880, %v1908
  %v1997 = vadd.f32 %v1881, %v1900
  %v1998 = vadd.f32 %v1882, %v1902
  %v1999 = vadd.f32 %v1883, %v1903
  %v2000 = vadd.f32 %v1884, %v1904
  %v2001 = vadd.f32 %v1885, %v1905
  %v2002 = vadd.f32 %v1886, %v1906
  %v2003 = vadd.f32 %v1887, %v1907
  %v2004 = vadd.f32 %v1888, %v1908
  %v2005 = vadd.f32 %v1889, %v1900
  %v2006 = vadd.f32 %v1890, %v1902
  %v2007 = vadd.f32 %v1891, %v1903
  %v2008 = vadd.f32 %v1892, %v1904
  %v2009 = vadd.f32 %v1893, %v1905
  %v2010 = vadd.f32 %v1894, %v1906
  %v2011 = vadd.f32 %v1895, %v1907
  %v2012 = vadd.f32 %v1896, %v1908
  %v2013 = vadd.f32 %v1897, %v1900
  %v2014 = vmax.f32 %v1916, 0.0
  %v2015 = vmax.f32 %v1917, 0.0
  %v2016 = vmax.f32 %v1918, 0.0
  %v2017 = vmax.f32 %v1919, 0.0
  %v2018 = vmax.f32 %v1920, 0.0
  %v2019 = vmax.f32 %v1921, 0.0
  %v2020 = vmax.f32 %v1922, 0.0
  %v2021 = vmax.f32 %v1923, 0.0
  %v2022 = vmax.f32 %v1924, 0.0
  %v2023 = vmax.f32 %v1925, 0.0
  %v2024 = vmax.f32 %v1926, 0.0
  %v2025 = vmax.f32 %v1927, 0.0
  %v2026 = vmax.f32 %v1928, 0.0
  %v2027 = vmax.f32 %v1929, 0.0
  %v2028 = vmax.f32 %v1930, 0.0
  %v2029 = vmax.f32 %v1931, 0.0
  %v2030 = vmax.f32 %v1932, 0.0
  %v2031 = vmax.f32 %v1933, 0.0
  %v2032 = vmax.f32 %v1934, 0.0
  %v2033 = vmax.f32 %v1935, 0.0
  %v2034 = vmax.f32 %v1936, 0.0
  %v2035 = vmax.f32 %v1937, 0.0
  %v2036 = vmax.f32 %v1938, 0.0
  %v2037 = vmax.f32 %v1939, 0.0
  %v2038 = vmax.f32 %v1940, 0.0
  %v2039 = vmax.f32 %v1941, 0.0
  %v2040 = vmax.f32 %v1942, 0.0
  %v2041 = vmax.f32 %v1943, 0.0
  %v2042 = vmax.f32 %v1944, 0.0
  %v2043 = vmax.f32 %v1945, 0.0
  %v2044 = vmax.f32 %v1946, 0.0
  %v2045 = vmax.f32 %v1947, 0.0
  %v2046 = vmax.f32 %v1948, 0.0
  %v2047 = vmax.f32 %v1949, 0.0
  %v2048 = vmax.f32 %v1950, 0.0
  %v2049 = vmax.f32 %v1951, 0.0
  %v2050 = vmax.f32 %v1952, 0.0
  %v2051 = vmax.f32 %v1953, 0.0
  %v2052 = vmax.f32 %v1954, 0.0
  %v2053 = vmax.f32 %v1955, 0.0
  %v2054 = vmax.f32 %v1956, 0.0
  %v2055 = vmax.f32 %v1957, 0.0
  %v2056 = vmax.f32 %v1958, 0.0
  %v2057 = vmax.f32 %v1959, 0.0
  %v2058 = vmax.f32 %v1960, 0.0
  %v2059 = vmax.f32 %v1961, 0.0
  %v2060 = vmax.f32 %v1962, 0.0
  %v2061 = vmax.f32 %v1963, 0.0
  %v2062 = vmax.f32 %v1964, 0.0
  %v2063 = vmax.f32 %v1965, 0.0
  %v2064 = vmax.f32 %v1966, 0.0
  %v2065 = vmax.f32 %v1967, 0.0
  %v2066 = vmax.f32 %v1968, 0.0
  %v2067 = vmax.f32 %v1969, 0.0
  %v2068 = vmax.f32 %v1970, 0.0
  %v2069 = vmax.f32 %v1971, 0.0
  %v2070 = vmax.f32 %v1972, 0.0
  %v2071 = vmax.f32 %v1973, 0.0
  %v2072 = vmax.f32 %v1974, 0.0
  %v2073 = vmax.f32 %v1975, 0.0
  %v2074 = vmax.f32 %v1976, 0.0
  %v2075 = vmax.f32 %v1977, 0.0
  %v2076 = vmax.f32 %v1978, 0.0
  %v2077 = vmax.f32 %v1979, 0.0
  %v2078 = vmax.f32 %v1980, 0.0
  %v2079 = vmax.f32 %v1981, 0.0
  %v2080 = vmax.f32 %v1982, 0.0
  %v2081 = vmax.f32 %v1983, 0.0
  %v2082 = vmax.f32 %v1984, 0.0
  %v2083 = vmax.f32 %v1985, 0.0
  %v2084 = vmax.f32 %v1986, 0.0
  %v2085 = vmax.f32 %v1987, 0.0
  %v2086 = vmax.f32 %v1988, 0.0
  %v2087 = vmax.f32 %v1989, 0.0
  %v2088 = vmax.f32 %v1990, 0.0
  %v2089 = vmax.f32 %v1991, 0.0
  %v2090 = vmax.f32 %v1992, 0.0
  %v2091 = vmax.f32 %v1993, 0.0
  %v2092 = vmax.f32 %v1994, 0.0
  %v2093 = vmax.f32 %v1995, 0.0
  %v2094 = vmax.f32 %v1996, 0.0
  %v2095 = vmax.f32 %v1997, 0.0
  %v2096 = vmax.f32 %v1998, 0.0
  %v2097 = vmax.f32 %v1999, 0.0
  %v2098 = vmax.f32 %v2000, 0.0
  %v2099 = vmax.f32 %v2001, 0.0
  %v2100 = vmax.f32 %v2002, 0.0
  %v2101 = vmax.f32 %v2003, 0.0
  %v2102 = vmax.f32 %v2004, 0.0
  %v2103 = vmax.f32 %v2005, 0.0
  %v2104 = vmax.f32 %v2006, 0.0
  %v2105 = vmax.f32 %v2007, 0.0
  %v2106 = vmax.f32 %v2008, 0.0
  %v2107 = vmax.f32 %v2009, 0.0
  %v2108 = vmax.f32 %v2010, 0.0
  %v2109 = vmax.f32 %v2011, 0.0
  %v2110 = vmax.f32 %v2012, 0.0
  %v2111 = vmax.f32 %v2013, 0.0
  %2210 = vst [vmem:[#allocation1] ss:$9 sm:$0xff] %v2014
  %s2211 = scalar_lea.vmem [#allocation1], 1
  %2212 = vst [vmem:[%s2211] ss:$9 sm:$0xff] %v2015
  %s2213 = scalar_lea.vmem [#allocation1], 2
  %2214 = vst [vmem:[%s2213] ss:$9 sm:$0xff] %v2016
  %s2215 = scalar_lea.vmem [#allocation1], 3
  %2216 = vst [vmem:[%s2215] ss:$9 sm:$0xff] %v2017
  %s2217 = scalar_lea.vmem [#allocation1], 4
  %2218 = vst [vmem:[%s2217] ss:$9 sm:$0xff] %v2018
  %s2219 = scalar_lea.vmem [#allocation1], 5
  %2220 = vst [vmem:[%s2219] ss:$9 sm:$0xff] %v2019
  %s2221 = scalar_lea.vmem [#allocation1], 6
  %2222 = vst [vmem:[%s2221] ss:$9 sm:$0xff] %v2020
  %s2223 = scalar_lea.vmem [#allocation1], 7
  %2224 = vst [vmem:[%s2223] ss:$9 sm:$0xff] %v2021
  %v2225 = vld [vmem:[#allocation1] sm:$0xff]
  %2226 = vst [vmem:[#allocation1] ss:$9 sm:$0xff] %v2022
  %2227 = vst [vmem:[%s2211] ss:$9 sm:$0xff] %v2023
  %2228 = vst [vmem:[%s2213] ss:$9 sm:$0xff] %v2024
  %2229 = vst [vmem:[%s2215] ss:$9 sm:$0xff] %v2025
  %2230 = vst [vmem:[%s2217] ss:$9 sm:$0xff] %v2026
  %2231 = vst [vmem:[%s2219] ss:$9 sm:$0xff] %v2027
  %2232 = vst [vmem:[%s2221] ss:$9 sm:$0xff] %v2028
  %2233 = vst [vmem:[%s2223] ss:$9 sm:$0xff] %v2029
  %v2234 = vld [vmem:[#allocation1] sm:$0xff]
  %2235 = vst [vmem:[#allocation1] ss:$9 sm:$0xff] %v2030
  %2236 = vst [vmem:[%s2211] ss:$9 sm:$0xff] %v2031
  %2237 = vst [vmem:[%s2213] ss:$9 sm:$0xff] %v2032
  %2238 = vst [vmem:[%s2215] ss:$9 sm:$0xff] %v2033
  %2239 = vst [vmem:[%s2217] ss:$9 sm:$0xff] %v2034
  %2240 = vst [vmem:[%s2219] ss:$9 sm:$0xff] %v2035
  %2241 = vst [vmem:[%s2221] ss:$9 sm:$0xff] %v2036
  %2242 = vst [vmem:[%s2223] ss:$9 sm:$0xff] %v2037
  %v2243 = vld [vmem:[#allocation1] sm:$0xff]
  %2244 = vst [vmem:[#allocation1] ss:$9 sm:$0xff] %v2038
  %2245 = vst [vmem:[%s2211] ss:$9 sm:$0xff] %v2039
  %2246 = vst [vmem:[%s2213] ss:$9 sm:$0xff] %v2040
  %2247 = vst [vmem:[%s2215] ss:$9 sm:$0xff] %v2041
  %2248 = vst [vmem:[%s2217] ss:$9 sm:$0xff] %v2042
  %2249 = vst [vmem:[%s2219] ss:$9 sm:$0xff] %v2043
  %2250 = vst [vmem:[%s2221] ss:$9 sm:$0xff] %v2044
  %2251 = vst [vmem:[%s2223] ss:$9 sm:$0xff] %v2045
  %v2252 = vld [vmem:[#allocation1] sm:$0xff]
  %2253 = vst [vmem:[#allocation1] ss:$9 sm:$0xff] %v2046
  %2254 = vst [vmem:[%s2211] ss:$9 sm:$0xff] %v2047
  %2255 = vst [vmem:[%s2213] ss:$9 sm:$0xff] %v2048
  %2256 = vst [vmem:[%s2215] ss:$9 sm:$0xff] %v2049
  %2257 = vst [vmem:[%s2217] ss:$9 sm:$0xff] %v2050
  %2258 = vst [vmem:[%s2219] ss:$9 sm:$0xff] %v2051
  %2259 = vst [vmem:[%s2221] ss:$9 sm:$0xff] %v2052
  %2260 = vst [vmem:[%s2223] ss:$9 sm:$0xff] %v2053
  %v2261 = vld [vmem:[#allocation1] sm:$0xff]
  %2262 = vst [vmem:[#allocation1] ss:$9 sm:$0xff] %v2054
  %2263 = vst [vmem:[%s2211] ss:$9 sm:$0xff] %v2055
  %2264 = vst [vmem:[%s2213] ss:$9 sm:$0xff] %v2056
  %2265 = vst [vmem:[%s2215] ss:$9 sm:$0xff] %v2057
  %2266 = vst [vmem:[%s2217] ss:$9 sm:$0xff] %v2058
  %2267 = vst [vmem:[%s2219] ss:$9 sm:$0xff] %v2059
  %2268 = vst [vmem:[%s2221] ss:$9 sm:$0xff] %v2060
  %2269 = vst [vmem:[%s2223] ss:$9 sm:$0xff] %v2061
  %v2270 = vld [vmem:[#allocation1] sm:$0xff]
  %2271 = vst [vmem:[#allocation1] ss:$9 sm:$0xff] %v2062
  %v2272 = vld [vmem:[#allocation1] sm:$0xff]
  %2273 = vst [vmem:[#allocation1] ss:$9 sm:$0xff] %v2063
  %2274 = vst [vmem:[%s2211] ss:$9 sm:$0xff] %v2064
  %2275 = vst [vmem:[%s2213] ss:$9 sm:$0xff] %v2065
  %2276 = vst [vmem:[%s2215] ss:$9 sm:$0xff] %v2066
  %2277 = vst [vmem:[%s2217] ss:$9 sm:$0xff] %v2067
  %2278 = vst [vmem:[%s2219] ss:$9 sm:$0xff] %v2068
  %2279 = vst [vmem:[%s2221] ss:$9 sm:$0xff] %v2069
  %2280 = vst [vmem:[%s2223] ss:$9 sm:$0xff] %v2070
  %v2281 = vld [vmem:[#allocation1] sm:$0xff]
  %2282 = vst [vmem:[#allocation1] ss:$9 sm:$0xff] %v2071
  %2283 = vst [vmem:[%s2211] ss:$9 sm:$0xff] %v2072
  %2284 = vst [vmem:[%s2213] ss:$9 sm:$0xff] %v2073
  %2285 = vst [vmem:[%s2215] ss:$9 sm:$0xff] %v2074
  %2286 = vst [vmem:[%s2217] ss:$9 sm:$0xff] %v2075
  %2287 = vst [vmem:[%s2219] ss:$9 sm:$0xff] %v2076
  %2288 = vst [vmem:[%s2221] ss:$9 sm:$0xff] %v2077
  %2289 = vst [vmem:[%s2223] ss:$9 sm:$0xff] %v2078
  %v2290 = vld [vmem:[#allocation1] sm:$0xff]
  %2291 = vst [vmem:[#allocation1] ss:$9 sm:$0xff] %v2079
  %2292 = vst [vmem:[%s2211] ss:$9 sm:$0xff] %v2080
  %2293 = vst [vmem:[%s2213] ss:$9 sm:$0xff] %v2081
  %2294 = vst [vmem:[%s2215] ss:$9 sm:$0xff] %v2082
  %2295 = vst [vmem:[%s2217] ss:$9 sm:$0xff] %v2083
  %2296 = vst [vmem:[%s2219] ss:$9 sm:$0xff] %v2084
  %2297 = vst [vmem:[%s2221] ss:$9 sm:$0xff] %v2085
  %2298 = vst [vmem:[%s2223] ss:$9 sm:$0xff] %v2086
  %v2299 = vld [vmem:[#allocation1] sm:$0xff]
  %2300 = vst [vmem:[#allocation1] ss:$9 sm:$0xff] %v2087
  %2301 = vst [vmem:[%s2211] ss:$9 sm:$0xff] %v2088
  %2302 = vst [vmem:[%s2213] ss:$9 sm:$0xff] %v2089
  %2303 = vst [vmem:[%s2215] ss:$9 sm:$0xff] %v2090
  %2304 = vst [vmem:[%s2217] ss:$9 sm:$0xff] %v2091
  %2305 = vst [vmem:[%s2219] ss:$9 sm:$0xff] %v2092
  %2306 = vst [vmem:[%s2221] ss:$9 sm:$0xff] %v2093
  %2307 = vst [vmem:[%s2223] ss:$9 sm:$0xff] %v2094
  %v2308 = vld [vmem:[#allocation1] sm:$0xff]
  %2309 = vst [vmem:[#allocation1] ss:$9 sm:$0xff] %v2095
  %2310 = vst [vmem:[%s2211] ss:$9 sm:$0xff] %v2096
  %2311 = vst [vmem:[%s2213] ss:$9 sm:$0xff] %v2097
  %2312 = vst [vmem:[%s2215] ss:$9 sm:$0xff] %v2098
  %2313 = vst [vmem:[%s2217] ss:$9 sm:$0xff] %v2099
  %2314 = vst [vmem:[%s2219] ss:$9 sm:$0xff] %v2100
  %2315 = vst [vmem:[%s2221] ss:$9 sm:$0xff] %v2101
  %2316 = vst [vmem:[%s2223] ss:$9 sm:$0xff] %v2102
  %v2317 = vld [vmem:[#allocation1] sm:$0xff]
  %2318 = vst [vmem:[#allocation1] ss:$9 sm:$0xff] %v2103
  %2319 = vst [vmem:[%s2211] ss:$9 sm:$0xff] %v2104
  %2320 = vst [vmem:[%s2213] ss:$9 sm:$0xff] %v2105
  %2321 = vst [vmem:[%s2215] ss:$9 sm:$0xff] %v2106
  %2322 = vst [vmem:[%s2217] ss:$9 sm:$0xff] %v2107
  %2323 = vst [vmem:[%s2219] ss:$9 sm:$0xff] %v2108
  %2324 = vst [vmem:[%s2221] ss:$9 sm:$0xff] %v2109
  %2325 = vst [vmem:[%s2223] ss:$9 sm:$0xff] %v2110
  %v2326 = vld [vmem:[#allocation1] sm:$0xff]
  %2327 = vst [vmem:[#allocation1] ss:$9 sm:$0xff] %v2111
  %v2328 = vld [vmem:[#allocation1] sm:$0xff]
  %v2343 = vpack.c.bf16 %v2225, %v2225
  %v2344 = vpack.c.bf16 %v2234, %v2234
  %v2345 = vpack.c.bf16 %v2243, %v2243
  %v2346 = vpack.c.bf16 %v2252, %v2252
  %v2347 = vpack.c.bf16 %v2261, %v2261
  %v2348 = vpack.c.bf16 %v2270, %v2270
  %v2349 = vpack.c.bf16 %v2272, %v2272
  %v2350 = vpack.c.bf16 %v2281, %v2281
  %v2351 = vpack.c.bf16 %v2290, %v2290
  %v2352 = vpack.c.bf16 %v2299, %v2299
  %v2353 = vpack.c.bf16 %v2308, %v2308
  %v2354 = vpack.c.bf16 %v2317, %v2317
  %v2355 = vpack.c.bf16 %v2326, %v2326
  %v2356 = vpack.c.bf16 %v2328, %v2328
  %vm2357 = vcmask 125952
  %2358 = vst.msk [vmem:[%s3] sm:$0xf] %vm2357, %v2343
  %2359 = vst.msk [vmem:[%s3 + $0x4] sm:$0xf] %vm2357, %v2344
  %2360 = vst.msk [vmem:[%s3 + $0x8] sm:$0xf] %vm2357, %v2345
  %2361 = vst.msk [vmem:[%s3 + $0xc] sm:$0xf] %vm2357, %v2346
  %2362 = vst.msk [vmem:[%s3 + $0x10] sm:$0xf] %vm2357, %v2347
  %2363 = vst.msk [vmem:[%s3 + $0x14] sm:$0xf] %vm2357, %v2348
  %vm2364 = vcmask 122880
  %vm2365 = vsmask.f32 256
  %vm2366 = vmand %vm2364, %vm2365
  %v2367 = vld [vmem:[%s3 + $0x18] sm:$0x1]
  %v2368 = vsel %vm2366, %v2349, %v2367
  %2369 = vst [vmem:[%s3 + $0x18] sm:$0x1] %v2368
  %2370 = vst.msk [vmem:[%s3 + $0x1c] sm:$0xf] %vm2357, %v2350
  %2371 = vst.msk [vmem:[%s3 + $0x20] sm:$0xf] %vm2357, %v2351
  %2372 = vst.msk [vmem:[%s3 + $0x24] sm:$0xf] %vm2357, %v2352
  %2373 = vst.msk [vmem:[%s3 + $0x28] sm:$0xf] %vm2357, %v2353
  %2374 = vst.msk [vmem:[%s3 + $0x2c] sm:$0xf] %vm2357, %v2354
  %2375 = vst.msk [vmem:[%s3 + $0x30] sm:$0xf] %vm2357, %v2355
  %v2376 = vld [vmem:[%s3 + $0x34] sm:$0x1]
  %v2377 = vsel %vm2366, %v2356, %v2376
  %2378 = vst [vmem:[%s3 + $0x34] sm:$0x1] %v2377
  // Predicated region
  $region14: #{forward.2} parent=0 // pred_check
    _
  $region15: #{forward.2} parent=0 // pred_check_branch
    %2380 = sbr.rel (0) target = $region17
  $region16: #{forward.2} parent=0 // pred_region
    _
  $region17: #{forward.2} parent=0 // pred_fallthru
    _
  // Predicated region
  $region18: #{forward.2} parent=0 // pred_check
    _
  $region19: #{forward.2} parent=0 // pred_check_branch
    %2382 = sbr.rel (0) target = $region21
  $region20: #{forward.2} parent=0 // pred_region
    _
  $region21: #{forward.2} parent=0 // pred_fallthru
    _

// kernel: forward.3
$region0: #{forward.3}
  #allocation0 [shape = 'u32[]', space=smem, size = 0x4, offset = 0x4, fixed_abs, tag = 'smem constant byte address 0x4 - core index']
  #allocation1 [shape = 'u32[72,128]{1,0:T(1,128)}', space=vmem, size = 0x9000, scoped, tag = 'internal scratch']
  %s0 = inlined_call_operand.vmem [shape: bf16[2,36,144], index: 0, kind: input, shape index: {}]
  %s1 = inlined_call_operand.vmem [shape: bf16[144,32], index: 1, kind: input, shape index: {}]
  %s2 = inlined_call_operand.vmem [shape: f32[1,32], index: 2, kind: input, shape index: {}]
  %s3 = inlined_call_operand.vmem [shape: bf16[9,32,500], index: 3, kind: input, shape index: {}]
  %s4 = inlined_call_operand.vmem [shape: f32[1,500], index: 4, kind: input, shape index: {}]
  %s5 = inlined_call_operand.vmem [shape: bf16[500,50], index: 5, kind: input, shape index: {}]
  %s6 = inlined_call_operand.vmem [shape: f32[1,50], index: 6, kind: input, shape index: {}]
  %s7 = inlined_call_operand.vmem [shape: bf16[50,10], index: 7, kind: input, shape index: {}]
  %s8 = inlined_call_operand.vmem [shape: f32[1,10], index: 8, kind: input, shape index: {}]
  %s9 = inlined_call_operand.hbm [shape: f32[2,10], index: 9, kind: output, shape index: {}]
  %s10 = sld [smem:[#allocation0]]
  $region46: #{forward.3} parent=0
    _
  %s12 = ssub.s32 1, %s10
  %s13 = scalar_select 0, %s12, %s10
  $region1: #{forward.3} parent=0
    #allocation2 [shape = 'u8[1024]{0}', space=vmem, size = 0x400, scoped, tag = 'output window, operand 0, single buffered']
    #allocation3 [shape = 's32[1]{0}', space=sflag, size = 0x4, scoped, tag = 'scoped memory for forward.3']
    %14 = vsyncpa [#allocation3], 0
    // Predicated region
    $region2: #{forward.3} parent=1 // pred_check
      _
    $region3: #{forward.3} parent=1 // pred_check_branch
      %16 = sbr.rel (0) target = $region5
    $region4: #{forward.3} parent=1 // pred_region
      _
    $region5: #{forward.3} parent=1 // pred_fallthru
      _
    // Predicated region
    $region6: #{forward.3} parent=1 // pred_check
      _
    $region7: #{forward.3} parent=1 // pred_check_branch
      %18 = sbr.rel (0) target = $region9
    $region8: #{forward.3} parent=1 // pred_region
      _
    $region9: #{forward.3} parent=1 // pred_fallthru
      _
    // Predicated region
    $region10: #{forward.3} parent=1 // pred_check
      _
    $region11: #{forward.3} parent=1 // pred_check_branch
      %20 = sbr.rel (0) target = $region13
    $region12: #{forward.3} parent=1 // pred_region
      _
    $region13: #{forward.3} parent=1 // pred_fallthru
      _
    // Predicated region
    $region14: #{forward.3} parent=1 // pred_check
      _
    $region15: #{forward.3} parent=1 // pred_check_branch
      %22 = sbr.rel (0) target = $region17
    $region16: #{forward.3} parent=1 // pred_region
      _
    $region17: #{forward.3} parent=1 // pred_fallthru
      _
    // Predicated region
    $region18: #{forward.3} parent=1 // pred_check
      _
    $region19: #{forward.3} parent=1 // pred_check_branch
      %24 = sbr.rel (0) target = $region21
    $region20: #{forward.3} parent=1 // pred_region
      _
    $region21: #{forward.3} parent=1 // pred_fallthru
      _
    // Predicated region
    $region22: #{forward.3} parent=1 // pred_check
      _
    $region23: #{forward.3} parent=1 // pred_check_branch
      %26 = sbr.rel (0) target = $region25
    $region24: #{forward.3} parent=1 // pred_region
      _
    $region25: #{forward.3} parent=1 // pred_fallthru
      _
    // Predicated region
    $region26: #{forward.3} parent=1 // pred_check
      _
    $region27: #{forward.3} parent=1 // pred_check_branch
      %28 = sbr.rel (0) target = $region29
    $region28: #{forward.3} parent=1 // pred_region
      _
    $region29: #{forward.3} parent=1 // pred_fallthru
      _
    // Predicated region
    $region30: #{forward.3} parent=1 // pred_check
      _
    $region31: #{forward.3} parent=1 // pred_check_branch
      %30 = sbr.rel (0) target = $region33
    $region32: #{forward.3} parent=1 // pred_region
      _
    $region33: #{forward.3} parent=1 // pred_fallthru
      _
    // Predicated region
    $region34: #{forward.3} parent=1 // pred_check
      _
    $region35: #{forward.3} parent=1 // pred_check_branch
      %32 = sbr.rel (0) target = $region37
    $region36: #{forward.3} parent=1 // pred_region
      _
    $region37: #{forward.3} parent=1 // pred_fallthru
      _
    %v34 = vld [vmem:[%s0] sm:$0xff]
    %v35 = vld [vmem:[%s0 + $0x8] sm:$0xff]
    %v36 = vld [vmem:[%s0 + $0x10] sm:$0xff]
    %v37 = vld [vmem:[%s0 + $0x18] sm:$0xff]
    %v38 = vld [vmem:[%s0 + $0x20] sm:$0x33]
    %v39 = vld [vmem:[%s0 + $0x28] sm:$0xff]
    %v40 = vld [vmem:[%s0 + $0x30] sm:$0xff]
    %v41 = vld [vmem:[%s0 + $0x38] sm:$0xff]
    %v42 = vld [vmem:[%s0 + $0x40] sm:$0xff]
    %v43 = vld [vmem:[%s0 + $0x48] sm:$0x33]
    %v54 = vrot.slane %v34, 2
    %v55 = vrot.slane %v35, 2
    %v56 = vrot.slane %v36, 2
    %v57 = vrot.slane %v37, 2
    %v58 = vrot.slane %v38, 2
    %v59 = vrot.slane %v39, 2
    %v60 = vrot.slane %v40, 2
    %v61 = vrot.slane %v41, 2
    %v62 = vrot.slane %v42, 2
    %v63 = vrot.slane %v43, 2
    %vm64 = vcmask 1041408
    %v67 = vsel %vm64, %v34, %v54
    %vm68 = vcmask 1043458
    %v69 = vsel %vm68, %v34, %v54
    %v71 = vrot.slane %v69, 2
    %v74 = vsel %vm64, %v35, %v55
    %v75 = vsel %vm68, %v35, %v55
    %v77 = vrot.slane %v75, 2
    %v80 = vsel %vm64, %v36, %v56
    %v81 = vsel %vm68, %v36, %v56
    %v83 = vrot.slane %v81, 2
    %v86 = vsel %vm64, %v37, %v57
    %v87 = vsel %vm68, %v37, %v57
    %v89 = vrot.slane %v87, 2
    %v92 = vsel %vm64, %v38, %v58
    %v95 = vsel %vm64, %v39, %v59
    %v96 = vsel %vm68, %v39, %v59
    %v98 = vrot.slane %v96, 2
    %v101 = vsel %vm64, %v40, %v60
    %v102 = vsel %vm68, %v40, %v60
    %v104 = vrot.slane %v102, 2
    %v107 = vsel %vm64, %v41, %v61
    %v108 = vsel %vm68, %v41, %v61
    %v110 = vrot.slane %v108, 2
    %v113 = vsel %vm64, %v42, %v62
    %v114 = vsel %vm68, %v42, %v62
    %v116 = vrot.slane %v114, 2
    %v119 = vsel %vm64, %v43, %v63
    %v120 = vld [vmem:[%s1] sm:$0xf]
    %v121 = vld [vmem:[%s1 + $0x4] sm:$0xf]
    %v122 = vld [vmem:[%s1 + $0x8] sm:$0xf]
    %v123 = vld [vmem:[%s1 + $0xc] sm:$0xf]
    %v124 = vld [vmem:[%s1 + $0x10] sm:$0xf]
    %v125 = vld [vmem:[%s1 + $0x14] sm:$0xf]
    %v126 = vld [vmem:[%s1 + $0x18] sm:$0xf]
    %v127 = vld [vmem:[%s1 + $0x1c] sm:$0xf]
    %v128 = vld [vmem:[%s1 + $0x20] sm:$0xf]
    %v129 = vld [vmem:[%s1 + $0x24] sm:$0xf]
    %v130 = vld [vmem:[%s1 + $0x28] sm:$0xf]
    %v131 = vld [vmem:[%s1 + $0x2c] sm:$0xf]
    %v132 = vld [vmem:[%s1 + $0x30] sm:$0xf]
    %v133 = vld [vmem:[%s1 + $0x34] sm:$0xf]
    %v134 = vld [vmem:[%s1 + $0x38] sm:$0xf]
    %v135 = vld [vmem:[%s1 + $0x3c] sm:$0xf]
    %v136 = vld [vmem:[%s1 + $0x40] sm:$0xf]
    %v137 = vld [vmem:[%s1 + $0x44] sm:$0xf]
    %138 = vst [vmem:[#allocation1] ss:$4 sm:$0xff] %v67
    %s140 = scalar_lea.vmem [#allocation1], 1
    %141 = vst [vmem:[%s140] ss:$4 sm:$0xff] %v71
    %s142 = scalar_lea.vmem [#allocation1], 2
    %143 = vst [vmem:[%s142] ss:$4 sm:$0xff] %v74
    %s145 = scalar_lea.vmem [#allocation1], 3
    %146 = vst [vmem:[%s145] ss:$4 sm:$0xff] %v77
    %s147 = scalar_lea.vmem [#allocation1], 32
    %148 = vst [vmem:[%s147] ss:$4 sm:$0xff] %v80
    %s150 = scalar_lea.vmem [#allocation1], 33
    %151 = vst [vmem:[%s150] ss:$4 sm:$0xff] %v83
    %s152 = scalar_lea.vmem [#allocation1], 34
    %153 = vst [vmem:[%s152] ss:$4 sm:$0xff] %v86
    %s155 = scalar_lea.vmem [#allocation1], 35
    %156 = vst [vmem:[%s155] ss:$4 sm:$0xff] %v89
    %v157 = vld.sshfl [vmem:[#allocation1] sm:$0xff pattern:$0x73625140]
    %v158 = vld.sshfl [vmem:[#allocation1 + $0x8] sm:$0xff pattern:$0x73625140]
    %v159 = vld.sshfl [vmem:[#allocation1 + $0x20] sm:$0xff pattern:$0x73625140]
    %v160 = vld.sshfl [vmem:[#allocation1 + $0x28] sm:$0xff pattern:$0x73625140]
    %161 = vst [vmem:[#allocation1] ss:$4 sm:$0xff] %v92
    %162 = vst [vmem:[%s140] ss:$4 sm:$0xff] %v95
    %164 = vst [vmem:[%s142] ss:$4 sm:$0xff] %v98
    %165 = vst [vmem:[%s145] ss:$4 sm:$0xff] %v101
    %167 = vst [vmem:[%s147] ss:$4 sm:$0xff] %v104
    %168 = vst [vmem:[%s150] ss:$4 sm:$0xff] %v107
    %170 = vst [vmem:[%s152] ss:$4 sm:$0xff] %v110
    %171 = vst [vmem:[%s155] ss:$4 sm:$0xff] %v113
    %v172 = vld.sshfl [vmem:[#allocation1] sm:$0xff pattern:$0x73625140]
    %v173 = vld.sshfl [vmem:[#allocation1 + $0x8] sm:$0xff pattern:$0x73625140]
    %v174 = vld.sshfl [vmem:[#allocation1 + $0x20] sm:$0xff pattern:$0x73625140]
    %v175 = vld.sshfl [vmem:[#allocation1 + $0x28] sm:$0xff pattern:$0x73625140]
    %177 = vst [vmem:[#allocation1] ss:$4 sm:$0xff] %v116
    %178 = vst [vmem:[%s140] ss:$4 sm:$0xff] %v119
    %v179 = vld.sshfl [vmem:[#allocation1] sm:$0xff pattern:$0x73625140]
    %v180 = vld.sshfl [vmem:[#allocation1 + $0x8] sm:$0xff pattern:$0x73625140]
    %v204 = vunpack.c.l.b16 %v120
    %v205 = vunpack.c.l.b16 %v121
    %v206 = vunpack.c.l.b16 %v122
    %v207 = vunpack.c.l.b16 %v123
    %v208 = vunpack.c.l.b16 %v124
    %v209 = vunpack.c.l.b16 %v125
    %v210 = vunpack.c.l.b16 %v126
    %v211 = vunpack.c.l.b16 %v127
    %v212 = vunpack.c.l.b16 %v128
    %v213 = vunpack.c.l.b16 %v129
    %v214 = vunpack.c.l.b16 %v130
    %v215 = vunpack.c.l.b16 %v131
    %v216 = vunpack.c.l.b16 %v132
    %v217 = vunpack.c.l.b16 %v133
    %v218 = vunpack.c.l.b16 %v134
    %v219 = vunpack.c.l.b16 %v135
    %v220 = vunpack.c.l.b16 %v136
    %v221 = vunpack.c.l.b16 %v137
    %v222 = vpack.c.b16 %v205, %v204
    %v223 = vpack.c.b16 %v207, %v206
    %v224 = vpack.c.b16 %v209, %v208
    %v225 = vpack.c.b16 %v211, %v210
    %v226 = vpack.c.b16 %v213, %v212
    %v227 = vpack.c.b16 %v215, %v214
    %v228 = vpack.c.b16 %v217, %v216
    %v229 = vpack.c.b16 %v219, %v218
    %v230 = vpack.c.b16 %v221, %v220
    %vm240 = vcmask 130048
    %v241 = vsel %vm240, %v158, 0
    %v243 = vsel %vm240, %v160, 0
    %v245 = vsel %vm240, %v173, 0
    %v247 = vsel %vm240, %v175, 0
    %v249 = vsel %vm240, %v180, 0
    %251 = vmatpush.bf16.msra.mxu0 %v229
    %252 = vmatpush.bf16.msra.mxu0 %v228
    %253 = vmatpush.bf16.msra.mxu0 %v227
    %254 = vmatpush.bf16.msra.mxu0 %v226
    %255 = vmatpush.bf16.msra.mxu0 %v225
    %256 = vmatpush.bf16.msra.mxu0 %v224
    %257 = vmatpush.bf16.msra.mxu0 %v223
    %258 = vmatpush.bf16.msra.mxu0 %v222
    %259 = vmatmul.bf16.gmra.mxu0 %v157
    %v260 = vpop.f32.mrf.mxu0
    %v261 = vadd.f32 0.0, %v260
    %v262 = vpop.f32.mrf.mxu0
    %v263 = vadd.f32 0.0, %v262
    %264 = vmatmul.bf16.gmra.mxu0 %v159
    %v265 = vpop.f32.mrf.mxu0
    %v266 = vadd.f32 0.0, %v265
    %v267 = vpop.f32.mrf.mxu0
    %v268 = vadd.f32 0.0, %v267
    %269 = vmatmul.bf16.gmra.mxu0 %v172
    %v270 = vpop.f32.mrf.mxu0
    %v271 = vadd.f32 0.0, %v270
    %v272 = vpop.f32.mrf.mxu0
    %v273 = vadd.f32 0.0, %v272
    %274 = vmatmul.bf16.gmra.mxu0 %v174
    %v275 = vpop.f32.mrf.mxu0
    %v276 = vadd.f32 0.0, %v275
    %v277 = vpop.f32.mrf.mxu0
    %v278 = vadd.f32 0.0, %v277
    %279 = vmatmul.bf16.gmra.mxu0 %v179
    %v280 = vpop.f32.mrf.mxu0
    %v281 = vadd.f32 0.0, %v280
    %v282 = vpop.f32.mrf.mxu0
    %283 = vdwg.mxu0
    %284 = vmatpush.bf16.msra.mxu0 0
    %285 = vmatpush.bf16.msra.mxu0 0
    %286 = vmatpush.bf16.msra.mxu0 0
    %287 = vmatpush.bf16.msra.mxu0 0
    %288 = vmatpush.bf16.msra.mxu0 0
    %289 = vmatpush.bf16.msra.mxu0 0
    %290 = vmatpush.bf16.msra.mxu0 0
    %291 = vmatpush.bf16.msra.mxu0 %v230
    %292 = vmatmul.bf16.gmra.mxu0 %v241
    %v293 = vpop.f32.mrf.mxu0
    %v294 = vadd.f32 %v261, %v293
    %v295 = vpop.f32.mrf.mxu0
    %v296 = vadd.f32 %v263, %v295
    %297 = vmatmul.bf16.gmra.mxu0 %v243
    %v298 = vpop.f32.mrf.mxu0
    %v299 = vadd.f32 %v266, %v298
    %v300 = vpop.f32.mrf.mxu0
    %v301 = vadd.f32 %v268, %v300
    %302 = vmatmul.bf16.gmra.mxu0 %v245
    %v303 = vpop.f32.mrf.mxu0
    %v304 = vadd.f32 %v271, %v303
    %v305 = vpop.f32.mrf.mxu0
    %v306 = vadd.f32 %v273, %v305
    %307 = vmatmul.bf16.gmra.mxu0 %v247
    %v308 = vpop.f32.mrf.mxu0
    %v309 = vadd.f32 %v276, %v308
    %v310 = vpop.f32.mrf.mxu0
    %v311 = vadd.f32 %v278, %v310
    %312 = vmatmul.bf16.gmra.mxu0 %v249
    %v313 = vpop.f32.mrf.mxu0
    %v314 = vadd.f32 %v281, %v313
    %v315 = vpop.f32.mrf.mxu0
    %316 = vdwg.mxu0
    %v326 = vrot.slane %v294, 1
    %v327 = vrot.slane %v294, 2
    %v328 = vrot.slane %v294, 3
    %v329 = vrot.slane %v294, 4
    %v330 = vrot.slane %v294, 5
    %v331 = vrot.slane %v294, 6
    %v332 = vrot.slane %v294, 7
    %v333 = vrot.slane %v296, 1
    %v334 = vrot.slane %v296, 2
    %v335 = vrot.slane %v296, 3
    %v336 = vrot.slane %v296, 4
    %v337 = vrot.slane %v296, 5
    %v338 = vrot.slane %v296, 6
    %v339 = vrot.slane %v296, 7
    %v340 = vrot.slane %v299, 1
    %v341 = vrot.slane %v299, 2
    %v342 = vrot.slane %v299, 3
    %v343 = vrot.slane %v299, 4
    %v344 = vrot.slane %v299, 5
    %v345 = vrot.slane %v299, 6
    %v346 = vrot.slane %v299, 7
    %v347 = vrot.slane %v301, 1
    %v348 = vrot.slane %v301, 2
    %v349 = vrot.slane %v301, 3
    %v350 = vrot.slane %v301, 4
    %v351 = vrot.slane %v301, 5
    %v352 = vrot.slane %v301, 6
    %v353 = vrot.slane %v301, 7
    %v354 = vrot.slane %v304, 1
    %v355 = vrot.slane %v304, 2
    %v356 = vrot.slane %v304, 3
    %v357 = vrot.slane %v304, 4
    %v358 = vrot.slane %v304, 5
    %v359 = vrot.slane %v304, 6
    %v360 = vrot.slane %v304, 7
    %v361 = vrot.slane %v306, 1
    %v362 = vrot.slane %v306, 2
    %v363 = vrot.slane %v306, 3
    %v364 = vrot.slane %v306, 4
    %v365 = vrot.slane %v306, 5
    %v366 = vrot.slane %v306, 6
    %v367 = vrot.slane %v306, 7
    %v368 = vrot.slane %v309, 1
    %v369 = vrot.slane %v309, 2
    %v370 = vrot.slane %v309, 3
    %v371 = vrot.slane %v309, 4
    %v372 = vrot.slane %v309, 5
    %v373 = vrot.slane %v309, 6
    %v374 = vrot.slane %v309, 7
    %v375 = vrot.slane %v311, 1
    %v376 = vrot.slane %v311, 2
    %v377 = vrot.slane %v311, 3
    %v378 = vrot.slane %v311, 4
    %v379 = vrot.slane %v311, 5
    %v380 = vrot.slane %v311, 6
    %v381 = vrot.slane %v311, 7
    %v382 = vrot.slane %v314, 1
    %v383 = vrot.slane %v314, 2
    %v384 = vrot.slane %v314, 3
    %v385 = vrot.slane %v314, 4
    %v386 = vrot.slane %v314, 5
    %v387 = vrot.slane %v314, 6
    %v388 = vrot.slane %v314, 7
    %v452 = vmax.f32 %v294, %v333
    %v453 = vmax.f32 %v326, %v334
    %v454 = vmax.f32 %v327, %v335
    %v455 = vmax.f32 %v328, %v336
    %v456 = vmax.f32 %v329, %v337
    %v457 = vmax.f32 %v330, %v338
    %v458 = vmax.f32 %v331, %v339
    %v459 = vmax.f32 %v332, %v299
    %v460 = vmax.f32 %v296, %v340
    %v461 = vmax.f32 %v357, %v365
    %v462 = vmax.f32 %v358, %v366
    %v463 = vmax.f32 %v359, %v367
    %v464 = vmax.f32 %v360, %v309
    %v465 = vmax.f32 %v306, %v368
    %v466 = vmax.f32 %v361, %v369
    %v467 = vmax.f32 %v362, %v370
    %v468 = vmax.f32 %v363, %v371
    %v469 = vmax.f32 %v364, %v372
    %v470 = vmax.f32 %v341, %v349
    %v471 = vmax.f32 %v342, %v350
    %v472 = vmax.f32 %v343, %v351
    %v473 = vmax.f32 %v344, %v352
    %v474 = vmax.f32 %v345, %v353
    %v475 = vmax.f32 %v346, %v304
    %v476 = vmax.f32 %v301, %v354
    %v477 = vmax.f32 %v347, %v355
    %v478 = vmax.f32 %v348, %v356
    %v479 = vmax.f32 %v373, %v381
    %v480 = vmax.f32 %v374, %v314
    %v481 = vmax.f32 %v311, %v382
    %v482 = vmax.f32 %v375, %v383
    %v483 = vmax.f32 %v376, %v384
    %v484 = vmax.f32 %v377, %v385
    %v485 = vmax.f32 %v378, %v386
    %v486 = vmax.f32 %v379, %v387
    %v487 = vmax.f32 %v380, %v388
    %v488 = vmax.f32 %v452, %v470
    %v489 = vmax.f32 %v453, %v471
    %v490 = vmax.f32 %v454, %v472
    %v491 = vmax.f32 %v455, %v473
    %v492 = vmax.f32 %v456, %v474
    %v493 = vmax.f32 %v457, %v475
    %v494 = vmax.f32 %v458, %v476
    %v495 = vmax.f32 %v459, %v477
    %v496 = vmax.f32 %v460, %v478
    %v497 = vmax.f32 %v461, %v479
    %v498 = vmax.f32 %v462, %v480
    %v499 = vmax.f32 %v463, %v481
    %v500 = vmax.f32 %v464, %v482
    %v501 = vmax.f32 %v465, %v483
    %v502 = vmax.f32 %v466, %v484
    %v503 = vmax.f32 %v467, %v485
    %v504 = vmax.f32 %v468, %v486
    %v505 = vmax.f32 %v469, %v487
    %v506 = vld [vmem:[%s2] sm:$0x1]
    %v508 = vperm.slane %v506, 0
    %v510 = vrot.slane %v508, 1
    %v511 = vrot.slane %v508, 2
    %v512 = vrot.slane %v508, 3
    %v513 = vrot.slane %v508, 4
    %v514 = vrot.slane %v508, 5
    %v515 = vrot.slane %v508, 6
    %v516 = vrot.slane %v508, 7
    %v524 = vadd.f32 %v488, %v508
    %v525 = vadd.f32 %v489, %v510
    %v526 = vadd.f32 %v490, %v511
    %v527 = vadd.f32 %v491, %v512
    %v528 = vadd.f32 %v492, %v513
    %v529 = vadd.f32 %v493, %v514
    %v530 = vadd.f32 %v494, %v515
    %v531 = vadd.f32 %v495, %v516
    %v532 = vadd.f32 %v496, %v508
    %v533 = vadd.f32 %v497, %v508
    %v534 = vadd.f32 %v498, %v510
    %v535 = vadd.f32 %v499, %v511
    %v536 = vadd.f32 %v500, %v512
    %v537 = vadd.f32 %v501, %v513
    %v538 = vadd.f32 %v502, %v514
    %v539 = vadd.f32 %v503, %v515
    %v540 = vadd.f32 %v504, %v516
    %v541 = vadd.f32 %v505, %v508
    %v542 = vmax.f32 %v524, 0.0
    %v543 = vmax.f32 %v525, 0.0
    %v544 = vmax.f32 %v526, 0.0
    %v545 = vmax.f32 %v527, 0.0
    %v546 = vmax.f32 %v528, 0.0
    %v547 = vmax.f32 %v529, 0.0
    %v548 = vmax.f32 %v530, 0.0
    %v549 = vmax.f32 %v531, 0.0
    %v550 = vmax.f32 %v532, 0.0
    %v551 = vmax.f32 %v533, 0.0
    %v552 = vmax.f32 %v534, 0.0
    %v553 = vmax.f32 %v535, 0.0
    %v554 = vmax.f32 %v536, 0.0
    %v555 = vmax.f32 %v537, 0.0
    %v556 = vmax.f32 %v538, 0.0
    %v557 = vmax.f32 %v539, 0.0
    %v558 = vmax.f32 %v540, 0.0
    %v559 = vmax.f32 %v541, 0.0
    %578 = vst [vmem:[#allocation1] ss:$9 sm:$0xff] %v542
    %s579 = scalar_lea.vmem [#allocation1], 1
    %580 = vst [vmem:[%s579] ss:$9 sm:$0xff] %v543
    %s581 = scalar_lea.vmem [#allocation1], 2
    %582 = vst [vmem:[%s581] ss:$9 sm:$0xff] %v544
    %s583 = scalar_lea.vmem [#allocation1], 3
    %584 = vst [vmem:[%s583] ss:$9 sm:$0xff] %v545
    %s585 = scalar_lea.vmem [#allocation1], 4
    %586 = vst [vmem:[%s585] ss:$9 sm:$0xff] %v546
    %s587 = scalar_lea.vmem [#allocation1], 5
    %588 = vst [vmem:[%s587] ss:$9 sm:$0xff] %v547
    %s589 = scalar_lea.vmem [#allocation1], 6
    %590 = vst [vmem:[%s589] ss:$9 sm:$0xff] %v548
    %s591 = scalar_lea.vmem [#allocation1], 7
    %592 = vst [vmem:[%s591] ss:$9 sm:$0xff] %v549
    %v593 = vld [vmem:[#allocation1] sm:$0xff]
    %594 = vst [vmem:[#allocation1] ss:$9 sm:$0xff] %v550
    %v595 = vld [vmem:[#allocation1] sm:$0xff]
    %596 = vst [vmem:[#allocation1] ss:$9 sm:$0xff] %v551
    %597 = vst [vmem:[%s579] ss:$9 sm:$0xff] %v552
    %598 = vst [vmem:[%s581] ss:$9 sm:$0xff] %v553
    %599 = vst [vmem:[%s583] ss:$9 sm:$0xff] %v554
    %600 = vst [vmem:[%s585] ss:$9 sm:$0xff] %v555
    %601 = vst [vmem:[%s587] ss:$9 sm:$0xff] %v556
    %602 = vst [vmem:[%s589] ss:$9 sm:$0xff] %v557
    %603 = vst [vmem:[%s591] ss:$9 sm:$0xff] %v558
    %v604 = vld [vmem:[#allocation1] sm:$0xff]
    %605 = vst [vmem:[#allocation1] ss:$9 sm:$0xff] %v559
    %v606 = vld [vmem:[#allocation1] sm:$0xff]
    %v611 = vpack.c.bf16 %v593, %v593
    %v612 = vpack.c.bf16 %v595, %v595
    %v613 = vpack.c.bf16 %v604, %v604
    %v614 = vpack.c.bf16 %v606, %v606
    %v615 = vld [vmem:[%s3] sm:$0xff]
    %v616 = vld [vmem:[%s3 + $0x8] sm:$0xff]
    %v617 = vld [vmem:[%s3 + $0x10] sm:$0xff]
    %v618 = vld [vmem:[%s3 + $0x18] sm:$0xff]
    %v619 = vld [vmem:[%s3 + $0x20] sm:$0xff]
    %v620 = vld [vmem:[%s3 + $0x28] sm:$0xff]
    %v621 = vld [vmem:[%s3 + $0x30] sm:$0xff]
    %v622 = vld [vmem:[%s3 + $0x38] sm:$0xff]
    %s623 = scalar_lea.vmem %s3, 64
    %v624 = vld [vmem:[%s623] sm:$0xff]
    %v625 = vld [vmem:[%s623 + $0x8] sm:$0xff]
    %v626 = vld [vmem:[%s623 + $0x10] sm:$0xff]
    %v627 = vld [vmem:[%s623 + $0x18] sm:$0xff]
    %v628 = vld [vmem:[%s623 + $0x20] sm:$0xff]
    %v629 = vld [vmem:[%s623 + $0x28] sm:$0xff]
    %v630 = vld [vmem:[%s623 + $0x30] sm:$0xff]
    %v631 = vld [vmem:[%s623 + $0x38] sm:$0xff]
    %v634 = vunpack.c.l.b16 %v611
    %v635 = vunpack.c.l.b16 %v613
    %v636 = vpack.c.b16 %v634, %v634
    %v637 = vpack.c.b16 %v635, %v635
    %v638 = vunpack.c.l.b16 %v636
    %v639 = vunpack.c.l.b16 %v637
    %v640 = vrot.slane %v638, 1
    %vm641 = vcmask 1041409
    %v642 = vsel %vm641, %v639, %v640
    %v643 = vpack.c.b16 %v642, %v642
    %v652 = vunpack.c.l.b16 %v624
    %v653 = vunpack.c.h.b16 %v624
    %v654 = vunpack.c.l.b16 %v625
    %v655 = vunpack.c.h.b16 %v625
    %v656 = vunpack.c.l.b16 %v626
    %v657 = vunpack.c.h.b16 %v626
    %v658 = vunpack.c.l.b16 %v627
    %v659 = vunpack.c.h.b16 %v627
    %v660 = vunpack.c.l.b16 %v628
    %v661 = vunpack.c.h.b16 %v628
    %v662 = vunpack.c.l.b16 %v629
    %v663 = vunpack.c.h.b16 %v629
    %v664 = vunpack.c.l.b16 %v630
    %v665 = vunpack.c.h.b16 %v630
    %v666 = vunpack.c.l.b16 %v631
    %v667 = vunpack.c.h.b16 %v631
    %v668 = vpack.c.b16 %v656, %v652
    %v669 = vpack.c.b16 %v657, %v653
    %v670 = vpack.c.b16 %v658, %v654
    %v671 = vpack.c.b16 %v659, %v655
    %v672 = vpack.c.b16 %v664, %v660
    %v673 = vpack.c.b16 %v665, %v661
    %v674 = vpack.c.b16 %v666, %v662
    %v675 = vpack.c.b16 %v667, %v663
    %vm684 = vcmask 261120
    %v686 = vsel %vm684, %v643, 0
    %688 = vmatpush.bf16.msra.mxu0 0
    %689 = vmatpush.bf16.msra.mxu0 0
    %690 = vmatpush.bf16.msra.mxu0 0
    %691 = vmatpush.bf16.msra.mxu0 0
    %692 = vmatpush.bf16.msra.mxu0 0
    %693 = vmatpush.bf16.msra.mxu0 0
    %694 = vmatpush.bf16.msra.mxu0 %v672
    %695 = vmatpush.bf16.msra.mxu0 %v668
    %696 = vmatmul.bf16.gmra.mxu0 %v686
    %v697 = vpop.f32.mrf.mxu0
    %v698 = vadd.f32 0.0, %v697
    %v699 = vpop.f32.mrf.mxu0
    %700 = vdwg.mxu0
    %701 = vmatpush.bf16.msra.mxu0 0
    %702 = vmatpush.bf16.msra.mxu0 0
    %703 = vmatpush.bf16.msra.mxu0 0
    %704 = vmatpush.bf16.msra.mxu0 0
    %705 = vmatpush.bf16.msra.mxu0 0
    %706 = vmatpush.bf16.msra.mxu0 0
    %707 = vmatpush.bf16.msra.mxu0 %v673
    %708 = vmatpush.bf16.msra.mxu0 %v669
    %709 = vmatmul.bf16.gmra.mxu0 %v686
    %v710 = vpop.f32.mrf.mxu0
    %v711 = vadd.f32 0.0, %v710
    %v712 = vpop.f32.mrf.mxu0
    %713 = vdwg.mxu0
    %714 = vmatpush.bf16.msra.mxu0 0
    %715 = vmatpush.bf16.msra.mxu0 0
    %716 = vmatpush.bf16.msra.mxu0 0
    %717 = vmatpush.bf16.msra.mxu0 0
    %718 = vmatpush.bf16.msra.mxu0 0
    %719 = vmatpush.bf16.msra.mxu0 0
    %720 = vmatpush.bf16.msra.mxu0 %v674
    %721 = vmatpush.bf16.msra.mxu0 %v670
    %722 = vmatmul.bf16.gmra.mxu0 %v686
    %v723 = vpop.f32.mrf.mxu0
    %v724 = vadd.f32 0.0, %v723
    %v725 = vpop.f32.mrf.mxu0
    %726 = vdwg.mxu0
    %727 = vmatpush.bf16.msra.mxu0 0
    %728 = vmatpush.bf16.msra.mxu0 0
    %729 = vmatpush.bf16.msra.mxu0 0
    %730 = vmatpush.bf16.msra.mxu0 0
    %731 = vmatpush.bf16.msra.mxu0 0
    %732 = vmatpush.bf16.msra.mxu0 0
    %733 = vmatpush.bf16.msra.mxu0 %v675
    %734 = vmatpush.bf16.msra.mxu0 %v671
    %735 = vmatmul.bf16.gmra.mxu0 %v686
    %v736 = vpop.f32.mrf.mxu0
    %v737 = vadd.f32 0.0, %v736
    %v738 = vpop.f32.mrf.mxu0
    %739 = vdwg.mxu0
    %v740 = vrot.slane %v639, 7
    %v741 = vsel %vm641, %v740, %v638
    %v742 = vpack.c.b16 %v741, %v741
    %v751 = vunpack.c.l.b16 %v615
    %v752 = vunpack.c.h.b16 %v615
    %v753 = vunpack.c.l.b16 %v616
    %v754 = vunpack.c.h.b16 %v616
    %v755 = vunpack.c.l.b16 %v617
    %v756 = vunpack.c.h.b16 %v617
    %v757 = vunpack.c.l.b16 %v618
    %v758 = vunpack.c.h.b16 %v618
    %v759 = vunpack.c.l.b16 %v619
    %v760 = vunpack.c.h.b16 %v619
    %v761 = vunpack.c.l.b16 %v620
    %v762 = vunpack.c.h.b16 %v620
    %v763 = vunpack.c.l.b16 %v621
    %v764 = vunpack.c.h.b16 %v621
    %v765 = vunpack.c.l.b16 %v622
    %v766 = vunpack.c.h.b16 %v622
    %v767 = vpack.c.b16 %v755, %v751
    %v768 = vpack.c.b16 %v756, %v752
    %v769 = vpack.c.b16 %v757, %v753
    %v770 = vpack.c.b16 %v758, %v754
    %v771 = vpack.c.b16 %v763, %v759
    %v772 = vpack.c.b16 %v764, %v760
    %v773 = vpack.c.b16 %v765, %v761
    %v774 = vpack.c.b16 %v766, %v762
    %v784 = vsel %vm684, %v742, 0
    %786 = vmatpush.bf16.msra.mxu0 0
    %787 = vmatpush.bf16.msra.mxu0 0
    %788 = vmatpush.bf16.msra.mxu0 0
    %789 = vmatpush.bf16.msra.mxu0 0
    %790 = vmatpush.bf16.msra.mxu0 0
    %791 = vmatpush.bf16.msra.mxu0 0
    %792 = vmatpush.bf16.msra.mxu0 %v771
    %793 = vmatpush.bf16.msra.mxu0 %v767
    %794 = vmatmul.bf16.gmra.mxu0 %v784
    %v795 = vpop.f32.mrf.mxu0
    %v796 = vadd.f32 %v698, %v795
    %v797 = vpop.f32.mrf.mxu0
    %798 = vdwg.mxu0
    %799 = vmatpush.bf16.msra.mxu0 0
    %800 = vmatpush.bf16.msra.mxu0 0
    %801 = vmatpush.bf16.msra.mxu0 0
    %802 = vmatpush.bf16.msra.mxu0 0
    %803 = vmatpush.bf16.msra.mxu0 0
    %804 = vmatpush.bf16.msra.mxu0 0
    %805 = vmatpush.bf16.msra.mxu0 %v772
    %806 = vmatpush.bf16.msra.mxu0 %v768
    %807 = vmatmul.bf16.gmra.mxu0 %v784
    %v808 = vpop.f32.mrf.mxu0
    %v809 = vadd.f32 %v711, %v808
    %v810 = vpop.f32.mrf.mxu0
    %811 = vdwg.mxu0
    %812 = vmatpush.bf16.msra.mxu0 0
    %813 = vmatpush.bf16.msra.mxu0 0
    %814 = vmatpush.bf16.msra.mxu0 0
    %815 = vmatpush.bf16.msra.mxu0 0
    %816 = vmatpush.bf16.msra.mxu0 0
    %817 = vmatpush.bf16.msra.mxu0 0
    %818 = vmatpush.bf16.msra.mxu0 %v773
    %819 = vmatpush.bf16.msra.mxu0 %v769
    %820 = vmatmul.bf16.gmra.mxu0 %v784
    %v821 = vpop.f32.mrf.mxu0
    %v822 = vadd.f32 %v724, %v821
    %v823 = vpop.f32.mrf.mxu0
    %824 = vdwg.mxu0
    %825 = vmatpush.bf16.msra.mxu0 0
    %826 = vmatpush.bf16.msra.mxu0 0
    %827 = vmatpush.bf16.msra.mxu0 0
    %828 = vmatpush.bf16.msra.mxu0 0
    %829 = vmatpush.bf16.msra.mxu0 0
    %830 = vmatpush.bf16.msra.mxu0 0
    %831 = vmatpush.bf16.msra.mxu0 %v774
    %832 = vmatpush.bf16.msra.mxu0 %v770
    %833 = vmatmul.bf16.gmra.mxu0 %v784
    %v834 = vpop.f32.mrf.mxu0
    %v835 = vadd.f32 %v737, %v834
    %v836 = vpop.f32.mrf.mxu0
    %837 = vdwg.mxu0
    %s838 = scalar_lea.vmem %s3, 128
    %v839 = vld [vmem:[%s838] sm:$0xff]
    %v840 = vld [vmem:[%s838 + $0x8] sm:$0xff]
    %v841 = vld [vmem:[%s838 + $0x10] sm:$0xff]
    %v842 = vld [vmem:[%s838 + $0x18] sm:$0xff]
    %v843 = vld [vmem:[%s838 + $0x20] sm:$0xff]
    %v844 = vld [vmem:[%s838 + $0x28] sm:$0xff]
    %v845 = vld [vmem:[%s838 + $0x30] sm:$0xff]
    %v846 = vld [vmem:[%s838 + $0x38] sm:$0xff]
    %v847 = vrot.slane %v638, 2
    %v848 = vrot.slane %v639, 1
    %v849 = vsel %vm641, %v848, %v847
    %v850 = vpack.c.b16 %v849, %v849
    %v859 = vunpack.c.l.b16 %v839
    %v860 = vunpack.c.h.b16 %v839
    %v861 = vunpack.c.l.b16 %v840
    %v862 = vunpack.c.h.b16 %v840
    %v863 = vunpack.c.l.b16 %v841
    %v864 = vunpack.c.h.b16 %v841
    %v865 = vunpack.c.l.b16 %v842
    %v866 = vunpack.c.h.b16 %v842
    %v867 = vunpack.c.l.b16 %v843
    %v868 = vunpack.c.h.b16 %v843
    %v869 = vunpack.c.l.b16 %v844
    %v870 = vunpack.c.h.b16 %v844
    %v871 = vunpack.c.l.b16 %v845
    %v872 = vunpack.c.h.b16 %v845
    %v873 = vunpack.c.l.b16 %v846
    %v874 = vunpack.c.h.b16 %v846
    %v875 = vpack.c.b16 %v863, %v859
    %v876 = vpack.c.b16 %v864, %v860
    %v877 = vpack.c.b16 %v865, %v861
    %v878 = vpack.c.b16 %v866, %v862
    %v879 = vpack.c.b16 %v871, %v867
    %v880 = vpack.c.b16 %v872, %v868
    %v881 = vpack.c.b16 %v873, %v869
    %v882 = vpack.c.b16 %v874, %v870
    %v892 = vsel %vm684, %v850, 0
    %894 = vmatpush.bf16.msra.mxu0 0
    %895 = vmatpush.bf16.msra.mxu0 0
    %896 = vmatpush.bf16.msra.mxu0 0
    %897 = vmatpush.bf16.msra.mxu0 0
    %898 = vmatpush.bf16.msra.mxu0 0
    %899 = vmatpush.bf16.msra.mxu0 0
    %900 = vmatpush.bf16.msra.mxu0 %v879
    %901 = vmatpush.bf16.msra.mxu0 %v875
    %902 = vmatmul.bf16.gmra.mxu0 %v892
    %v903 = vpop.f32.mrf.mxu0
    %v904 = vadd.f32 0.0, %v903
    %v905 = vpop.f32.mrf.mxu0
    %906 = vdwg.mxu0
    %907 = vmatpush.bf16.msra.mxu0 0
    %908 = vmatpush.bf16.msra.mxu0 0
    %909 = vmatpush.bf16.msra.mxu0 0
    %910 = vmatpush.bf16.msra.mxu0 0
    %911 = vmatpush.bf16.msra.mxu0 0
    %912 = vmatpush.bf16.msra.mxu0 0
    %913 = vmatpush.bf16.msra.mxu0 %v880
    %914 = vmatpush.bf16.msra.mxu0 %v876
    %915 = vmatmul.bf16.gmra.mxu0 %v892
    %v916 = vpop.f32.mrf.mxu0
    %v917 = vadd.f32 0.0, %v916
    %v918 = vpop.f32.mrf.mxu0
    %919 = vdwg.mxu0
    %920 = vmatpush.bf16.msra.mxu0 0
    %921 = vmatpush.bf16.msra.mxu0 0
    %922 = vmatpush.bf16.msra.mxu0 0
    %923 = vmatpush.bf16.msra.mxu0 0
    %924 = vmatpush.bf16.msra.mxu0 0
    %925 = vmatpush.bf16.msra.mxu0 0
    %926 = vmatpush.bf16.msra.mxu0 %v881
    %927 = vmatpush.bf16.msra.mxu0 %v877
    %928 = vmatmul.bf16.gmra.mxu0 %v892
    %v929 = vpop.f32.mrf.mxu0
    %v930 = vadd.f32 0.0, %v929
    %v931 = vpop.f32.mrf.mxu0
    %932 = vdwg.mxu0
    %933 = vmatpush.bf16.msra.mxu0 0
    %934 = vmatpush.bf16.msra.mxu0 0
    %935 = vmatpush.bf16.msra.mxu0 0
    %936 = vmatpush.bf16.msra.mxu0 0
    %937 = vmatpush.bf16.msra.mxu0 0
    %938 = vmatpush.bf16.msra.mxu0 0
    %939 = vmatpush.bf16.msra.mxu0 %v882
    %940 = vmatpush.bf16.msra.mxu0 %v878
    %941 = vmatmul.bf16.gmra.mxu0 %v892
    %v942 = vpop.f32.mrf.mxu0
    %v943 = vadd.f32 0.0, %v942
    %v944 = vpop.f32.mrf.mxu0
    %945 = vdwg.mxu0
    %v946 = vadd.f32 %v796, %v904
    %v947 = vadd.f32 %v809, %v917
    %v948 = vadd.f32 %v822, %v930
    %v949 = vadd.f32 %v835, %v943
    %s950 = scalar_lea.vmem %s3, 192
    %v951 = vld [vmem:[%s950] sm:$0xff]
    %v952 = vld [vmem:[%s950 + $0x8] sm:$0xff]
    %v953 = vld [vmem:[%s950 + $0x10] sm:$0xff]
    %v954 = vld [vmem:[%s950 + $0x18] sm:$0xff]
    %v955 = vld [vmem:[%s950 + $0x20] sm:$0xff]
    %v956 = vld [vmem:[%s950 + $0x28] sm:$0xff]
    %v957 = vld [vmem:[%s950 + $0x30] sm:$0xff]
    %v958 = vld [vmem:[%s950 + $0x38] sm:$0xff]
    %v959 = vrot.slane %v638, 3
    %v960 = vrot.slane %v639, 2
    %v961 = vsel %vm641, %v960, %v959
    %v962 = vpack.c.b16 %v961, %v961
    %v971 = vunpack.c.l.b16 %v951
    %v972 = vunpack.c.h.b16 %v951
    %v973 = vunpack.c.l.b16 %v952
    %v974 = vunpack.c.h.b16 %v952
    %v975 = vunpack.c.l.b16 %v953
    %v976 = vunpack.c.h.b16 %v953
    %v977 = vunpack.c.l.b16 %v954
    %v978 = vunpack.c.h.b16 %v954
    %v979 = vunpack.c.l.b16 %v955
    %v980 = vunpack.c.h.b16 %v955
    %v981 = vunpack.c.l.b16 %v956
    %v982 = vunpack.c.h.b16 %v956
    %v983 = vunpack.c.l.b16 %v957
    %v984 = vunpack.c.h.b16 %v957
    %v985 = vunpack.c.l.b16 %v958
    %v986 = vunpack.c.h.b16 %v958
    %v987 = vpack.c.b16 %v975, %v971
    %v988 = vpack.c.b16 %v976, %v972
    %v989 = vpack.c.b16 %v977, %v973
    %v990 = vpack.c.b16 %v978, %v974
    %v991 = vpack.c.b16 %v983, %v979
    %v992 = vpack.c.b16 %v984, %v980
    %v993 = vpack.c.b16 %v985, %v981
    %v994 = vpack.c.b16 %v986, %v982
    %v1004 = vsel %vm684, %v962, 0
    %1006 = vmatpush.bf16.msra.mxu0 0
    %1007 = vmatpush.bf16.msra.mxu0 0
    %1008 = vmatpush.bf16.msra.mxu0 0
    %1009 = vmatpush.bf16.msra.mxu0 0
    %1010 = vmatpush.bf16.msra.mxu0 0
    %1011 = vmatpush.bf16.msra.mxu0 0
    %1012 = vmatpush.bf16.msra.mxu0 %v991
    %1013 = vmatpush.bf16.msra.mxu0 %v987
    %1014 = vmatmul.bf16.gmra.mxu0 %v1004
    %v1015 = vpop.f32.mrf.mxu0
    %v1016 = vadd.f32 0.0, %v1015
    %v1017 = vpop.f32.mrf.mxu0
    %1018 = vdwg.mxu0
    %1019 = vmatpush.bf16.msra.mxu0 0
    %1020 = vmatpush.bf16.msra.mxu0 0
    %1021 = vmatpush.bf16.msra.mxu0 0
    %1022 = vmatpush.bf16.msra.mxu0 0
    %1023 = vmatpush.bf16.msra.mxu0 0
    %1024 = vmatpush.bf16.msra.mxu0 0
    %1025 = vmatpush.bf16.msra.mxu0 %v992
    %1026 = vmatpush.bf16.msra.mxu0 %v988
    %1027 = vmatmul.bf16.gmra.mxu0 %v1004
    %v1028 = vpop.f32.mrf.mxu0
    %v1029 = vadd.f32 0.0, %v1028
    %v1030 = vpop.f32.mrf.mxu0
    %1031 = vdwg.mxu0
    %1032 = vmatpush.bf16.msra.mxu0 0
    %1033 = vmatpush.bf16.msra.mxu0 0
    %1034 = vmatpush.bf16.msra.mxu0 0
    %1035 = vmatpush.bf16.msra.mxu0 0
    %1036 = vmatpush.bf16.msra.mxu0 0
    %1037 = vmatpush.bf16.msra.mxu0 0
    %1038 = vmatpush.bf16.msra.mxu0 %v993
    %1039 = vmatpush.bf16.msra.mxu0 %v989
    %1040 = vmatmul.bf16.gmra.mxu0 %v1004
    %v1041 = vpop.f32.mrf.mxu0
    %v1042 = vadd.f32 0.0, %v1041
    %v1043 = vpop.f32.mrf.mxu0
    %1044 = vdwg.mxu0
    %1045 = vmatpush.bf16.msra.mxu0 0
    %1046 = vmatpush.bf16.msra.mxu0 0
    %1047 = vmatpush.bf16.msra.mxu0 0
    %1048 = vmatpush.bf16.msra.mxu0 0
    %1049 = vmatpush.bf16.msra.mxu0 0
    %1050 = vmatpush.bf16.msra.mxu0 0
    %1051 = vmatpush.bf16.msra.mxu0 %v994
    %1052 = vmatpush.bf16.msra.mxu0 %v990
    %1053 = vmatmul.bf16.gmra.mxu0 %v1004
    %v1054 = vpop.f32.mrf.mxu0
    %v1055 = vadd.f32 0.0, %v1054
    %v1056 = vpop.f32.mrf.mxu0
    %1057 = vdwg.mxu0
    %v1058 = vadd.f32 %v946, %v1016
    %v1059 = vadd.f32 %v947, %v1029
    %v1060 = vadd.f32 %v948, %v1042
    %v1061 = vadd.f32 %v949, %v1055
    %s1062 = scalar_lea.vmem %s3, 256
    %v1063 = vld [vmem:[%s1062] sm:$0xff]
    %v1064 = vld [vmem:[%s1062 + $0x8] sm:$0xff]
    %v1065 = vld [vmem:[%s1062 + $0x10] sm:$0xff]
    %v1066 = vld [vmem:[%s1062 + $0x18] sm:$0xff]
    %v1067 = vld [vmem:[%s1062 + $0x20] sm:$0xff]
    %v1068 = vld [vmem:[%s1062 + $0x28] sm:$0xff]
    %v1069 = vld [vmem:[%s1062 + $0x30] sm:$0xff]
    %v1070 = vld [vmem:[%s1062 + $0x38] sm:$0xff]
    %v1071 = vrot.slane %v638, 4
    %v1072 = vrot.slane %v639, 3
    %v1073 = vsel %vm641, %v1072, %v1071
    %v1074 = vpack.c.b16 %v1073, %v1073
    %v1083 = vunpack.c.l.b16 %v1063
    %v1084 = vunpack.c.h.b16 %v1063
    %v1085 = vunpack.c.l.b16 %v1064
    %v1086 = vunpack.c.h.b16 %v1064
    %v1087 = vunpack.c.l.b16 %v1065
    %v1088 = vunpack.c.h.b16 %v1065
    %v1089 = vunpack.c.l.b16 %v1066
    %v1090 = vunpack.c.h.b16 %v1066
    %v1091 = vunpack.c.l.b16 %v1067
    %v1092 = vunpack.c.h.b16 %v1067
    %v1093 = vunpack.c.l.b16 %v1068
    %v1094 = vunpack.c.h.b16 %v1068
    %v1095 = vunpack.c.l.b16 %v1069
    %v1096 = vunpack.c.h.b16 %v1069
    %v1097 = vunpack.c.l.b16 %v1070
    %v1098 = vunpack.c.h.b16 %v1070
    %v1099 = vpack.c.b16 %v1087, %v1083
    %v1100 = vpack.c.b16 %v1088, %v1084
    %v1101 = vpack.c.b16 %v1089, %v1085
    %v1102 = vpack.c.b16 %v1090, %v1086
    %v1103 = vpack.c.b16 %v1095, %v1091
    %v1104 = vpack.c.b16 %v1096, %v1092
    %v1105 = vpack.c.b16 %v1097, %v1093
    %v1106 = vpack.c.b16 %v1098, %v1094
    %v1116 = vsel %vm684, %v1074, 0
    %1118 = vmatpush.bf16.msra.mxu0 0
    %1119 = vmatpush.bf16.msra.mxu0 0
    %1120 = vmatpush.bf16.msra.mxu0 0
    %1121 = vmatpush.bf16.msra.mxu0 0
    %1122 = vmatpush.bf16.msra.mxu0 0
    %1123 = vmatpush.bf16.msra.mxu0 0
    %1124 = vmatpush.bf16.msra.mxu0 %v1103
    %1125 = vmatpush.bf16.msra.mxu0 %v1099
    %1126 = vmatmul.bf16.gmra.mxu0 %v1116
    %v1127 = vpop.f32.mrf.mxu0
    %v1128 = vadd.f32 0.0, %v1127
    %v1129 = vpop.f32.mrf.mxu0
    %1130 = vdwg.mxu0
    %1131 = vmatpush.bf16.msra.mxu0 0
    %1132 = vmatpush.bf16.msra.mxu0 0
    %1133 = vmatpush.bf16.msra.mxu0 0
    %1134 = vmatpush.bf16.msra.mxu0 0
    %1135 = vmatpush.bf16.msra.mxu0 0
    %1136 = vmatpush.bf16.msra.mxu0 0
    %1137 = vmatpush.bf16.msra.mxu0 %v1104
    %1138 = vmatpush.bf16.msra.mxu0 %v1100
    %1139 = vmatmul.bf16.gmra.mxu0 %v1116
    %v1140 = vpop.f32.mrf.mxu0
    %v1141 = vadd.f32 0.0, %v1140
    %v1142 = vpop.f32.mrf.mxu0
    %1143 = vdwg.mxu0
    %1144 = vmatpush.bf16.msra.mxu0 0
    %1145 = vmatpush.bf16.msra.mxu0 0
    %1146 = vmatpush.bf16.msra.mxu0 0
    %1147 = vmatpush.bf16.msra.mxu0 0
    %1148 = vmatpush.bf16.msra.mxu0 0
    %1149 = vmatpush.bf16.msra.mxu0 0
    %1150 = vmatpush.bf16.msra.mxu0 %v1105
    %1151 = vmatpush.bf16.msra.mxu0 %v1101
    %1152 = vmatmul.bf16.gmra.mxu0 %v1116
    %v1153 = vpop.f32.mrf.mxu0
    %v1154 = vadd.f32 0.0, %v1153
    %v1155 = vpop.f32.mrf.mxu0
    %1156 = vdwg.mxu0
    %1157 = vmatpush.bf16.msra.mxu0 0
    %1158 = vmatpush.bf16.msra.mxu0 0
    %1159 = vmatpush.bf16.msra.mxu0 0
    %1160 = vmatpush.bf16.msra.mxu0 0
    %1161 = vmatpush.bf16.msra.mxu0 0
    %1162 = vmatpush.bf16.msra.mxu0 0
    %1163 = vmatpush.bf16.msra.mxu0 %v1106
    %1164 = vmatpush.bf16.msra.mxu0 %v1102
    %1165 = vmatmul.bf16.gmra.mxu0 %v1116
    %v1166 = vpop.f32.mrf.mxu0
    %v1167 = vadd.f32 0.0, %v1166
    %v1168 = vpop.f32.mrf.mxu0
    %1169 = vdwg.mxu0
    %v1170 = vadd.f32 %v1058, %v1128
    %v1171 = vadd.f32 %v1059, %v1141
    %v1172 = vadd.f32 %v1060, %v1154
    %v1173 = vadd.f32 %v1061, %v1167
    %s1174 = scalar_lea.vmem %s3, 320
    %v1175 = vld [vmem:[%s1174] sm:$0xff]
    %v1176 = vld [vmem:[%s1174 + $0x8] sm:$0xff]
    %v1177 = vld [vmem:[%s1174 + $0x10] sm:$0xff]
    %v1178 = vld [vmem:[%s1174 + $0x18] sm:$0xff]
    %v1179 = vld [vmem:[%s1174 + $0x20] sm:$0xff]
    %v1180 = vld [vmem:[%s1174 + $0x28] sm:$0xff]
    %v1181 = vld [vmem:[%s1174 + $0x30] sm:$0xff]
    %v1182 = vld [vmem:[%s1174 + $0x38] sm:$0xff]
    %v1183 = vrot.slane %v638, 5
    %v1184 = vrot.slane %v639, 4
    %v1185 = vsel %vm641, %v1184, %v1183
    %v1186 = vpack.c.b16 %v1185, %v1185
    %v1195 = vunpack.c.l.b16 %v1175
    %v1196 = vunpack.c.h.b16 %v1175
    %v1197 = vunpack.c.l.b16 %v1176
    %v1198 = vunpack.c.h.b16 %v1176
    %v1199 = vunpack.c.l.b16 %v1177
    %v1200 = vunpack.c.h.b16 %v1177
    %v1201 = vunpack.c.l.b16 %v1178
    %v1202 = vunpack.c.h.b16 %v1178
    %v1203 = vunpack.c.l.b16 %v1179
    %v1204 = vunpack.c.h.b16 %v1179
    %v1205 = vunpack.c.l.b16 %v1180
    %v1206 = vunpack.c.h.b16 %v1180
    %v1207 = vunpack.c.l.b16 %v1181
    %v1208 = vunpack.c.h.b16 %v1181
    %v1209 = vunpack.c.l.b16 %v1182
    %v1210 = vunpack.c.h.b16 %v1182
    %v1211 = vpack.c.b16 %v1199, %v1195
    %v1212 = vpack.c.b16 %v1200, %v1196
    %v1213 = vpack.c.b16 %v1201, %v1197
    %v1214 = vpack.c.b16 %v1202, %v1198
    %v1215 = vpack.c.b16 %v1207, %v1203
    %v1216 = vpack.c.b16 %v1208, %v1204
    %v1217 = vpack.c.b16 %v1209, %v1205
    %v1218 = vpack.c.b16 %v1210, %v1206
    %v1228 = vsel %vm684, %v1186, 0
    %1230 = vmatpush.bf16.msra.mxu0 0
    %1231 = vmatpush.bf16.msra.mxu0 0
    %1232 = vmatpush.bf16.msra.mxu0 0
    %1233 = vmatpush.bf16.msra.mxu0 0
    %1234 = vmatpush.bf16.msra.mxu0 0
    %1235 = vmatpush.bf16.msra.mxu0 0
    %1236 = vmatpush.bf16.msra.mxu0 %v1215
    %1237 = vmatpush.bf16.msra.mxu0 %v1211
    %1238 = vmatmul.bf16.gmra.mxu0 %v1228
    %v1239 = vpop.f32.mrf.mxu0
    %v1240 = vadd.f32 0.0, %v1239
    %v1241 = vpop.f32.mrf.mxu0
    %1242 = vdwg.mxu0
    %1243 = vmatpush.bf16.msra.mxu0 0
    %1244 = vmatpush.bf16.msra.mxu0 0
    %1245 = vmatpush.bf16.msra.mxu0 0
    %1246 = vmatpush.bf16.msra.mxu0 0
    %1247 = vmatpush.bf16.msra.mxu0 0
    %1248 = vmatpush.bf16.msra.mxu0 0
    %1249 = vmatpush.bf16.msra.mxu0 %v1216
    %1250 = vmatpush.bf16.msra.mxu0 %v1212
    %1251 = vmatmul.bf16.gmra.mxu0 %v1228
    %v1252 = vpop.f32.mrf.mxu0
    %v1253 = vadd.f32 0.0, %v1252
    %v1254 = vpop.f32.mrf.mxu0
    %1255 = vdwg.mxu0
    %1256 = vmatpush.bf16.msra.mxu0 0
    %1257 = vmatpush.bf16.msra.mxu0 0
    %1258 = vmatpush.bf16.msra.mxu0 0
    %1259 = vmatpush.bf16.msra.mxu0 0
    %1260 = vmatpush.bf16.msra.mxu0 0
    %1261 = vmatpush.bf16.msra.mxu0 0
    %1262 = vmatpush.bf16.msra.mxu0 %v1217
    %1263 = vmatpush.bf16.msra.mxu0 %v1213
    %1264 = vmatmul.bf16.gmra.mxu0 %v1228
    %v1265 = vpop.f32.mrf.mxu0
    %v1266 = vadd.f32 0.0, %v1265
    %v1267 = vpop.f32.mrf.mxu0
    %1268 = vdwg.mxu0
    %1269 = vmatpush.bf16.msra.mxu0 0
    %1270 = vmatpush.bf16.msra.mxu0 0
    %1271 = vmatpush.bf16.msra.mxu0 0
    %1272 = vmatpush.bf16.msra.mxu0 0
    %1273 = vmatpush.bf16.msra.mxu0 0
    %1274 = vmatpush.bf16.msra.mxu0 0
    %1275 = vmatpush.bf16.msra.mxu0 %v1218
    %1276 = vmatpush.bf16.msra.mxu0 %v1214
    %1277 = vmatmul.bf16.gmra.mxu0 %v1228
    %v1278 = vpop.f32.mrf.mxu0
    %v1279 = vadd.f32 0.0, %v1278
    %v1280 = vpop.f32.mrf.mxu0
    %1281 = vdwg.mxu0
    %v1282 = vadd.f32 %v1170, %v1240
    %v1283 = vadd.f32 %v1171, %v1253
    %v1284 = vadd.f32 %v1172, %v1266
    %v1285 = vadd.f32 %v1173, %v1279
    %s1286 = scalar_lea.vmem %s3, 384
    %v1287 = vld [vmem:[%s1286] sm:$0xff]
    %v1288 = vld [vmem:[%s1286 + $0x8] sm:$0xff]
    %v1289 = vld [vmem:[%s1286 + $0x10] sm:$0xff]
    %v1290 = vld [vmem:[%s1286 + $0x18] sm:$0xff]
    %v1291 = vld [vmem:[%s1286 + $0x20] sm:$0xff]
    %v1292 = vld [vmem:[%s1286 + $0x28] sm:$0xff]
    %v1293 = vld [vmem:[%s1286 + $0x30] sm:$0xff]
    %v1294 = vld [vmem:[%s1286 + $0x38] sm:$0xff]
    %v1295 = vrot.slane %v638, 6
    %v1296 = vrot.slane %v639, 5
    %v1297 = vsel %vm641, %v1296, %v1295
    %v1298 = vpack.c.b16 %v1297, %v1297
    %v1307 = vunpack.c.l.b16 %v1287
    %v1308 = vunpack.c.h.b16 %v1287
    %v1309 = vunpack.c.l.b16 %v1288
    %v1310 = vunpack.c.h.b16 %v1288
    %v1311 = vunpack.c.l.b16 %v1289
    %v1312 = vunpack.c.h.b16 %v1289
    %v1313 = vunpack.c.l.b16 %v1290
    %v1314 = vunpack.c.h.b16 %v1290
    %v1315 = vunpack.c.l.b16 %v1291
    %v1316 = vunpack.c.h.b16 %v1291
    %v1317 = vunpack.c.l.b16 %v1292
    %v1318 = vunpack.c.h.b16 %v1292
    %v1319 = vunpack.c.l.b16 %v1293
    %v1320 = vunpack.c.h.b16 %v1293
    %v1321 = vunpack.c.l.b16 %v1294
    %v1322 = vunpack.c.h.b16 %v1294
    %v1323 = vpack.c.b16 %v1311, %v1307
    %v1324 = vpack.c.b16 %v1312, %v1308
    %v1325 = vpack.c.b16 %v1313, %v1309
    %v1326 = vpack.c.b16 %v1314, %v1310
    %v1327 = vpack.c.b16 %v1319, %v1315
    %v1328 = vpack.c.b16 %v1320, %v1316
    %v1329 = vpack.c.b16 %v1321, %v1317
    %v1330 = vpack.c.b16 %v1322, %v1318
    %v1340 = vsel %vm684, %v1298, 0
    %1342 = vmatpush.bf16.msra.mxu0 0
    %1343 = vmatpush.bf16.msra.mxu0 0
    %1344 = vmatpush.bf16.msra.mxu0 0
    %1345 = vmatpush.bf16.msra.mxu0 0
    %1346 = vmatpush.bf16.msra.mxu0 0
    %1347 = vmatpush.bf16.msra.mxu0 0
    %1348 = vmatpush.bf16.msra.mxu0 %v1327
    %1349 = vmatpush.bf16.msra.mxu0 %v1323
    %1350 = vmatmul.bf16.gmra.mxu0 %v1340
    %v1351 = vpop.f32.mrf.mxu0
    %v1352 = vadd.f32 0.0, %v1351
    %v1353 = vpop.f32.mrf.mxu0
    %1354 = vdwg.mxu0
    %1355 = vmatpush.bf16.msra.mxu0 0
    %1356 = vmatpush.bf16.msra.mxu0 0
    %1357 = vmatpush.bf16.msra.mxu0 0
    %1358 = vmatpush.bf16.msra.mxu0 0
    %1359 = vmatpush.bf16.msra.mxu0 0
    %1360 = vmatpush.bf16.msra.mxu0 0
    %1361 = vmatpush.bf16.msra.mxu0 %v1328
    %1362 = vmatpush.bf16.msra.mxu0 %v1324
    %1363 = vmatmul.bf16.gmra.mxu0 %v1340
    %v1364 = vpop.f32.mrf.mxu0
    %v1365 = vadd.f32 0.0, %v1364
    %v1366 = vpop.f32.mrf.mxu0
    %1367 = vdwg.mxu0
    %1368 = vmatpush.bf16.msra.mxu0 0
    %1369 = vmatpush.bf16.msra.mxu0 0
    %1370 = vmatpush.bf16.msra.mxu0 0
    %1371 = vmatpush.bf16.msra.mxu0 0
    %1372 = vmatpush.bf16.msra.mxu0 0
    %1373 = vmatpush.bf16.msra.mxu0 0
    %1374 = vmatpush.bf16.msra.mxu0 %v1329
    %1375 = vmatpush.bf16.msra.mxu0 %v1325
    %1376 = vmatmul.bf16.gmra.mxu0 %v1340
    %v1377 = vpop.f32.mrf.mxu0
    %v1378 = vadd.f32 0.0, %v1377
    %v1379 = vpop.f32.mrf.mxu0
    %1380 = vdwg.mxu0
    %1381 = vmatpush.bf16.msra.mxu0 0
    %1382 = vmatpush.bf16.msra.mxu0 0
    %1383 = vmatpush.bf16.msra.mxu0 0
    %1384 = vmatpush.bf16.msra.mxu0 0
    %1385 = vmatpush.bf16.msra.mxu0 0
    %1386 = vmatpush.bf16.msra.mxu0 0
    %1387 = vmatpush.bf16.msra.mxu0 %v1330
    %1388 = vmatpush.bf16.msra.mxu0 %v1326
    %1389 = vmatmul.bf16.gmra.mxu0 %v1340
    %v1390 = vpop.f32.mrf.mxu0
    %v1391 = vadd.f32 0.0, %v1390
    %v1392 = vpop.f32.mrf.mxu0
    %1393 = vdwg.mxu0
    %v1394 = vadd.f32 %v1282, %v1352
    %v1395 = vadd.f32 %v1283, %v1365
    %v1396 = vadd.f32 %v1284, %v1378
    %v1397 = vadd.f32 %v1285, %v1391
    %s1398 = scalar_lea.vmem %s3, 448
    %v1399 = vld [vmem:[%s1398] sm:$0xff]
    %v1400 = vld [vmem:[%s1398 + $0x8] sm:$0xff]
    %v1401 = vld [vmem:[%s1398 + $0x10] sm:$0xff]
    %v1402 = vld [vmem:[%s1398 + $0x18] sm:$0xff]
    %v1403 = vld [vmem:[%s1398 + $0x20] sm:$0xff]
    %v1404 = vld [vmem:[%s1398 + $0x28] sm:$0xff]
    %v1405 = vld [vmem:[%s1398 + $0x30] sm:$0xff]
    %v1406 = vld [vmem:[%s1398 + $0x38] sm:$0xff]
    %v1407 = vrot.slane %v638, 7
    %v1408 = vrot.slane %v639, 6
    %v1409 = vsel %vm641, %v1408, %v1407
    %v1410 = vpack.c.b16 %v1409, %v1409
    %v1419 = vunpack.c.l.b16 %v1399
    %v1420 = vunpack.c.h.b16 %v1399
    %v1421 = vunpack.c.l.b16 %v1400
    %v1422 = vunpack.c.h.b16 %v1400
    %v1423 = vunpack.c.l.b16 %v1401
    %v1424 = vunpack.c.h.b16 %v1401
    %v1425 = vunpack.c.l.b16 %v1402
    %v1426 = vunpack.c.h.b16 %v1402
    %v1427 = vunpack.c.l.b16 %v1403
    %v1428 = vunpack.c.h.b16 %v1403
    %v1429 = vunpack.c.l.b16 %v1404
    %v1430 = vunpack.c.h.b16 %v1404
    %v1431 = vunpack.c.l.b16 %v1405
    %v1432 = vunpack.c.h.b16 %v1405
    %v1433 = vunpack.c.l.b16 %v1406
    %v1434 = vunpack.c.h.b16 %v1406
    %v1435 = vpack.c.b16 %v1423, %v1419
    %v1436 = vpack.c.b16 %v1424, %v1420
    %v1437 = vpack.c.b16 %v1425, %v1421
    %v1438 = vpack.c.b16 %v1426, %v1422
    %v1439 = vpack.c.b16 %v1431, %v1427
    %v1440 = vpack.c.b16 %v1432, %v1428
    %v1441 = vpack.c.b16 %v1433, %v1429
    %v1442 = vpack.c.b16 %v1434, %v1430
    %v1452 = vsel %vm684, %v1410, 0
    %1454 = vmatpush.bf16.msra.mxu0 0
    %1455 = vmatpush.bf16.msra.mxu0 0
    %1456 = vmatpush.bf16.msra.mxu0 0
    %1457 = vmatpush.bf16.msra.mxu0 0
    %1458 = vmatpush.bf16.msra.mxu0 0
    %1459 = vmatpush.bf16.msra.mxu0 0
    %1460 = vmatpush.bf16.msra.mxu0 %v1439
    %1461 = vmatpush.bf16.msra.mxu0 %v1435
    %1462 = vmatmul.bf16.gmra.mxu0 %v1452
    %v1463 = vpop.f32.mrf.mxu0
    %v1464 = vadd.f32 0.0, %v1463
    %v1465 = vpop.f32.mrf.mxu0
    %1466 = vdwg.mxu0
    %1467 = vmatpush.bf16.msra.mxu0 0
    %1468 = vmatpush.bf16.msra.mxu0 0
    %1469 = vmatpush.bf16.msra.mxu0 0
    %1470 = vmatpush.bf16.msra.mxu0 0
    %1471 = vmatpush.bf16.msra.mxu0 0
    %1472 = vmatpush.bf16.msra.mxu0 0
    %1473 = vmatpush.bf16.msra.mxu0 %v1440
    %1474 = vmatpush.bf16.msra.mxu0 %v1436
    %1475 = vmatmul.bf16.gmra.mxu0 %v1452
    %v1476 = vpop.f32.mrf.mxu0
    %v1477 = vadd.f32 0.0, %v1476
    %v1478 = vpop.f32.mrf.mxu0
    %1479 = vdwg.mxu0
    %1480 = vmatpush.bf16.msra.mxu0 0
    %1481 = vmatpush.bf16.msra.mxu0 0
    %1482 = vmatpush.bf16.msra.mxu0 0
    %1483 = vmatpush.bf16.msra.mxu0 0
    %1484 = vmatpush.bf16.msra.mxu0 0
    %1485 = vmatpush.bf16.msra.mxu0 0
    %1486 = vmatpush.bf16.msra.mxu0 %v1441
    %1487 = vmatpush.bf16.msra.mxu0 %v1437
    %1488 = vmatmul.bf16.gmra.mxu0 %v1452
    %v1489 = vpop.f32.mrf.mxu0
    %v1490 = vadd.f32 0.0, %v1489
    %v1491 = vpop.f32.mrf.mxu0
    %1492 = vdwg.mxu0
    %1493 = vmatpush.bf16.msra.mxu0 0
    %1494 = vmatpush.bf16.msra.mxu0 0
    %1495 = vmatpush.bf16.msra.mxu0 0
    %1496 = vmatpush.bf16.msra.mxu0 0
    %1497 = vmatpush.bf16.msra.mxu0 0
    %1498 = vmatpush.bf16.msra.mxu0 0
    %1499 = vmatpush.bf16.msra.mxu0 %v1442
    %1500 = vmatpush.bf16.msra.mxu0 %v1438
    %1501 = vmatmul.bf16.gmra.mxu0 %v1452
    %v1502 = vpop.f32.mrf.mxu0
    %v1503 = vadd.f32 0.0, %v1502
    %v1504 = vpop.f32.mrf.mxu0
    %1505 = vdwg.mxu0
    %v1506 = vadd.f32 %v1394, %v1464
    %v1507 = vadd.f32 %v1395, %v1477
    %v1508 = vadd.f32 %v1396, %v1490
    %v1509 = vadd.f32 %v1397, %v1503
    %s1510 = scalar_lea.vmem %s3, 512
    %v1511 = vld [vmem:[%s1510] sm:$0xff]
    %v1512 = vld [vmem:[%s1510 + $0x8] sm:$0xff]
    %v1513 = vld [vmem:[%s1510 + $0x10] sm:$0xff]
    %v1514 = vld [vmem:[%s1510 + $0x18] sm:$0xff]
    %v1515 = vld [vmem:[%s1510 + $0x20] sm:$0xff]
    %v1516 = vld [vmem:[%s1510 + $0x28] sm:$0xff]
    %v1517 = vld [vmem:[%s1510 + $0x30] sm:$0xff]
    %v1518 = vld [vmem:[%s1510 + $0x38] sm:$0xff]
    %v1521 = vunpack.c.l.b16 %v612
    %v1522 = vunpack.c.l.b16 %v614
    %v1523 = vpack.c.b16 %v1521, %v1521
    %v1524 = vpack.c.b16 %v1522, %v1522
    %v1525 = vunpack.c.l.b16 %v1523
    %v1526 = vunpack.c.l.b16 %v1524
    %v1527 = vrot.slane %v1526, 7
    %v1528 = vsel %vm641, %v1527, %v1525
    %v1529 = vpack.c.b16 %v1528, %v1528
    %v1538 = vunpack.c.l.b16 %v1511
    %v1539 = vunpack.c.h.b16 %v1511
    %v1540 = vunpack.c.l.b16 %v1512
    %v1541 = vunpack.c.h.b16 %v1512
    %v1542 = vunpack.c.l.b16 %v1513
    %v1543 = vunpack.c.h.b16 %v1513
    %v1544 = vunpack.c.l.b16 %v1514
    %v1545 = vunpack.c.h.b16 %v1514
    %v1546 = vunpack.c.l.b16 %v1515
    %v1547 = vunpack.c.h.b16 %v1515
    %v1548 = vunpack.c.l.b16 %v1516
    %v1549 = vunpack.c.h.b16 %v1516
    %v1550 = vunpack.c.l.b16 %v1517
    %v1551 = vunpack.c.h.b16 %v1517
    %v1552 = vunpack.c.l.b16 %v1518
    %v1553 = vunpack.c.h.b16 %v1518
    %v1554 = vpack.c.b16 %v1542, %v1538
    %v1555 = vpack.c.b16 %v1543, %v1539
    %v1556 = vpack.c.b16 %v1544, %v1540
    %v1557 = vpack.c.b16 %v1545, %v1541
    %v1558 = vpack.c.b16 %v1550, %v1546
    %v1559 = vpack.c.b16 %v1551, %v1547
    %v1560 = vpack.c.b16 %v1552, %v1548
    %v1561 = vpack.c.b16 %v1553, %v1549
    %v1571 = vsel %vm684, %v1529, 0
    %1573 = vmatpush.bf16.msra.mxu0 0
    %1574 = vmatpush.bf16.msra.mxu0 0
    %1575 = vmatpush.bf16.msra.mxu0 0
    %1576 = vmatpush.bf16.msra.mxu0 0
    %1577 = vmatpush.bf16.msra.mxu0 0
    %1578 = vmatpush.bf16.msra.mxu0 0
    %1579 = vmatpush.bf16.msra.mxu0 %v1558
    %1580 = vmatpush.bf16.msra.mxu0 %v1554
    %1581 = vmatmul.bf16.gmra.mxu0 %v1571
    %v1582 = vpop.f32.mrf.mxu0
    %v1583 = vadd.f32 0.0, %v1582
    %v1584 = vpop.f32.mrf.mxu0
    %1585 = vdwg.mxu0
    %1586 = vmatpush.bf16.msra.mxu0 0
    %1587 = vmatpush.bf16.msra.mxu0 0
    %1588 = vmatpush.bf16.msra.mxu0 0
    %1589 = vmatpush.bf16.msra.mxu0 0
    %1590 = vmatpush.bf16.msra.mxu0 0
    %1591 = vmatpush.bf16.msra.mxu0 0
    %1592 = vmatpush.bf16.msra.mxu0 %v1559
    %1593 = vmatpush.bf16.msra.mxu0 %v1555
    %1594 = vmatmul.bf16.gmra.mxu0 %v1571
    %v1595 = vpop.f32.mrf.mxu0
    %v1596 = vadd.f32 0.0, %v1595
    %v1597 = vpop.f32.mrf.mxu0
    %1598 = vdwg.mxu0
    %1599 = vmatpush.bf16.msra.mxu0 0
    %1600 = vmatpush.bf16.msra.mxu0 0
    %1601 = vmatpush.bf16.msra.mxu0 0
    %1602 = vmatpush.bf16.msra.mxu0 0
    %1603 = vmatpush.bf16.msra.mxu0 0
    %1604 = vmatpush.bf16.msra.mxu0 0
    %1605 = vmatpush.bf16.msra.mxu0 %v1560
    %1606 = vmatpush.bf16.msra.mxu0 %v1556
    %1607 = vmatmul.bf16.gmra.mxu0 %v1571
    %v1608 = vpop.f32.mrf.mxu0
    %v1609 = vadd.f32 0.0, %v1608
    %v1610 = vpop.f32.mrf.mxu0
    %1611 = vdwg.mxu0
    %1612 = vmatpush.bf16.msra.mxu0 0
    %1613 = vmatpush.bf16.msra.mxu0 0
    %1614 = vmatpush.bf16.msra.mxu0 0
    %1615 = vmatpush.bf16.msra.mxu0 0
    %1616 = vmatpush.bf16.msra.mxu0 0
    %1617 = vmatpush.bf16.msra.mxu0 0
    %1618 = vmatpush.bf16.msra.mxu0 %v1561
    %1619 = vmatpush.bf16.msra.mxu0 %v1557
    %1620 = vmatmul.bf16.gmra.mxu0 %v1571
    %v1621 = vpop.f32.mrf.mxu0
    %v1622 = vadd.f32 0.0, %v1621
    %v1623 = vpop.f32.mrf.mxu0
    %1624 = vdwg.mxu0
    %v1625 = vadd.f32 %v1506, %v1583
    %v1626 = vadd.f32 %v1507, %v1596
    %v1627 = vadd.f32 %v1508, %v1609
    %v1628 = vadd.f32 %v1509, %v1622
    %v1629 = vld [vmem:[%s4] sm:$0xf]
    %v1631 = vperm.slane %v1629, 0
    %v1632 = vperm.slane %v1629, 1
    %v1633 = vperm.slane %v1629, 2
    %v1634 = vperm.slane %v1629, 3
    %v1639 = vadd.f32 %v1625, %v1631
    %v1640 = vadd.f32 %v1626, %v1632
    %v1641 = vadd.f32 %v1627, %v1633
    %v1642 = vadd.f32 %v1628, %v1634
    %v1643 = vmax.f32 %v1639, 0.0
    %v1644 = vmax.f32 %v1640, 0.0
    %v1645 = vmax.f32 %v1641, 0.0
    %v1646 = vmax.f32 %v1642, 0.0
    %v1647 = vpack.c.bf16 %v1643, %v1643
    %v1648 = vpack.c.bf16 %v1644, %v1644
    %v1649 = vpack.c.bf16 %v1645, %v1645
    %v1650 = vpack.c.bf16 %v1646, %v1646
    %v1651 = vld [vmem:[%s5] sm:$0xf]
    %v1652 = vld [vmem:[%s5 + $0x4] sm:$0xf]
    %v1653 = vld [vmem:[%s5 + $0x8] sm:$0xf]
    %v1654 = vld [vmem:[%s5 + $0xc] sm:$0xf]
    %v1655 = vld [vmem:[%s5 + $0x10] sm:$0xf]
    %v1656 = vld [vmem:[%s5 + $0x14] sm:$0xf]
    %v1657 = vld [vmem:[%s5 + $0x18] sm:$0xf]
    %v1658 = vld [vmem:[%s5 + $0x1c] sm:$0xf]
    %v1659 = vld [vmem:[%s5 + $0x20] sm:$0xf]
    %v1660 = vld [vmem:[%s5 + $0x24] sm:$0xf]
    %v1661 = vld [vmem:[%s5 + $0x28] sm:$0xf]
    %v1662 = vld [vmem:[%s5 + $0x2c] sm:$0xf]
    %v1663 = vld [vmem:[%s5 + $0x30] sm:$0xf]
    %v1664 = vld [vmem:[%s5 + $0x34] sm:$0xf]
    %v1665 = vld [vmem:[%s5 + $0x38] sm:$0xf]
    %v1666 = vld [vmem:[%s5 + $0x3c] sm:$0xf]
    %v1667 = vld [vmem:[%s5 + $0x40] sm:$0xf]
    %v1668 = vld [vmem:[%s5 + $0x44] sm:$0xf]
    %v1669 = vld [vmem:[%s5 + $0x48] sm:$0xf]
    %v1670 = vld [vmem:[%s5 + $0x4c] sm:$0xf]
    %v1671 = vld [vmem:[%s5 + $0x50] sm:$0xf]
    %v1672 = vld [vmem:[%s5 + $0x54] sm:$0xf]
    %v1673 = vld [vmem:[%s5 + $0x58] sm:$0xf]
    %v1674 = vld [vmem:[%s5 + $0x5c] sm:$0xf]
    %v1675 = vld [vmem:[%s5 + $0x60] sm:$0xf]
    %v1676 = vld [vmem:[%s5 + $0x64] sm:$0xf]
    %v1677 = vld [vmem:[%s5 + $0x68] sm:$0xf]
    %v1678 = vld [vmem:[%s5 + $0x6c] sm:$0xf]
    %v1679 = vld [vmem:[%s5 + $0x70] sm:$0xf]
    %v1680 = vld [vmem:[%s5 + $0x74] sm:$0xf]
    %v1681 = vld [vmem:[%s5 + $0x78] sm:$0xf]
    %v1682 = vld [vmem:[%s5 + $0x7c] sm:$0xf]
    %v1683 = vld [vmem:[%s5 + $0x80] sm:$0xf]
    %v1684 = vld [vmem:[%s5 + $0x84] sm:$0xf]
    %v1685 = vld [vmem:[%s5 + $0x88] sm:$0xf]
    %v1686 = vld [vmem:[%s5 + $0x8c] sm:$0xf]
    %v1687 = vld [vmem:[%s5 + $0x90] sm:$0xf]
    %v1688 = vld [vmem:[%s5 + $0x94] sm:$0xf]
    %v1689 = vld [vmem:[%s5 + $0x98] sm:$0xf]
    %v1690 = vld [vmem:[%s5 + $0x9c] sm:$0xf]
    %v1691 = vld [vmem:[%s5 + $0xa0] sm:$0xf]
    %v1692 = vld [vmem:[%s5 + $0xa4] sm:$0xf]
    %v1693 = vld [vmem:[%s5 + $0xa8] sm:$0xf]
    %v1694 = vld [vmem:[%s5 + $0xac] sm:$0xf]
    %v1695 = vld [vmem:[%s5 + $0xb0] sm:$0xf]
    %v1696 = vld [vmem:[%s5 + $0xb4] sm:$0xf]
    %v1697 = vld [vmem:[%s5 + $0xb8] sm:$0xf]
    %v1698 = vld [vmem:[%s5 + $0xbc] sm:$0xf]
    %v1699 = vld [vmem:[%s5 + $0xc0] sm:$0xf]
    %v1700 = vld [vmem:[%s5 + $0xc4] sm:$0xf]
    %v1701 = vld [vmem:[%s5 + $0xc8] sm:$0xf]
    %v1702 = vld [vmem:[%s5 + $0xcc] sm:$0xf]
    %v1703 = vld [vmem:[%s5 + $0xd0] sm:$0xf]
    %v1704 = vld [vmem:[%s5 + $0xd4] sm:$0xf]
    %v1705 = vld [vmem:[%s5 + $0xd8] sm:$0xf]
    %v1706 = vld [vmem:[%s5 + $0xdc] sm:$0xf]
    %v1707 = vld [vmem:[%s5 + $0xe0] sm:$0xf]
    %v1708 = vld [vmem:[%s5 + $0xe4] sm:$0xf]
    %v1709 = vld [vmem:[%s5 + $0xe8] sm:$0xf]
    %v1710 = vld [vmem:[%s5 + $0xec] sm:$0xf]
    %v1711 = vld [vmem:[%s5 + $0xf0] sm:$0xf]
    %v1712 = vld [vmem:[%s5 + $0xf4] sm:$0xf]
    %v1713 = vld [vmem:[%s5 + $0xf8] sm:$0x3]
    %v1714 = vld [vmem:[%s6] sm:$0x1]
    %v1716 = vperm.slane %v1714, 0
    %v1781 = vunpack.c.l.b16 %v1651
    %v1782 = vunpack.c.l.b16 %v1652
    %v1783 = vunpack.c.l.b16 %v1653
    %v1784 = vunpack.c.l.b16 %v1654
    %v1785 = vunpack.c.l.b16 %v1655
    %v1786 = vunpack.c.l.b16 %v1656
    %v1787 = vunpack.c.l.b16 %v1657
    %v1788 = vunpack.c.l.b16 %v1658
    %v1789 = vunpack.c.l.b16 %v1659
    %v1790 = vunpack.c.l.b16 %v1660
    %v1791 = vunpack.c.l.b16 %v1661
    %v1792 = vunpack.c.l.b16 %v1662
    %v1793 = vunpack.c.l.b16 %v1663
    %v1794 = vunpack.c.l.b16 %v1664
    %v1795 = vunpack.c.l.b16 %v1665
    %v1796 = vunpack.c.l.b16 %v1666
    %v1797 = vunpack.c.l.b16 %v1667
    %v1798 = vunpack.c.l.b16 %v1668
    %v1799 = vunpack.c.l.b16 %v1669
    %v1800 = vunpack.c.l.b16 %v1670
    %v1801 = vunpack.c.l.b16 %v1671
    %v1802 = vunpack.c.l.b16 %v1672
    %v1803 = vunpack.c.l.b16 %v1673
    %v1804 = vunpack.c.l.b16 %v1674
    %v1805 = vunpack.c.l.b16 %v1675
    %v1806 = vunpack.c.l.b16 %v1676
    %v1807 = vunpack.c.l.b16 %v1677
    %v1808 = vunpack.c.l.b16 %v1678
    %v1809 = vunpack.c.l.b16 %v1679
    %v1810 = vunpack.c.l.b16 %v1680
    %v1811 = vunpack.c.l.b16 %v1681
    %v1812 = vunpack.c.l.b16 %v1682
    %v1813 = vunpack.c.l.b16 %v1683
    %v1814 = vunpack.c.l.b16 %v1684
    %v1815 = vunpack.c.l.b16 %v1685
    %v1816 = vunpack.c.l.b16 %v1686
    %v1817 = vunpack.c.l.b16 %v1687
    %v1818 = vunpack.c.l.b16 %v1688
    %v1819 = vunpack.c.l.b16 %v1689
    %v1820 = vunpack.c.l.b16 %v1690
    %v1821 = vunpack.c.l.b16 %v1691
    %v1822 = vunpack.c.l.b16 %v1692
    %v1823 = vunpack.c.l.b16 %v1693
    %v1824 = vunpack.c.l.b16 %v1694
    %v1825 = vunpack.c.l.b16 %v1695
    %v1826 = vunpack.c.l.b16 %v1696
    %v1827 = vunpack.c.l.b16 %v1697
    %v1828 = vunpack.c.l.b16 %v1698
    %v1829 = vunpack.c.l.b16 %v1699
    %v1830 = vunpack.c.l.b16 %v1700
    %v1831 = vunpack.c.l.b16 %v1701
    %v1832 = vunpack.c.l.b16 %v1702
    %v1833 = vunpack.c.l.b16 %v1703
    %v1834 = vunpack.c.l.b16 %v1704
    %v1835 = vunpack.c.l.b16 %v1705
    %v1836 = vunpack.c.l.b16 %v1706
    %v1837 = vunpack.c.l.b16 %v1707
    %v1838 = vunpack.c.l.b16 %v1708
    %v1839 = vunpack.c.l.b16 %v1709
    %v1840 = vunpack.c.l.b16 %v1710
    %v1841 = vunpack.c.l.b16 %v1711
    %v1842 = vunpack.c.l.b16 %v1712
    %v1843 = vunpack.c.l.b16 %v1713
    %v1844 = vpack.c.b16 %v1782, %v1781
    %v1845 = vpack.c.b16 %v1784, %v1783
    %v1846 = vpack.c.b16 %v1786, %v1785
    %v1847 = vpack.c.b16 %v1788, %v1787
    %v1848 = vpack.c.b16 %v1790, %v1789
    %v1849 = vpack.c.b16 %v1792, %v1791
    %v1850 = vpack.c.b16 %v1794, %v1793
    %v1851 = vpack.c.b16 %v1796, %v1795
    %v1852 = vpack.c.b16 %v1798, %v1797
    %v1853 = vpack.c.b16 %v1800, %v1799
    %v1854 = vpack.c.b16 %v1802, %v1801
    %v1855 = vpack.c.b16 %v1804, %v1803
    %v1856 = vpack.c.b16 %v1806, %v1805
    %v1857 = vpack.c.b16 %v1808, %v1807
    %v1858 = vpack.c.b16 %v1810, %v1809
    %v1859 = vpack.c.b16 %v1812, %v1811
    %v1860 = vpack.c.b16 %v1814, %v1813
    %v1861 = vpack.c.b16 %v1816, %v1815
    %v1862 = vpack.c.b16 %v1818, %v1817
    %v1863 = vpack.c.b16 %v1820, %v1819
    %v1864 = vpack.c.b16 %v1822, %v1821
    %v1865 = vpack.c.b16 %v1824, %v1823
    %v1866 = vpack.c.b16 %v1826, %v1825
    %v1867 = vpack.c.b16 %v1828, %v1827
    %v1868 = vpack.c.b16 %v1830, %v1829
    %v1869 = vpack.c.b16 %v1832, %v1831
    %v1870 = vpack.c.b16 %v1834, %v1833
    %v1871 = vpack.c.b16 %v1836, %v1835
    %v1872 = vpack.c.b16 %v1838, %v1837
    %v1873 = vpack.c.b16 %v1840, %v1839
    %v1874 = vpack.c.b16 %v1842, %v1841
    %v1875 = vpack.c.b16 %v1843, %v1843
    %vm1907 = vcmask 949248
    %v1909 = vsel %vm1907, %v1650, 0
    %v1912 = vsel %vm64, %v1875, 0
    %1914 = vmatpush.bf16.msra.mxu0 %v1851
    %1915 = vmatpush.bf16.msra.mxu0 %v1850
    %1916 = vmatpush.bf16.msra.mxu0 %v1849
    %1917 = vmatpush.bf16.msra.mxu0 %v1848
    %1918 = vmatpush.bf16.msra.mxu0 %v1847
    %1919 = vmatpush.bf16.msra.mxu0 %v1846
    %1920 = vmatpush.bf16.msra.mxu0 %v1845
    %1921 = vmatpush.bf16.msra.mxu0 %v1844
    %1922 = vmatmul.bf16.gmra.mxu0 %v1647
    %v1923 = vpop.f32.mrf.mxu0
    %v1924 = vadd.f32 %v1716, %v1923
    %v1925 = vpop.f32.mrf.mxu0
    %1926 = vdwg.mxu0
    %1927 = vmatpush.bf16.msra.mxu0 %v1859
    %1928 = vmatpush.bf16.msra.mxu0 %v1858
    %1929 = vmatpush.bf16.msra.mxu0 %v1857
    %1930 = vmatpush.bf16.msra.mxu0 %v1856
    %1931 = vmatpush.bf16.msra.mxu0 %v1855
    %1932 = vmatpush.bf16.msra.mxu0 %v1854
    %1933 = vmatpush.bf16.msra.mxu0 %v1853
    %1934 = vmatpush.bf16.msra.mxu0 %v1852
    %1935 = vmatmul.bf16.gmra.mxu0 %v1648
    %v1936 = vpop.f32.mrf.mxu0
    %v1937 = vadd.f32 %v1924, %v1936
    %v1938 = vpop.f32.mrf.mxu0
    %1939 = vdwg.mxu0
    %1940 = vmatpush.bf16.msra.mxu0 %v1867
    %1941 = vmatpush.bf16.msra.mxu0 %v1866
    %1942 = vmatpush.bf16.msra.mxu0 %v1865
    %1943 = vmatpush.bf16.msra.mxu0 %v1864
    %1944 = vmatpush.bf16.msra.mxu0 %v1863
    %1945 = vmatpush.bf16.msra.mxu0 %v1862
    %1946 = vmatpush.bf16.msra.mxu0 %v1861
    %1947 = vmatpush.bf16.msra.mxu0 %v1860
    %1948 = vmatmul.bf16.gmra.mxu0 %v1649
    %v1949 = vpop.f32.mrf.mxu0
    %v1950 = vadd.f32 %v1937, %v1949
    %v1951 = vpop.f32.mrf.mxu0
    %1952 = vdwg.mxu0
    %1953 = vmatpush.bf16.msra.mxu0 %v1912
    %1954 = vmatpush.bf16.msra.mxu0 %v1874
    %1955 = vmatpush.bf16.msra.mxu0 %v1873
    %1956 = vmatpush.bf16.msra.mxu0 %v1872
    %1957 = vmatpush.bf16.msra.mxu0 %v1871
    %1958 = vmatpush.bf16.msra.mxu0 %v1870
    %1959 = vmatpush.bf16.msra.mxu0 %v1869
    %1960 = vmatpush.bf16.msra.mxu0 %v1868
    %1961 = vmatmul.bf16.gmra.mxu0 %v1909
    %v1962 = vpop.f32.mrf.mxu0
    %v1963 = vadd.f32 %v1950, %v1962
    %v1964 = vpop.f32.mrf.mxu0
    %1965 = vdwg.mxu0
    %v1966 = vmax.f32 %v1963, 0.0
    %v1967 = vpack.c.bf16 %v1966, %v1966
    %v1968 = vld [vmem:[%s7] sm:$0xf]
    %v1969 = vld [vmem:[%s7 + $0x4] sm:$0xf]
    %v1970 = vld [vmem:[%s7 + $0x8] sm:$0xf]
    %v1971 = vld [vmem:[%s7 + $0xc] sm:$0xf]
    %v1972 = vld [vmem:[%s7 + $0x10] sm:$0xf]
    %v1973 = vld [vmem:[%s7 + $0x14] sm:$0xf]
    %v1974 = vld [vmem:[%s7 + $0x18] sm:$0x1]
    %v1975 = vld [vmem:[%s8] sm:$0x1]
    %v1977 = vperm.slane %v1975, 0
    %v1986 = vunpack.c.l.b16 %v1968
    %v1987 = vunpack.c.l.b16 %v1969
    %v1988 = vunpack.c.l.b16 %v1970
    %v1989 = vunpack.c.l.b16 %v1971
    %v1990 = vunpack.c.l.b16 %v1972
    %v1991 = vunpack.c.l.b16 %v1973
    %v1992 = vunpack.c.l.b16 %v1974
    %v1993 = vpack.c.b16 %v1987, %v1986
    %v1994 = vpack.c.b16 %v1989, %v1988
    %v1995 = vpack.c.b16 %v1991, %v1990
    %v1996 = vpack.c.b16 %v1992, %v1992
    %vm2000 = vcmask 408576
    %v2002 = vsel %vm2000, %v1967, 0
    %vm2004 = vcmask 1040384
    %v2006 = vsel %vm2004, %v1996, 0
    %2008 = vmatpush.bf16.msra.mxu0 0
    %2009 = vmatpush.bf16.msra.mxu0 0
    %2010 = vmatpush.bf16.msra.mxu0 0
    %2011 = vmatpush.bf16.msra.mxu0 0
    %2012 = vmatpush.bf16.msra.mxu0 %v2006
    %2013 = vmatpush.bf16.msra.mxu0 %v1995
    %2014 = vmatpush.bf16.msra.mxu0 %v1994
    %2015 = vmatpush.bf16.msra.mxu0 %v1993
    %2016 = vmatmul.bf16.gmra.mxu0 %v2002
    %v2017 = vpop.f32.mrf.mxu0
    %v2018 = vadd.f32 %v1977, %v2017
    %v2019 = vpop.f32.mrf.mxu0
    %2020 = vdwg.mxu0
    %vm2021 = vcmask 74752
    %2022 = vst.msk [vmem:[#allocation2] sm:$0x3] %vm2021, %v2018
    // Predicated region
    $region38: #{forward.3} parent=1 // pred_check
      _
    $region39: #{forward.3} parent=1 // pred_check_branch
      %2024 = sbr.rel (0) target = $region41
    $region40: #{forward.3} parent=1 // pred_region
      %2026 = vsyncadd [#allocation3], 0
      %s2028 = sshll.u32 [#allocation2], 4
      %s2029 = int_to_ptr.vmem [resolvable:$true] %s2028
      %s2030 = sshll.u32 %s9, 4
      %s2031 = int_to_ptr.hbm [resolvable:$true] %s2030
      %2033 = dma.vmem_to_hbm [thread:$0]  %s2029, 32, %s2031, [#allocation3]
    $region41: #{forward.3} parent=1 // pred_fallthru
      _
    // Predicated region
    $region42: #{forward.3} parent=1 // pred_check
      _
    $region43: #{forward.3} parent=1 // pred_check_branch
      %2035 = sbr.rel (0) target = $region45
    $region44: #{forward.3} parent=1 // pred_region
      %2037 = dma.done [#allocation3], 32
    $region45: #{forward.3} parent=1 // pred_fallthru
      _
    %2038 = vsyncpa [#allocation3], 1

</llo_original>
